<compile_context>
chip_gen: v7x
topology: tpu7x:2x2x1
jax: 0.10.0
libtpu: 0.0.40
codegen_flags: <defaults>
</compile_context>

<pallas_src>
import functools

import numpy as np
import jax
import jax.numpy as jnp
from jax.experimental import pallas as pl
from jax.experimental.pallas import tpu as pltpu

F32 = jnp.float32
BF16 = jnp.bfloat16
BN_EPS = 1e-5

# Default GEMM tiles (clamped per call to the padded problem size).
TM, TN, TK = 256, 256, 512
_VMEM_LIMIT = 32 * 1024 * 1024


def _round_up(x, m):
    return ((x + m - 1) // m) * m


def _pad2(a, rows, cols):
    r, c = a.shape
    if r == rows and c == cols:
        return a
    return jnp.pad(a, ((0, rows - r), (0, cols - c)))


# --------------------------------------------------------------------------
# Fused tiled GEMM kernel: out = relu?( relu_in?(x) @ w + bias [+ residual] )
# --------------------------------------------------------------------------
def _gemm_kernel(*refs, relu_in, relu_out, has_residual):
    if has_residual:
        x_ref, w_ref, b_ref, r_ref, o_ref, acc_ref = refs
    else:
        x_ref, w_ref, b_ref, o_ref, acc_ref = refs
        r_ref = None

    @pl.when(pl.program_id(2) == 0)
    def _():
        acc_ref[...] = jnp.zeros_like(acc_ref)

    x = x_ref[...]
    if relu_in:
        x = jnp.maximum(x, 0)
    acc_ref[...] += jnp.dot(x, w_ref[...], preferred_element_type=jnp.float32)

    @pl.when(pl.program_id(2) == pl.num_programs(2) - 1)
    def _():
        y = acc_ref[...] + b_ref[...]                 # (1, tn) broadcast, f32
        if has_residual:
            y = y + r_ref[...].astype(jnp.float32)
        if relu_out:
            y = jnp.maximum(y, 0.0)
        o_ref[...] = y.astype(o_ref.dtype)


def fused_gemm(x, w, bias, residual=None, relu_in=False, relu_out=False,
               out_dtype=F32):
    """x:(M,K) @ w:(K,N) + bias:(N,) [+ residual:(M,N)], fused epilogue."""
    M, K = x.shape
    K2, N = w.shape
    assert K == K2
    tm = min(TM, _round_up(M, 16))      # 16-sublane granularity (bf16 safe)
    tn = min(TN, _round_up(N, 128))
    tk = min(TK, _round_up(K, 128))
    Mp, Kp, Np = _round_up(M, tm), _round_up(K, tk), _round_up(N, tn)

    xp = _pad2(x.astype(BF16), Mp, Kp)
    wp = _pad2(w.astype(BF16), Kp, Np)
    bp = _pad2(bias.astype(F32).reshape(1, -1), 1, Np)
    args = [xp, wp, bp]
    in_specs = [
        pl.BlockSpec((tm, tk), lambda i, j, k: (i, k)),
        pl.BlockSpec((tk, tn), lambda i, j, k: (k, j)),
        pl.BlockSpec((1, tn), lambda i, j, k: (0, j)),
    ]
    if residual is not None:
        args.append(_pad2(residual.astype(BF16), Mp, Np))
        in_specs.append(pl.BlockSpec((tm, tn), lambda i, j, k: (i, j)))

    kernel = functools.partial(_gemm_kernel, relu_in=relu_in,
                               relu_out=relu_out,
                               has_residual=residual is not None)
    out = pl.pallas_call(
        kernel,
        out_shape=jax.ShapeDtypeStruct((Mp, Np), out_dtype),
        grid_spec=pltpu.PrefetchScalarGridSpec(
            num_scalar_prefetch=0,
            grid=(Mp // tm, Np // tn, Kp // tk),
            in_specs=in_specs,
            out_specs=pl.BlockSpec((tm, tn), lambda i, j, k: (i, j)),
            scratch_shapes=[pltpu.VMEM((tm, tn), jnp.float32)],
        ),
        compiler_params=pltpu.CompilerParams(
            dimension_semantics=("parallel", "parallel", "arbitrary"),
            vmem_limit_bytes=_VMEM_LIMIT,
        ),
    )(*args)
    return out[:M, :N]


# --------------------------------------------------------------------------
# TSTP pooling kernel: single-pass mean / unbiased std over time
# --------------------------------------------------------------------------
def _tstp_kernel(x_ref, o_ref):
    x = x_ref[...]                                    # (B, D, T) f32
    t = x.shape[-1]
    s1 = jnp.sum(x, axis=-1)
    s2 = jnp.sum(x * x, axis=-1)
    mean = s1 * (1.0 / t)
    var = (s2 - t * mean * mean) * (1.0 / (t - 1))    # unbiased, one pass
    std = jnp.sqrt(jnp.maximum(var, 0.0) + 1e-7)
    o_ref[...] = jnp.concatenate([mean, std], axis=-1)


def tstp(x):
    B, D, T = x.shape
    vmem = pl.BlockSpec(memory_space=pltpu.MemorySpace.VMEM)
    return pl.pallas_call(
        _tstp_kernel,
        out_shape=jax.ShapeDtypeStruct((B, 2 * D), F32),
        in_specs=[vmem],
        out_specs=vmem,
    )(x.astype(F32))


# --------------------------------------------------------------------------
# Conv glue: NHWC patch extraction + fused GEMM (BN folded, residual fused)
# --------------------------------------------------------------------------
def _extract_patches(x, kh, kw, stride, padding):
    """NHWC x -> (B, Ho, Wo, kh*kw*C) patches (tap-major, then channel)."""
    B, H, W, C = x.shape
    if padding:
        x = jnp.pad(x, ((0, 0), (padding, padding), (padding, padding), (0, 0)))
    Hp, Wp = H + 2 * padding, W + 2 * padding
    Ho = (Hp - kh) // stride + 1
    Wo = (Wp - kw) // stride + 1
    if kh == 1 and kw == 1:
        return x[:, ::stride, ::stride, :][:, :Ho, :Wo, :], Ho, Wo
    taps = []
    for i in range(kh):
        for j in range(kw):
            taps.append(x[:, i:i + stride * Ho:stride,
                          j:j + stride * Wo:stride, :])
    return jnp.concatenate(taps, axis=-1), Ho, Wo


def conv_bn_act(x, w, stride, padding, bn_s, bn_b, relu=False, residual=None):
    """x NHWC, w torch-layout (Cout, Cin, kh, kw) -> NHWC bf16 output."""
    Cout, Cin, kh, kw = w.shape
    B = x.shape[0]
    patches, Ho, Wo = _extract_patches(x, kh, kw, stride, padding)
    cols = patches.reshape(B * Ho * Wo, kh * kw * Cin)
    # Fold BN scale into the weight matrix (exact: scale is per-Cout).
    wmat = w.transpose(2, 3, 1, 0).reshape(kh * kw * Cin, Cout) * bn_s[None, :]
    res = None if residual is None else residual.reshape(B * Ho * Wo, Cout)
    y = fused_gemm(cols, wmat, bn_b, residual=res, relu_out=relu,
                   out_dtype=BF16)
    return y.reshape(B, Ho, Wo, Cout)


def basic_block(x, p):
    """wespeaker BasicBlock (expansion = 1), residual add+ReLU fused."""
    stride = p['stride']
    h = conv_bn_act(x, p['conv1_w'], stride, 1, p['bn1_s'], p['bn1_b'],
                    relu=True)
    if 'sc_w' in p:
        sc = conv_bn_act(x, p['sc_w'], stride, 0, p['sc_bn_s'], p['sc_bn_b'],
                         relu=False)
    else:
        sc = x
    return conv_bn_act(h, p['conv2_w'], 1, 1, p['bn2_s'], p['bn2_b'],
                       relu=True, residual=sc)


# --------------------------------------------------------------------------
# Deterministic synthetic parameters
# --------------------------------------------------------------------------
def _bn_fold(key, c):
    k1, k2, k3, k4 = jax.random.split(key, 4)
    gamma = 1.0 + 0.1 * jax.random.normal(k1, (c,), F32)
    beta = 0.1 * jax.random.normal(k2, (c,), F32)
    mean = 0.1 * jax.random.normal(k3, (c,), F32)
    var = 1.0 + 0.1 * jnp.abs(jax.random.normal(k4, (c,), F32))
    s = gamma / jnp.sqrt(var + BN_EPS)
    b = beta - mean * s
    return s, b


def init_params(key, m_channels, feat_dim, embed_dim, num_blocks):
    keys = iter(jax.random.split(key, 256))
    params = {}
    params['conv1_w'] = 0.1 * jax.random.normal(next(keys),
                                                (m_channels, 1, 7, 7), F32)
    params['bn1_s'], params['bn1_b'] = _bn_fold(next(keys), m_channels)

    in_planes = m_channels
    layer_cfg = [(m_channels, num_blocks[0], 1),
                 (m_channels * 2, num_blocks[1], 2),
                 (m_channels * 4, num_blocks[2], 2),
                 (m_channels * 8, num_blocks[3], 2)]
    for li, (planes, nb, stride) in enumerate(layer_cfg, start=1):
        blocks = []
        for s in [stride] + [1] * (nb - 1):
            blk = {'stride': s}
            blk['conv1_w'] = 0.1 * jax.random.normal(
                next(keys), (planes, in_planes, 3, 3), F32)
            blk['bn1_s'], blk['bn1_b'] = _bn_fold(next(keys), planes)
            blk['conv2_w'] = 0.1 * jax.random.normal(
                next(keys), (planes, planes, 3, 3), F32)
            blk['bn2_s'], blk['bn2_b'] = _bn_fold(next(keys), planes)
            if s != 1 or in_planes != planes:
                blk['sc_w'] = 0.1 * jax.random.normal(
                    next(keys), (planes, in_planes, 1, 1), F32)
                blk['sc_bn_s'], blk['sc_bn_b'] = _bn_fold(next(keys), planes)
            blocks.append(blk)
            in_planes = planes
        params[f'layer{li}'] = blocks

    stats_dim = int(feat_dim / 16) * m_channels * 8
    pool_out = stats_dim * 2                      # TSTP: mean || std
    params['seg1_w'] = 0.1 * jax.random.normal(next(keys),
                                               (embed_dim, pool_out), F32)
    params['seg1_b'] = 0.1 * jax.random.normal(next(keys), (embed_dim,), F32)
    # seg_bn_1: BatchNorm1d(embed_dim, affine=False), fresh running stats.
    params['segbn_s'] = jnp.full((embed_dim,), 1.0 / np.sqrt(1.0 + BN_EPS), F32)
    params['segbn_b'] = jnp.zeros((embed_dim,), F32)
    params['seg2_w'] = 0.1 * jax.random.normal(next(keys),
                                               (embed_dim, embed_dim), F32)
    params['seg2_b'] = 0.1 * jax.random.normal(next(keys), (embed_dim,), F32)
    return params


# --------------------------------------------------------------------------
# Full ResNet2 forward (channels-last activations)
# --------------------------------------------------------------------------
def resnet2_forward(x, params):
    # torch: x.permute(0,2,1).unsqueeze(1) -> NCHW (B, 1, feat, T).
    # here : channels-last NHWC (B, feat, T, 1).
    x = jnp.transpose(x, (0, 2, 1))[:, :, :, None]
    out = conv_bn_act(x, params['conv1_w'], 2, 3,
                      params['bn1_s'], params['bn1_b'], relu=True)
    for li in range(1, 5):
        for blk in params[f'layer{li}']:
            out = basic_block(out, blk)

    B, Fd, T, C = out.shape
    # NHWC -> (B, C*Fd, T), matching torch's reshape(B, C*Fd, T) ordering.
    feat = jnp.transpose(out.astype(F32), (0, 3, 1, 2)).reshape(B, C * Fd, T)
    stats = tstp(feat)                                      # (B, 2*C*Fd)

    embed_a = fused_gemm(stats, params['seg1_w'].T, params['seg1_b'],
                         out_dtype=F32)
    # two_emb_layer=True: embed_b = seg_2(seg_bn_1(relu(embed_a))).
    # Fold the affine-free BN (running-stats scale/bias) into seg_2.
    w2 = (params['seg2_w'] * params['segbn_s'][None, :]).T
    b2 = params['seg2_b'] + params['seg2_w'] @ params['segbn_b']
    embed_b = fused_gemm(embed_a, w2, b2, relu_in=True, out_dtype=F32)
    return embed_a, embed_b


if __name__ == "__main__":
    # Small shapes consistent with the module: feat_dim multiple of 16.
    B, T, FEAT = 2, 32, 16
    M_CHANNELS, EMBED_DIM = 8, 32
    NUM_BLOCKS = [1, 1, 1, 1]          # block = BasicBlock (expansion = 1)

    key = jax.random.PRNGKey(0)
    k_x, k_p = jax.random.split(key)
    x = jax.random.normal(k_x, (B, T, FEAT), F32)
    params = init_params(k_p, M_CHANNELS, FEAT, EMBED_DIM, NUM_BLOCKS)

    fwd = jax.jit(lambda inp: resnet2_forward(inp, params))
    embed_a, embed_b = fwd(x)
    jax.block_until_ready((embed_a, embed_b))
    assert embed_a.shape == (B, EMBED_DIM) and embed_b.shape == (B, EMBED_DIM)
    assert np.all(np.isfinite(np.asarray(embed_a)))
    assert np.all(np.isfinite(np.asarray(embed_b)))
    print("KERNEL_OK")
</pallas_src>

<mosaic_0001>
module attributes {stable_mosaic.version = 11 : i64} {
  func.func @_gemm_kernel(%arg0: i32, %arg1: i32, %arg2: i32, %arg3: memref<256x128xbf16, #tpu.memory_space<vmem>>, %arg4: memref<128x128xbf16, #tpu.memory_space<vmem>>, %arg5: memref<1x128xf32, #tpu.memory_space<vmem>>, %arg6: memref<256x128xbf16, #tpu.memory_space<vmem>>, %arg7: memref<256x128xf32, #tpu.memory_space<vmem>>) attributes {dimension_semantics = [#tpu.dimension_semantics<parallel>, #tpu.dimension_semantics<parallel>, #tpu.dimension_semantics<arbitrary>], iteration_bounds = array<i64: 1, 1, 1>, scalar_prefetch = 0 : i64, scratch_operands = 1 : i64, tpu.core_type = #tpu.core_type<tc>, window_params = [{transform_indices = @transform_0, window_bounds = array<i64: 256, 128>}, {transform_indices = @transform_1, window_bounds = array<i64: 128, 128>}, {transform_indices = @transform_2, window_bounds = array<i64: 1, 128>}, {transform_indices = @transform_3, window_bounds = array<i64: 256, 128>}]} {
    %c0_i32 = arith.constant 0 : i32
    %0 = arith.cmpi eq, %arg2, %c0_i32 : i32
    %1 = arith.extui %0 : i1 to i32
    %c0_i32_0 = arith.constant 0 : i32
    %2 = arith.cmpi ne, %1, %c0_i32_0 : i32
    scf.if %2 {
      %cst_10 = arith.constant 0.000000e+00 : f32
      %12 = vector.broadcast %cst_10 : f32 to vector<256x128xf32>
      %c0_11 = arith.constant 0 : index
      %c0_12 = arith.constant 0 : index
      %13 = vector.load %arg7[%c0_11, %c0_12] : memref<256x128xf32, #tpu.memory_space<vmem>>, vector<256x128xf32>
      tpu.vector_store %arg7[%c0_11, %c0_12], %12 {strides = array<i32>} : memref<256x128xf32, #tpu.memory_space<vmem>>, vector<256x128xf32>,
    } else {
    }
    %c0 = arith.constant 0 : index
    %c0_1 = arith.constant 0 : index
    %3 = vector.load %arg3[%c0, %c0_1] : memref<256x128xbf16, #tpu.memory_space<vmem>>, vector<256x128xbf16>
    %c0_2 = arith.constant 0 : index
    %c0_3 = arith.constant 0 : index
    %4 = vector.load %arg7[%c0_2, %c0_3] : memref<256x128xf32, #tpu.memory_space<vmem>>, vector<256x128xf32>
    %c0_4 = arith.constant 0 : index
    %c0_5 = arith.constant 0 : index
    %5 = vector.load %arg4[%c0_4, %c0_5] : memref<128x128xbf16, #tpu.memory_space<vmem>>, vector<128x128xbf16>
    %cst = arith.constant dense<0.000000e+00> : vector<256x128xf32>
    %6 = tpu.matmul %3, %5, %cst {dimension_numbers = #tpu.dot_dimension_numbers<[1], [0], [0], [1], [0, 0, 1, 1], [], []>} : vector<256x128xbf16>, vector<128x128xbf16>, vector<256x128xf32> -> vector<256x128xf32>
    %7 = arith.addf %4, %6 : vector<256x128xf32>
    %c0_6 = arith.constant 0 : index
    %c0_7 = arith.constant 0 : index
    %8 = vector.load %arg7[%c0_6, %c0_7] : memref<256x128xf32, #tpu.memory_space<vmem>>, vector<256x128xf32>
    tpu.vector_store %arg7[%c0_6, %c0_7], %7 {strides = array<i32>} : memref<256x128xf32, #tpu.memory_space<vmem>>, vector<256x128xf32>,
    %c0_i32_8 = arith.constant 0 : i32
    %9 = arith.cmpi eq, %arg2, %c0_i32_8 : i32
    %10 = arith.extui %9 : i1 to i32
    %c0_i32_9 = arith.constant 0 : i32
    %11 = arith.cmpi ne, %10, %c0_i32_9 : i32
    scf.if %11 {
      %c0_10 = arith.constant 0 : index
      %c0_11 = arith.constant 0 : index
      %12 = vector.load %arg7[%c0_10, %c0_11] : memref<256x128xf32, #tpu.memory_space<vmem>>, vector<256x128xf32>
      %c0_12 = arith.constant 0 : index
      %c0_13 = arith.constant 0 : index
      %13 = vector.load %arg5[%c0_12, %c0_13] : memref<1x128xf32, #tpu.memory_space<vmem>>, vector<1x128xf32>
      %14 = vector.broadcast %13 : vector<1x128xf32> to vector<256x128xf32>
      %15 = arith.addf %12, %14 : vector<256x128xf32>
      %cst_14 = arith.constant 0.000000e+00 : f32
      %16 = vector.broadcast %cst_14 : f32 to vector<256x128xf32>
      %17 = arith.maximumf %15, %16 : vector<256x128xf32>
      %18 = arith.truncf %17 : vector<256x128xf32> to vector<256x128xbf16>
      %c0_15 = arith.constant 0 : index
      %c0_16 = arith.constant 0 : index
      %19 = vector.load %arg6[%c0_15, %c0_16] : memref<256x128xbf16, #tpu.memory_space<vmem>>, vector<256x128xbf16>
      tpu.vector_store %arg6[%c0_15, %c0_16], %18 {strides = array<i32>} : memref<256x128xbf16, #tpu.memory_space<vmem>>, vector<256x128xbf16>,
    } else {
    }
    return
  }
  func.func @transform_0(%arg0: i32, %arg1: i32, %arg2: i32) -> (i32, i32) {
    %c0_i32 = arith.constant 0 : i32
    return %arg0, %arg2 : i32, i32
  }
  func.func @transform_1(%arg0: i32, %arg1: i32, %arg2: i32) -> (i32, i32) {
    %c0_i32 = arith.constant 0 : i32
    return %arg2, %arg1 : i32, i32
  }
  func.func @transform_2(%arg0: i32, %arg1: i32, %arg2: i32) -> (i32, i32) {
    %c0_i32 = arith.constant 0 : i32
    %c0_i32_0 = arith.constant 0 : i32
    return %c0_i32, %arg1 : i32, i32
  }
  func.func @transform_3(%arg0: i32, %arg1: i32, %arg2: i32) -> (i32, i32) {
    %c0_i32 = arith.constant 0 : i32
    return %arg0, %arg1 : i32, i32
  }
}

module attributes {stable_mosaic.version = 11 : i64} {
  func.func @_gemm_kernel(%arg0: i32, %arg1: i32, %arg2: i32, %arg3: memref<256x128xbf16, #tpu.memory_space<vmem>>, %arg4: memref<128x128xbf16, #tpu.memory_space<vmem>>, %arg5: memref<1x128xf32, #tpu.memory_space<vmem>>, %arg6: memref<256x128xbf16, #tpu.memory_space<vmem>>, %arg7: memref<256x128xbf16, #tpu.memory_space<vmem>>, %arg8: memref<256x128xf32, #tpu.memory_space<vmem>>) attributes {dimension_semantics = [#tpu.dimension_semantics<parallel>, #tpu.dimension_semantics<parallel>, #tpu.dimension_semantics<arbitrary>], iteration_bounds = array<i64: 1, 1, 1>, scalar_prefetch = 0 : i64, scratch_operands = 1 : i64, tpu.core_type = #tpu.core_type<tc>, window_params = [{transform_indices = @transform_0, window_bounds = array<i64: 256, 128>}, {transform_indices = @transform_1, window_bounds = array<i64: 128, 128>}, {transform_indices = @transform_2, window_bounds = array<i64: 1, 128>}, {transform_indices = @transform_3, window_bounds = array<i64: 256, 128>}, {transform_indices = @transform_4, window_bounds = array<i64: 256, 128>}]} {
    %c0_i32 = arith.constant 0 : i32
    %0 = arith.cmpi eq, %arg2, %c0_i32 : i32
    %1 = arith.extui %0 : i1 to i32
    %c0_i32_0 = arith.constant 0 : i32
    %2 = arith.cmpi ne, %1, %c0_i32_0 : i32
    scf.if %2 {
      %cst_10 = arith.constant 0.000000e+00 : f32
      %12 = vector.broadcast %cst_10 : f32 to vector<256x128xf32>
      %c0_11 = arith.constant 0 : index
      %c0_12 = arith.constant 0 : index
      %13 = vector.load %arg8[%c0_11, %c0_12] : memref<256x128xf32, #tpu.memory_space<vmem>>, vector<256x128xf32>
      tpu.vector_store %arg8[%c0_11, %c0_12], %12 {strides = array<i32>} : memref<256x128xf32, #tpu.memory_space<vmem>>, vector<256x128xf32>,
    } else {
    }
    %c0 = arith.constant 0 : index
    %c0_1 = arith.constant 0 : index
    %3 = vector.load %arg3[%c0, %c0_1] : memref<256x128xbf16, #tpu.memory_space<vmem>>, vector<256x128xbf16>
    %c0_2 = arith.constant 0 : index
    %c0_3 = arith.constant 0 : index
    %4 = vector.load %arg8[%c0_2, %c0_3] : memref<256x128xf32, #tpu.memory_space<vmem>>, vector<256x128xf32>
    %c0_4 = arith.constant 0 : index
    %c0_5 = arith.constant 0 : index
    %5 = vector.load %arg4[%c0_4, %c0_5] : memref<128x128xbf16, #tpu.memory_space<vmem>>, vector<128x128xbf16>
    %cst = arith.constant dense<0.000000e+00> : vector<256x128xf32>
    %6 = tpu.matmul %3, %5, %cst {dimension_numbers = #tpu.dot_dimension_numbers<[1], [0], [0], [1], [0, 0, 1, 1], [], []>} : vector<256x128xbf16>, vector<128x128xbf16>, vector<256x128xf32> -> vector<256x128xf32>
    %7 = arith.addf %4, %6 : vector<256x128xf32>
    %c0_6 = arith.constant 0 : index
    %c0_7 = arith.constant 0 : index
    %8 = vector.load %arg8[%c0_6, %c0_7] : memref<256x128xf32, #tpu.memory_space<vmem>>, vector<256x128xf32>
    tpu.vector_store %arg8[%c0_6, %c0_7], %7 {strides = array<i32>} : memref<256x128xf32, #tpu.memory_space<vmem>>, vector<256x128xf32>,
    %c0_i32_8 = arith.constant 0 : i32
    %9 = arith.cmpi eq, %arg2, %c0_i32_8 : i32
    %10 = arith.extui %9 : i1 to i32
    %c0_i32_9 = arith.constant 0 : i32
    %11 = arith.cmpi ne, %10, %c0_i32_9 : i32
    scf.if %11 {
      %c0_10 = arith.constant 0 : index
      %c0_11 = arith.constant 0 : index
      %12 = vector.load %arg8[%c0_10, %c0_11] : memref<256x128xf32, #tpu.memory_space<vmem>>, vector<256x128xf32>
      %c0_12 = arith.constant 0 : index
      %c0_13 = arith.constant 0 : index
      %13 = vector.load %arg5[%c0_12, %c0_13] : memref<1x128xf32, #tpu.memory_space<vmem>>, vector<1x128xf32>
      %14 = vector.broadcast %13 : vector<1x128xf32> to vector<256x128xf32>
      %15 = arith.addf %12, %14 : vector<256x128xf32>
      %c0_14 = arith.constant 0 : index
      %c0_15 = arith.constant 0 : index
      %16 = vector.load %arg6[%c0_14, %c0_15] : memref<256x128xbf16, #tpu.memory_space<vmem>>, vector<256x128xbf16>
      %17 = arith.extf %16 : vector<256x128xbf16> to vector<256x128xf32>
      %18 = arith.addf %15, %17 : vector<256x128xf32>
      %cst_16 = arith.constant 0.000000e+00 : f32
      %19 = vector.broadcast %cst_16 : f32 to vector<256x128xf32>
      %20 = arith.maximumf %18, %19 : vector<256x128xf32>
      %21 = arith.truncf %20 : vector<256x128xf32> to vector<256x128xbf16>
      %c0_17 = arith.constant 0 : index
      %c0_18 = arith.constant 0 : index
      %22 = vector.load %arg7[%c0_17, %c0_18] : memref<256x128xbf16, #tpu.memory_space<vmem>>, vector<256x128xbf16>
      tpu.vector_store %arg7[%c0_17, %c0_18], %21 {strides = array<i32>} : memref<256x128xbf16, #tpu.memory_space<vmem>>, vector<256x128xbf16>,
    } else {
    }
    return
  }
  func.func @transform_0(%arg0: i32, %arg1: i32, %arg2: i32) -> (i32, i32) {
    %c0_i32 = arith.constant 0 : i32
    return %arg0, %arg2 : i32, i32
  }
  func.func @transform_1(%arg0: i32, %arg1: i32, %arg2: i32) -> (i32, i32) {
    %c0_i32 = arith.constant 0 : i32
    return %arg2, %arg1 : i32, i32
  }
  func.func @transform_2(%arg0: i32, %arg1: i32, %arg2: i32) -> (i32, i32) {
    %c0_i32 = arith.constant 0 : i32
    %c0_i32_0 = arith.constant 0 : i32
    return %c0_i32, %arg1 : i32, i32
  }
  func.func @transform_3(%arg0: i32, %arg1: i32, %arg2: i32) -> (i32, i32) {
    %c0_i32 = arith.constant 0 : i32
    return %arg0, %arg1 : i32, i32
  }
  func.func @transform_4(%arg0: i32, %arg1: i32, %arg2: i32) -> (i32, i32) {
    %c0_i32 = arith.constant 0 : i32
    return %arg0, %arg1 : i32, i32
  }
}

module attributes {stable_mosaic.version = 11 : i64} {
  func.func @_gemm_kernel(%arg0: i32, %arg1: i32, %arg2: i32, %arg3: memref<64x128xbf16, #tpu.memory_space<vmem>>, %arg4: memref<128x128xbf16, #tpu.memory_space<vmem>>, %arg5: memref<1x128xf32, #tpu.memory_space<vmem>>, %arg6: memref<64x128xbf16, #tpu.memory_space<vmem>>, %arg7: memref<64x128xf32, #tpu.memory_space<vmem>>) attributes {dimension_semantics = [#tpu.dimension_semantics<parallel>, #tpu.dimension_semantics<parallel>, #tpu.dimension_semantics<arbitrary>], iteration_bounds = array<i64: 1, 1, 1>, scalar_prefetch = 0 : i64, scratch_operands = 1 : i64, tpu.core_type = #tpu.core_type<tc>, window_params = [{transform_indices = @transform_0, window_bounds = array<i64: 64, 128>}, {transform_indices = @transform_1, window_bounds = array<i64: 128, 128>}, {transform_indices = @transform_2, window_bounds = array<i64: 1, 128>}, {transform_indices = @transform_3, window_bounds = array<i64: 64, 128>}]} {
    %c0_i32 = arith.constant 0 : i32
    %0 = arith.cmpi eq, %arg2, %c0_i32 : i32
    %1 = arith.extui %0 : i1 to i32
    %c0_i32_0 = arith.constant 0 : i32
    %2 = arith.cmpi ne, %1, %c0_i32_0 : i32
    scf.if %2 {
      %cst_10 = arith.constant 0.000000e+00 : f32
      %12 = vector.broadcast %cst_10 : f32 to vector<64x128xf32>
      %c0_11 = arith.constant 0 : index
      %c0_12 = arith.constant 0 : index
      %13 = vector.load %arg7[%c0_11, %c0_12] : memref<64x128xf32, #tpu.memory_space<vmem>>, vector<64x128xf32>
      tpu.vector_store %arg7[%c0_11, %c0_12], %12 {strides = array<i32>} : memref<64x128xf32, #tpu.memory_space<vmem>>, vector<64x128xf32>,
    } else {
    }
    %c0 = arith.constant 0 : index
    %c0_1 = arith.constant 0 : index
    %3 = vector.load %arg3[%c0, %c0_1] : memref<64x128xbf16, #tpu.memory_space<vmem>>, vector<64x128xbf16>
    %c0_2 = arith.constant 0 : index
    %c0_3 = arith.constant 0 : index
    %4 = vector.load %arg7[%c0_2, %c0_3] : memref<64x128xf32, #tpu.memory_space<vmem>>, vector<64x128xf32>
    %c0_4 = arith.constant 0 : index
    %c0_5 = arith.constant 0 : index
    %5 = vector.load %arg4[%c0_4, %c0_5] : memref<128x128xbf16, #tpu.memory_space<vmem>>, vector<128x128xbf16>
    %cst = arith.constant dense<0.000000e+00> : vector<64x128xf32>
    %6 = tpu.matmul %3, %5, %cst {dimension_numbers = #tpu.dot_dimension_numbers<[1], [0], [0], [1], [0, 0, 1, 1], [], []>} : vector<64x128xbf16>, vector<128x128xbf16>, vector<64x128xf32> -> vector<64x128xf32>
    %7 = arith.addf %4, %6 : vector<64x128xf32>
    %c0_6 = arith.constant 0 : index
    %c0_7 = arith.constant 0 : index
    %8 = vector.load %arg7[%c0_6, %c0_7] : memref<64x128xf32, #tpu.memory_space<vmem>>, vector<64x128xf32>
    tpu.vector_store %arg7[%c0_6, %c0_7], %7 {strides = array<i32>} : memref<64x128xf32, #tpu.memory_space<vmem>>, vector<64x128xf32>,
    %c0_i32_8 = arith.constant 0 : i32
    %9 = arith.cmpi eq, %arg2, %c0_i32_8 : i32
    %10 = arith.extui %9 : i1 to i32
    %c0_i32_9 = arith.constant 0 : i32
    %11 = arith.cmpi ne, %10, %c0_i32_9 : i32
    scf.if %11 {
      %c0_10 = arith.constant 0 : index
      %c0_11 = arith.constant 0 : index
      %12 = vector.load %arg7[%c0_10, %c0_11] : memref<64x128xf32, #tpu.memory_space<vmem>>, vector<64x128xf32>
      %c0_12 = arith.constant 0 : index
      %c0_13 = arith.constant 0 : index
      %13 = vector.load %arg5[%c0_12, %c0_13] : memref<1x128xf32, #tpu.memory_space<vmem>>, vector<1x128xf32>
      %14 = vector.broadcast %13 : vector<1x128xf32> to vector<64x128xf32>
      %15 = arith.addf %12, %14 : vector<64x128xf32>
      %cst_14 = arith.constant 0.000000e+00 : f32
      %16 = vector.broadcast %cst_14 : f32 to vector<64x128xf32>
      %17 = arith.maximumf %15, %16 : vector<64x128xf32>
      %18 = arith.truncf %17 : vector<64x128xf32> to vector<64x128xbf16>
      %c0_15 = arith.constant 0 : index
      %c0_16 = arith.constant 0 : index
      %19 = vector.load %arg6[%c0_15, %c0_16] : memref<64x128xbf16, #tpu.memory_space<vmem>>, vector<64x128xbf16>
      tpu.vector_store %arg6[%c0_15, %c0_16], %18 {strides = array<i32>} : memref<64x128xbf16, #tpu.memory_space<vmem>>, vector<64x128xbf16>,
    } else {
    }
    return
  }
  func.func @transform_0(%arg0: i32, %arg1: i32, %arg2: i32) -> (i32, i32) {
    %c0_i32 = arith.constant 0 : i32
    return %arg0, %arg2 : i32, i32
  }
  func.func @transform_1(%arg0: i32, %arg1: i32, %arg2: i32) -> (i32, i32) {
    %c0_i32 = arith.constant 0 : i32
    return %arg2, %arg1 : i32, i32
  }
  func.func @transform_2(%arg0: i32, %arg1: i32, %arg2: i32) -> (i32, i32) {
    %c0_i32 = arith.constant 0 : i32
    %c0_i32_0 = arith.constant 0 : i32
    return %c0_i32, %arg1 : i32, i32
  }
  func.func @transform_3(%arg0: i32, %arg1: i32, %arg2: i32) -> (i32, i32) {
    %c0_i32 = arith.constant 0 : i32
    return %arg0, %arg1 : i32, i32
  }
}

module attributes {stable_mosaic.version = 11 : i64} {
  func.func @_gemm_kernel(%arg0: i32, %arg1: i32, %arg2: i32, %arg3: memref<64x128xbf16, #tpu.memory_space<vmem>>, %arg4: memref<128x128xbf16, #tpu.memory_space<vmem>>, %arg5: memref<1x128xf32, #tpu.memory_space<vmem>>, %arg6: memref<64x128xbf16, #tpu.memory_space<vmem>>, %arg7: memref<64x128xf32, #tpu.memory_space<vmem>>) attributes {dimension_semantics = [#tpu.dimension_semantics<parallel>, #tpu.dimension_semantics<parallel>, #tpu.dimension_semantics<arbitrary>], iteration_bounds = array<i64: 1, 1, 1>, scalar_prefetch = 0 : i64, scratch_operands = 1 : i64, tpu.core_type = #tpu.core_type<tc>, window_params = [{transform_indices = @transform_0, window_bounds = array<i64: 64, 128>}, {transform_indices = @transform_1, window_bounds = array<i64: 128, 128>}, {transform_indices = @transform_2, window_bounds = array<i64: 1, 128>}, {transform_indices = @transform_3, window_bounds = array<i64: 64, 128>}]} {
    %c0_i32 = arith.constant 0 : i32
    %0 = arith.cmpi eq, %arg2, %c0_i32 : i32
    %1 = arith.extui %0 : i1 to i32
    %c0_i32_0 = arith.constant 0 : i32
    %2 = arith.cmpi ne, %1, %c0_i32_0 : i32
    scf.if %2 {
      %cst_10 = arith.constant 0.000000e+00 : f32
      %12 = vector.broadcast %cst_10 : f32 to vector<64x128xf32>
      %c0_11 = arith.constant 0 : index
      %c0_12 = arith.constant 0 : index
      %13 = vector.load %arg7[%c0_11, %c0_12] : memref<64x128xf32, #tpu.memory_space<vmem>>, vector<64x128xf32>
      tpu.vector_store %arg7[%c0_11, %c0_12], %12 {strides = array<i32>} : memref<64x128xf32, #tpu.memory_space<vmem>>, vector<64x128xf32>,
    } else {
    }
    %c0 = arith.constant 0 : index
    %c0_1 = arith.constant 0 : index
    %3 = vector.load %arg3[%c0, %c0_1] : memref<64x128xbf16, #tpu.memory_space<vmem>>, vector<64x128xbf16>
    %c0_2 = arith.constant 0 : index
    %c0_3 = arith.constant 0 : index
    %4 = vector.load %arg7[%c0_2, %c0_3] : memref<64x128xf32, #tpu.memory_space<vmem>>, vector<64x128xf32>
    %c0_4 = arith.constant 0 : index
    %c0_5 = arith.constant 0 : index
    %5 = vector.load %arg4[%c0_4, %c0_5] : memref<128x128xbf16, #tpu.memory_space<vmem>>, vector<128x128xbf16>
    %cst = arith.constant dense<0.000000e+00> : vector<64x128xf32>
    %6 = tpu.matmul %3, %5, %cst {dimension_numbers = #tpu.dot_dimension_numbers<[1], [0], [0], [1], [0, 0, 1, 1], [], []>} : vector<64x128xbf16>, vector<128x128xbf16>, vector<64x128xf32> -> vector<64x128xf32>
    %7 = arith.addf %4, %6 : vector<64x128xf32>
    %c0_6 = arith.constant 0 : index
    %c0_7 = arith.constant 0 : index
    %8 = vector.load %arg7[%c0_6, %c0_7] : memref<64x128xf32, #tpu.memory_space<vmem>>, vector<64x128xf32>
    tpu.vector_store %arg7[%c0_6, %c0_7], %7 {strides = array<i32>} : memref<64x128xf32, #tpu.memory_space<vmem>>, vector<64x128xf32>,
    %c0_i32_8 = arith.constant 0 : i32
    %9 = arith.cmpi eq, %arg2, %c0_i32_8 : i32
    %10 = arith.extui %9 : i1 to i32
    %c0_i32_9 = arith.constant 0 : i32
    %11 = arith.cmpi ne, %10, %c0_i32_9 : i32
    scf.if %11 {
      %c0_10 = arith.constant 0 : index
      %c0_11 = arith.constant 0 : index
      %12 = vector.load %arg7[%c0_10, %c0_11] : memref<64x128xf32, #tpu.memory_space<vmem>>, vector<64x128xf32>
      %c0_12 = arith.constant 0 : index
      %c0_13 = arith.constant 0 : index
      %13 = vector.load %arg5[%c0_12, %c0_13] : memref<1x128xf32, #tpu.memory_space<vmem>>, vector<1x128xf32>
      %14 = vector.broadcast %13 : vector<1x128xf32> to vector<64x128xf32>
      %15 = arith.addf %12, %14 : vector<64x128xf32>
      %16 = arith.truncf %15 : vector<64x128xf32> to vector<64x128xbf16>
      %c0_14 = arith.constant 0 : index
      %c0_15 = arith.constant 0 : index
      %17 = vector.load %arg6[%c0_14, %c0_15] : memref<64x128xbf16, #tpu.memory_space<vmem>>, vector<64x128xbf16>
      tpu.vector_store %arg6[%c0_14, %c0_15], %16 {strides = array<i32>} : memref<64x128xbf16, #tpu.memory_space<vmem>>, vector<64x128xbf16>,
    } else {
    }
    return
  }
  func.func @transform_0(%arg0: i32, %arg1: i32, %arg2: i32) -> (i32, i32) {
    %c0_i32 = arith.constant 0 : i32
    return %arg0, %arg2 : i32, i32
  }
  func.func @transform_1(%arg0: i32, %arg1: i32, %arg2: i32) -> (i32, i32) {
    %c0_i32 = arith.constant 0 : i32
    return %arg2, %arg1 : i32, i32
  }
  func.func @transform_2(%arg0: i32, %arg1: i32, %arg2: i32) -> (i32, i32) {
    %c0_i32 = arith.constant 0 : i32
    %c0_i32_0 = arith.constant 0 : i32
    return %c0_i32, %arg1 : i32, i32
  }
  func.func @transform_3(%arg0: i32, %arg1: i32, %arg2: i32) -> (i32, i32) {
    %c0_i32 = arith.constant 0 : i32
    return %arg0, %arg1 : i32, i32
  }
}

module attributes {stable_mosaic.version = 11 : i64} {
  func.func @_gemm_kernel(%arg0: i32, %arg1: i32, %arg2: i32, %arg3: memref<64x256xbf16, #tpu.memory_space<vmem>>, %arg4: memref<256x128xbf16, #tpu.memory_space<vmem>>, %arg5: memref<1x128xf32, #tpu.memory_space<vmem>>, %arg6: memref<64x128xbf16, #tpu.memory_space<vmem>>, %arg7: memref<64x128xbf16, #tpu.memory_space<vmem>>, %arg8: memref<64x128xf32, #tpu.memory_space<vmem>>) attributes {dimension_semantics = [#tpu.dimension_semantics<parallel>, #tpu.dimension_semantics<parallel>, #tpu.dimension_semantics<arbitrary>], iteration_bounds = array<i64: 1, 1, 1>, scalar_prefetch = 0 : i64, scratch_operands = 1 : i64, tpu.core_type = #tpu.core_type<tc>, window_params = [{transform_indices = @transform_0, window_bounds = array<i64: 64, 256>}, {transform_indices = @transform_1, window_bounds = array<i64: 256, 128>}, {transform_indices = @transform_2, window_bounds = array<i64: 1, 128>}, {transform_indices = @transform_3, window_bounds = array<i64: 64, 128>}, {transform_indices = @transform_4, window_bounds = array<i64: 64, 128>}]} {
    %c0_i32 = arith.constant 0 : i32
    %0 = arith.cmpi eq, %arg2, %c0_i32 : i32
    %1 = arith.extui %0 : i1 to i32
    %c0_i32_0 = arith.constant 0 : i32
    %2 = arith.cmpi ne, %1, %c0_i32_0 : i32
    scf.if %2 {
      %cst_10 = arith.constant 0.000000e+00 : f32
      %12 = vector.broadcast %cst_10 : f32 to vector<64x128xf32>
      %c0_11 = arith.constant 0 : index
      %c0_12 = arith.constant 0 : index
      %13 = vector.load %arg8[%c0_11, %c0_12] : memref<64x128xf32, #tpu.memory_space<vmem>>, vector<64x128xf32>
      tpu.vector_store %arg8[%c0_11, %c0_12], %12 {strides = array<i32>} : memref<64x128xf32, #tpu.memory_space<vmem>>, vector<64x128xf32>,
    } else {
    }
    %c0 = arith.constant 0 : index
    %c0_1 = arith.constant 0 : index
    %3 = vector.load %arg3[%c0, %c0_1] : memref<64x256xbf16, #tpu.memory_space<vmem>>, vector<64x256xbf16>
    %c0_2 = arith.constant 0 : index
    %c0_3 = arith.constant 0 : index
    %4 = vector.load %arg8[%c0_2, %c0_3] : memref<64x128xf32, #tpu.memory_space<vmem>>, vector<64x128xf32>
    %c0_4 = arith.constant 0 : index
    %c0_5 = arith.constant 0 : index
    %5 = vector.load %arg4[%c0_4, %c0_5] : memref<256x128xbf16, #tpu.memory_space<vmem>>, vector<256x128xbf16>
    %cst = arith.constant dense<0.000000e+00> : vector<64x128xf32>
    %6 = tpu.matmul %3, %5, %cst {dimension_numbers = #tpu.dot_dimension_numbers<[1], [0], [0], [1], [0, 0, 1, 1], [], []>} : vector<64x256xbf16>, vector<256x128xbf16>, vector<64x128xf32> -> vector<64x128xf32>
    %7 = arith.addf %4, %6 : vector<64x128xf32>
    %c0_6 = arith.constant 0 : index
    %c0_7 = arith.constant 0 : index
    %8 = vector.load %arg8[%c0_6, %c0_7] : memref<64x128xf32, #tpu.memory_space<vmem>>, vector<64x128xf32>
    tpu.vector_store %arg8[%c0_6, %c0_7], %7 {strides = array<i32>} : memref<64x128xf32, #tpu.memory_space<vmem>>, vector<64x128xf32>,
    %c0_i32_8 = arith.constant 0 : i32
    %9 = arith.cmpi eq, %arg2, %c0_i32_8 : i32
    %10 = arith.extui %9 : i1 to i32
    %c0_i32_9 = arith.constant 0 : i32
    %11 = arith.cmpi ne, %10, %c0_i32_9 : i32
    scf.if %11 {
      %c0_10 = arith.constant 0 : index
      %c0_11 = arith.constant 0 : index
      %12 = vector.load %arg8[%c0_10, %c0_11] : memref<64x128xf32, #tpu.memory_space<vmem>>, vector<64x128xf32>
      %c0_12 = arith.constant 0 : index
      %c0_13 = arith.constant 0 : index
      %13 = vector.load %arg5[%c0_12, %c0_13] : memref<1x128xf32, #tpu.memory_space<vmem>>, vector<1x128xf32>
      %14 = vector.broadcast %13 : vector<1x128xf32> to vector<64x128xf32>
      %15 = arith.addf %12, %14 : vector<64x128xf32>
      %c0_14 = arith.constant 0 : index
      %c0_15 = arith.constant 0 : index
      %16 = vector.load %arg6[%c0_14, %c0_15] : memref<64x128xbf16, #tpu.memory_space<vmem>>, vector<64x128xbf16>
      %17 = arith.extf %16 : vector<64x128xbf16> to vector<64x128xf32>
      %18 = arith.addf %15, %17 : vector<64x128xf32>
      %cst_16 = arith.constant 0.000000e+00 : f32
      %19 = vector.broadcast %cst_16 : f32 to vector<64x128xf32>
      %20 = arith.maximumf %18, %19 : vector<64x128xf32>
      %21 = arith.truncf %20 : vector<64x128xf32> to vector<64x128xbf16>
      %c0_17 = arith.constant 0 : index
      %c0_18 = arith.constant 0 : index
      %22 = vector.load %arg7[%c0_17, %c0_18] : memref<64x128xbf16, #tpu.memory_space<vmem>>, vector<64x128xbf16>
      tpu.vector_store %arg7[%c0_17, %c0_18], %21 {strides = array<i32>} : memref<64x128xbf16, #tpu.memory_space<vmem>>, vector<64x128xbf16>,
    } else {
    }
    return
  }
  func.func @transform_0(%arg0: i32, %arg1: i32, %arg2: i32) -> (i32, i32) {
    %c0_i32 = arith.constant 0 : i32
    return %arg0, %arg2 : i32, i32
  }
  func.func @transform_1(%arg0: i32, %arg1: i32, %arg2: i32) -> (i32, i32) {
    %c0_i32 = arith.constant 0 : i32
    return %arg2, %arg1 : i32, i32
  }
  func.func @transform_2(%arg0: i32, %arg1: i32, %arg2: i32) -> (i32, i32) {
    %c0_i32 = arith.constant 0 : i32
    %c0_i32_0 = arith.constant 0 : i32
    return %c0_i32, %arg1 : i32, i32
  }
  func.func @transform_3(%arg0: i32, %arg1: i32, %arg2: i32) -> (i32, i32) {
    %c0_i32 = arith.constant 0 : i32
    return %arg0, %arg1 : i32, i32
  }
  func.func @transform_4(%arg0: i32, %arg1: i32, %arg2: i32) -> (i32, i32) {
    %c0_i32 = arith.constant 0 : i32
    return %arg0, %arg1 : i32, i32
  }
}

module attributes {stable_mosaic.version = 11 : i64} {
  func.func @_gemm_kernel(%arg0: i32, %arg1: i32, %arg2: i32, %arg3: memref<16x256xbf16, #tpu.memory_space<vmem>>, %arg4: memref<256x128xbf16, #tpu.memory_space<vmem>>, %arg5: memref<1x128xf32, #tpu.memory_space<vmem>>, %arg6: memref<16x128xbf16, #tpu.memory_space<vmem>>, %arg7: memref<16x128xf32, #tpu.memory_space<vmem>>) attributes {dimension_semantics = [#tpu.dimension_semantics<parallel>, #tpu.dimension_semantics<parallel>, #tpu.dimension_semantics<arbitrary>], iteration_bounds = array<i64: 1, 1, 1>, scalar_prefetch = 0 : i64, scratch_operands = 1 : i64, tpu.core_type = #tpu.core_type<tc>, window_params = [{transform_indices = @transform_0, window_bounds = array<i64: 16, 256>}, {transform_indices = @transform_1, window_bounds = array<i64: 256, 128>}, {transform_indices = @transform_2, window_bounds = array<i64: 1, 128>}, {transform_indices = @transform_3, window_bounds = array<i64: 16, 128>}]} {
    %c0_i32 = arith.constant 0 : i32
    %0 = arith.cmpi eq, %arg2, %c0_i32 : i32
    %1 = arith.extui %0 : i1 to i32
    %c0_i32_0 = arith.constant 0 : i32
    %2 = arith.cmpi ne, %1, %c0_i32_0 : i32
    scf.if %2 {
      %cst_10 = arith.constant 0.000000e+00 : f32
      %12 = vector.broadcast %cst_10 : f32 to vector<16x128xf32>
      %c0_11 = arith.constant 0 : index
      %c0_12 = arith.constant 0 : index
      %13 = vector.load %arg7[%c0_11, %c0_12] : memref<16x128xf32, #tpu.memory_space<vmem>>, vector<16x128xf32>
      tpu.vector_store %arg7[%c0_11, %c0_12], %12 {strides = array<i32>} : memref<16x128xf32, #tpu.memory_space<vmem>>, vector<16x128xf32>,
    } else {
    }
    %c0 = arith.constant 0 : index
    %c0_1 = arith.constant 0 : index
    %3 = vector.load %arg3[%c0, %c0_1] : memref<16x256xbf16, #tpu.memory_space<vmem>>, vector<16x256xbf16>
    %c0_2 = arith.constant 0 : index
    %c0_3 = arith.constant 0 : index
    %4 = vector.load %arg7[%c0_2, %c0_3] : memref<16x128xf32, #tpu.memory_space<vmem>>, vector<16x128xf32>
    %c0_4 = arith.constant 0 : index
    %c0_5 = arith.constant 0 : index
    %5 = vector.load %arg4[%c0_4, %c0_5] : memref<256x128xbf16, #tpu.memory_space<vmem>>, vector<256x128xbf16>
    %cst = arith.constant dense<0.000000e+00> : vector<16x128xf32>
    %6 = tpu.matmul %3, %5, %cst {dimension_numbers = #tpu.dot_dimension_numbers<[1], [0], [0], [1], [0, 0, 1, 1], [], []>} : vector<16x256xbf16>, vector<256x128xbf16>, vector<16x128xf32> -> vector<16x128xf32>
    %7 = arith.addf %4, %6 : vector<16x128xf32>
    %c0_6 = arith.constant 0 : index
    %c0_7 = arith.constant 0 : index
    %8 = vector.load %arg7[%c0_6, %c0_7] : memref<16x128xf32, #tpu.memory_space<vmem>>, vector<16x128xf32>
    tpu.vector_store %arg7[%c0_6, %c0_7], %7 {strides = array<i32>} : memref<16x128xf32, #tpu.memory_space<vmem>>, vector<16x128xf32>,
    %c0_i32_8 = arith.constant 0 : i32
    %9 = arith.cmpi eq, %arg2, %c0_i32_8 : i32
    %10 = arith.extui %9 : i1 to i32
    %c0_i32_9 = arith.constant 0 : i32
    %11 = arith.cmpi ne, %10, %c0_i32_9 : i32
    scf.if %11 {
      %c0_10 = arith.constant 0 : index
      %c0_11 = arith.constant 0 : index
      %12 = vector.load %arg7[%c0_10, %c0_11] : memref<16x128xf32, #tpu.memory_space<vmem>>, vector<16x128xf32>
      %c0_12 = arith.constant 0 : index
      %c0_13 = arith.constant 0 : index
      %13 = vector.load %arg5[%c0_12, %c0_13] : memref<1x128xf32, #tpu.memory_space<vmem>>, vector<1x128xf32>
      %14 = vector.broadcast %13 : vector<1x128xf32> to vector<16x128xf32>
      %15 = arith.addf %12, %14 : vector<16x128xf32>
      %cst_14 = arith.constant 0.000000e+00 : f32
      %16 = vector.broadcast %cst_14 : f32 to vector<16x128xf32>
      %17 = arith.maximumf %15, %16 : vector<16x128xf32>
      %18 = arith.truncf %17 : vector<16x128xf32> to vector<16x128xbf16>
      %c0_15 = arith.constant 0 : index
      %c0_16 = arith.constant 0 : index
      %19 = vector.load %arg6[%c0_15, %c0_16] : memref<16x128xbf16, #tpu.memory_space<vmem>>, vector<16x128xbf16>
      tpu.vector_store %arg6[%c0_15, %c0_16], %18 {strides = array<i32>} : memref<16x128xbf16, #tpu.memory_space<vmem>>, vector<16x128xbf16>,
    } else {
    }
    return
  }
  func.func @transform_0(%arg0: i32, %arg1: i32, %arg2: i32) -> (i32, i32) {
    %c0_i32 = arith.constant 0 : i32
    return %arg0, %arg2 : i32, i32
  }
  func.func @transform_1(%arg0: i32, %arg1: i32, %arg2: i32) -> (i32, i32) {
    %c0_i32 = arith.constant 0 : i32
    return %arg2, %arg1 : i32, i32
  }
  func.func @transform_2(%arg0: i32, %arg1: i32, %arg2: i32) -> (i32, i32) {
    %c0_i32 = arith.constant 0 : i32
    %c0_i32_0 = arith.constant 0 : i32
    return %c0_i32, %arg1 : i32, i32
  }
  func.func @transform_3(%arg0: i32, %arg1: i32, %arg2: i32) -> (i32, i32) {
    %c0_i32 = arith.constant 0 : i32
    return %arg0, %arg1 : i32, i32
  }
}

module attributes {stable_mosaic.version = 11 : i64} {
  func.func @_gemm_kernel(%arg0: i32, %arg1: i32, %arg2: i32, %arg3: memref<16x128xbf16, #tpu.memory_space<vmem>>, %arg4: memref<128x128xbf16, #tpu.memory_space<vmem>>, %arg5: memref<1x128xf32, #tpu.memory_space<vmem>>, %arg6: memref<16x128xbf16, #tpu.memory_space<vmem>>, %arg7: memref<16x128xf32, #tpu.memory_space<vmem>>) attributes {dimension_semantics = [#tpu.dimension_semantics<parallel>, #tpu.dimension_semantics<parallel>, #tpu.dimension_semantics<arbitrary>], iteration_bounds = array<i64: 1, 1, 1>, scalar_prefetch = 0 : i64, scratch_operands = 1 : i64, tpu.core_type = #tpu.core_type<tc>, window_params = [{transform_indices = @transform_0, window_bounds = array<i64: 16, 128>}, {transform_indices = @transform_1, window_bounds = array<i64: 128, 128>}, {transform_indices = @transform_2, window_bounds = array<i64: 1, 128>}, {transform_indices = @transform_3, window_bounds = array<i64: 16, 128>}]} {
    %c0_i32 = arith.constant 0 : i32
    %0 = arith.cmpi eq, %arg2, %c0_i32 : i32
    %1 = arith.extui %0 : i1 to i32
    %c0_i32_0 = arith.constant 0 : i32
    %2 = arith.cmpi ne, %1, %c0_i32_0 : i32
    scf.if %2 {
      %cst_10 = arith.constant 0.000000e+00 : f32
      %12 = vector.broadcast %cst_10 : f32 to vector<16x128xf32>
      %c0_11 = arith.constant 0 : index
      %c0_12 = arith.constant 0 : index
      %13 = vector.load %arg7[%c0_11, %c0_12] : memref<16x128xf32, #tpu.memory_space<vmem>>, vector<16x128xf32>
      tpu.vector_store %arg7[%c0_11, %c0_12], %12 {strides = array<i32>} : memref<16x128xf32, #tpu.memory_space<vmem>>, vector<16x128xf32>,
    } else {
    }
    %c0 = arith.constant 0 : index
    %c0_1 = arith.constant 0 : index
    %3 = vector.load %arg3[%c0, %c0_1] : memref<16x128xbf16, #tpu.memory_space<vmem>>, vector<16x128xbf16>
    %c0_2 = arith.constant 0 : index
    %c0_3 = arith.constant 0 : index
    %4 = vector.load %arg7[%c0_2, %c0_3] : memref<16x128xf32, #tpu.memory_space<vmem>>, vector<16x128xf32>
    %c0_4 = arith.constant 0 : index
    %c0_5 = arith.constant 0 : index
    %5 = vector.load %arg4[%c0_4, %c0_5] : memref<128x128xbf16, #tpu.memory_space<vmem>>, vector<128x128xbf16>
    %cst = arith.constant dense<0.000000e+00> : vector<16x128xf32>
    %6 = tpu.matmul %3, %5, %cst {dimension_numbers = #tpu.dot_dimension_numbers<[1], [0], [0], [1], [0, 0, 1, 1], [], []>} : vector<16x128xbf16>, vector<128x128xbf16>, vector<16x128xf32> -> vector<16x128xf32>
    %7 = arith.addf %4, %6 : vector<16x128xf32>
    %c0_6 = arith.constant 0 : index
    %c0_7 = arith.constant 0 : index
    %8 = vector.load %arg7[%c0_6, %c0_7] : memref<16x128xf32, #tpu.memory_space<vmem>>, vector<16x128xf32>
    tpu.vector_store %arg7[%c0_6, %c0_7], %7 {strides = array<i32>} : memref<16x128xf32, #tpu.memory_space<vmem>>, vector<16x128xf32>,
    %c0_i32_8 = arith.constant 0 : i32
    %9 = arith.cmpi eq, %arg2, %c0_i32_8 : i32
    %10 = arith.extui %9 : i1 to i32
    %c0_i32_9 = arith.constant 0 : i32
    %11 = arith.cmpi ne, %10, %c0_i32_9 : i32
    scf.if %11 {
      %c0_10 = arith.constant 0 : index
      %c0_11 = arith.constant 0 : index
      %12 = vector.load %arg7[%c0_10, %c0_11] : memref<16x128xf32, #tpu.memory_space<vmem>>, vector<16x128xf32>
      %c0_12 = arith.constant 0 : index
      %c0_13 = arith.constant 0 : index
      %13 = vector.load %arg5[%c0_12, %c0_13] : memref<1x128xf32, #tpu.memory_space<vmem>>, vector<1x128xf32>
      %14 = vector.broadcast %13 : vector<1x128xf32> to vector<16x128xf32>
      %15 = arith.addf %12, %14 : vector<16x128xf32>
      %16 = arith.truncf %15 : vector<16x128xf32> to vector<16x128xbf16>
      %c0_14 = arith.constant 0 : index
      %c0_15 = arith.constant 0 : index
      %17 = vector.load %arg6[%c0_14, %c0_15] : memref<16x128xbf16, #tpu.memory_space<vmem>>, vector<16x128xbf16>
      tpu.vector_store %arg6[%c0_14, %c0_15], %16 {strides = array<i32>} : memref<16x128xbf16, #tpu.memory_space<vmem>>, vector<16x128xbf16>,
    } else {
    }
    return
  }
  func.func @transform_0(%arg0: i32, %arg1: i32, %arg2: i32) -> (i32, i32) {
    %c0_i32 = arith.constant 0 : i32
    return %arg0, %arg2 : i32, i32
  }
  func.func @transform_1(%arg0: i32, %arg1: i32, %arg2: i32) -> (i32, i32) {
    %c0_i32 = arith.constant 0 : i32
    return %arg2, %arg1 : i32, i32
  }
  func.func @transform_2(%arg0: i32, %arg1: i32, %arg2: i32) -> (i32, i32) {
    %c0_i32 = arith.constant 0 : i32
    %c0_i32_0 = arith.constant 0 : i32
    return %c0_i32, %arg1 : i32, i32
  }
  func.func @transform_3(%arg0: i32, %arg1: i32, %arg2: i32) -> (i32, i32) {
    %c0_i32 = arith.constant 0 : i32
    return %arg0, %arg1 : i32, i32
  }
}

module attributes {stable_mosaic.version = 11 : i64} {
  func.func @_gemm_kernel(%arg0: i32, %arg1: i32, %arg2: i32, %arg3: memref<16x384xbf16, #tpu.memory_space<vmem>>, %arg4: memref<384x128xbf16, #tpu.memory_space<vmem>>, %arg5: memref<1x128xf32, #tpu.memory_space<vmem>>, %arg6: memref<16x128xbf16, #tpu.memory_space<vmem>>, %arg7: memref<16x128xbf16, #tpu.memory_space<vmem>>, %arg8: memref<16x128xf32, #tpu.memory_space<vmem>>) attributes {dimension_semantics = [#tpu.dimension_semantics<parallel>, #tpu.dimension_semantics<parallel>, #tpu.dimension_semantics<arbitrary>], iteration_bounds = array<i64: 1, 1, 1>, scalar_prefetch = 0 : i64, scratch_operands = 1 : i64, tpu.core_type = #tpu.core_type<tc>, window_params = [{transform_indices = @transform_0, window_bounds = array<i64: 16, 384>}, {transform_indices = @transform_1, window_bounds = array<i64: 384, 128>}, {transform_indices = @transform_2, window_bounds = array<i64: 1, 128>}, {transform_indices = @transform_3, window_bounds = array<i64: 16, 128>}, {transform_indices = @transform_4, window_bounds = array<i64: 16, 128>}]} {
    %c0_i32 = arith.constant 0 : i32
    %0 = arith.cmpi eq, %arg2, %c0_i32 : i32
    %1 = arith.extui %0 : i1 to i32
    %c0_i32_0 = arith.constant 0 : i32
    %2 = arith.cmpi ne, %1, %c0_i32_0 : i32
    scf.if %2 {
      %cst_10 = arith.constant 0.000000e+00 : f32
      %12 = vector.broadcast %cst_10 : f32 to vector<16x128xf32>
      %c0_11 = arith.constant 0 : index
      %c0_12 = arith.constant 0 : index
      %13 = vector.load %arg8[%c0_11, %c0_12] : memref<16x128xf32, #tpu.memory_space<vmem>>, vector<16x128xf32>
      tpu.vector_store %arg8[%c0_11, %c0_12], %12 {strides = array<i32>} : memref<16x128xf32, #tpu.memory_space<vmem>>, vector<16x128xf32>,
    } else {
    }
    %c0 = arith.constant 0 : index
    %c0_1 = arith.constant 0 : index
    %3 = vector.load %arg3[%c0, %c0_1] : memref<16x384xbf16, #tpu.memory_space<vmem>>, vector<16x384xbf16>
    %c0_2 = arith.constant 0 : index
    %c0_3 = arith.constant 0 : index
    %4 = vector.load %arg8[%c0_2, %c0_3] : memref<16x128xf32, #tpu.memory_space<vmem>>, vector<16x128xf32>
    %c0_4 = arith.constant 0 : index
    %c0_5 = arith.constant 0 : index
    %5 = vector.load %arg4[%c0_4, %c0_5] : memref<384x128xbf16, #tpu.memory_space<vmem>>, vector<384x128xbf16>
    %cst = arith.constant dense<0.000000e+00> : vector<16x128xf32>
    %6 = tpu.matmul %3, %5, %cst {dimension_numbers = #tpu.dot_dimension_numbers<[1], [0], [0], [1], [0, 0, 1, 1], [], []>} : vector<16x384xbf16>, vector<384x128xbf16>, vector<16x128xf32> -> vector<16x128xf32>
    %7 = arith.addf %4, %6 : vector<16x128xf32>
    %c0_6 = arith.constant 0 : index
    %c0_7 = arith.constant 0 : index
    %8 = vector.load %arg8[%c0_6, %c0_7] : memref<16x128xf32, #tpu.memory_space<vmem>>, vector<16x128xf32>
    tpu.vector_store %arg8[%c0_6, %c0_7], %7 {strides = array<i32>} : memref<16x128xf32, #tpu.memory_space<vmem>>, vector<16x128xf32>,
    %c0_i32_8 = arith.constant 0 : i32
    %9 = arith.cmpi eq, %arg2, %c0_i32_8 : i32
    %10 = arith.extui %9 : i1 to i32
    %c0_i32_9 = arith.constant 0 : i32
    %11 = arith.cmpi ne, %10, %c0_i32_9 : i32
    scf.if %11 {
      %c0_10 = arith.constant 0 : index
      %c0_11 = arith.constant 0 : index
      %12 = vector.load %arg8[%c0_10, %c0_11] : memref<16x128xf32, #tpu.memory_space<vmem>>, vector<16x128xf32>
      %c0_12 = arith.constant 0 : index
      %c0_13 = arith.constant 0 : index
      %13 = vector.load %arg5[%c0_12, %c0_13] : memref<1x128xf32, #tpu.memory_space<vmem>>, vector<1x128xf32>
      %14 = vector.broadcast %13 : vector<1x128xf32> to vector<16x128xf32>
      %15 = arith.addf %12, %14 : vector<16x128xf32>
      %c0_14 = arith.constant 0 : index
      %c0_15 = arith.constant 0 : index
      %16 = vector.load %arg6[%c0_14, %c0_15] : memref<16x128xbf16, #tpu.memory_space<vmem>>, vector<16x128xbf16>
      %17 = arith.extf %16 : vector<16x128xbf16> to vector<16x128xf32>
      %18 = arith.addf %15, %17 : vector<16x128xf32>
      %cst_16 = arith.constant 0.000000e+00 : f32
      %19 = vector.broadcast %cst_16 : f32 to vector<16x128xf32>
      %20 = arith.maximumf %18, %19 : vector<16x128xf32>
      %21 = arith.truncf %20 : vector<16x128xf32> to vector<16x128xbf16>
      %c0_17 = arith.constant 0 : index
      %c0_18 = arith.constant 0 : index
      %22 = vector.load %arg7[%c0_17, %c0_18] : memref<16x128xbf16, #tpu.memory_space<vmem>>, vector<16x128xbf16>
      tpu.vector_store %arg7[%c0_17, %c0_18], %21 {strides = array<i32>} : memref<16x128xbf16, #tpu.memory_space<vmem>>, vector<16x128xbf16>,
    } else {
    }
    return
  }
  func.func @transform_0(%arg0: i32, %arg1: i32, %arg2: i32) -> (i32, i32) {
    %c0_i32 = arith.constant 0 : i32
    return %arg0, %arg2 : i32, i32
  }
  func.func @transform_1(%arg0: i32, %arg1: i32, %arg2: i32) -> (i32, i32) {
    %c0_i32 = arith.constant 0 : i32
    return %arg2, %arg1 : i32, i32
  }
  func.func @transform_2(%arg0: i32, %arg1: i32, %arg2: i32) -> (i32, i32) {
    %c0_i32 = arith.constant 0 : i32
    %c0_i32_0 = arith.constant 0 : i32
    return %c0_i32, %arg1 : i32, i32
  }
  func.func @transform_3(%arg0: i32, %arg1: i32, %arg2: i32) -> (i32, i32) {
    %c0_i32 = arith.constant 0 : i32
    return %arg0, %arg1 : i32, i32
  }
  func.func @transform_4(%arg0: i32, %arg1: i32, %arg2: i32) -> (i32, i32) {
    %c0_i32 = arith.constant 0 : i32
    return %arg0, %arg1 : i32, i32
  }
}

module attributes {stable_mosaic.version = 11 : i64} {
  func.func @_gemm_kernel(%arg0: i32, %arg1: i32, %arg2: i32, %arg3: memref<16x384xbf16, #tpu.memory_space<vmem>>, %arg4: memref<384x128xbf16, #tpu.memory_space<vmem>>, %arg5: memref<1x128xf32, #tpu.memory_space<vmem>>, %arg6: memref<16x128xbf16, #tpu.memory_space<vmem>>, %arg7: memref<16x128xf32, #tpu.memory_space<vmem>>) attributes {dimension_semantics = [#tpu.dimension_semantics<parallel>, #tpu.dimension_semantics<parallel>, #tpu.dimension_semantics<arbitrary>], iteration_bounds = array<i64: 1, 1, 1>, scalar_prefetch = 0 : i64, scratch_operands = 1 : i64, tpu.core_type = #tpu.core_type<tc>, window_params = [{transform_indices = @transform_0, window_bounds = array<i64: 16, 384>}, {transform_indices = @transform_1, window_bounds = array<i64: 384, 128>}, {transform_indices = @transform_2, window_bounds = array<i64: 1, 128>}, {transform_indices = @transform_3, window_bounds = array<i64: 16, 128>}]} {
    %c0_i32 = arith.constant 0 : i32
    %0 = arith.cmpi eq, %arg2, %c0_i32 : i32
    %1 = arith.extui %0 : i1 to i32
    %c0_i32_0 = arith.constant 0 : i32
    %2 = arith.cmpi ne, %1, %c0_i32_0 : i32
    scf.if %2 {
      %cst_10 = arith.constant 0.000000e+00 : f32
      %12 = vector.broadcast %cst_10 : f32 to vector<16x128xf32>
      %c0_11 = arith.constant 0 : index
      %c0_12 = arith.constant 0 : index
      %13 = vector.load %arg7[%c0_11, %c0_12] : memref<16x128xf32, #tpu.memory_space<vmem>>, vector<16x128xf32>
      tpu.vector_store %arg7[%c0_11, %c0_12], %12 {strides = array<i32>} : memref<16x128xf32, #tpu.memory_space<vmem>>, vector<16x128xf32>,
    } else {
    }
    %c0 = arith.constant 0 : index
    %c0_1 = arith.constant 0 : index
    %3 = vector.load %arg3[%c0, %c0_1] : memref<16x384xbf16, #tpu.memory_space<vmem>>, vector<16x384xbf16>
    %c0_2 = arith.constant 0 : index
    %c0_3 = arith.constant 0 : index
    %4 = vector.load %arg7[%c0_2, %c0_3] : memref<16x128xf32, #tpu.memory_space<vmem>>, vector<16x128xf32>
    %c0_4 = arith.constant 0 : index
    %c0_5 = arith.constant 0 : index
    %5 = vector.load %arg4[%c0_4, %c0_5] : memref<384x128xbf16, #tpu.memory_space<vmem>>, vector<384x128xbf16>
    %cst = arith.constant dense<0.000000e+00> : vector<16x128xf32>
    %6 = tpu.matmul %3, %5, %cst {dimension_numbers = #tpu.dot_dimension_numbers<[1], [0], [0], [1], [0, 0, 1, 1], [], []>} : vector<16x384xbf16>, vector<384x128xbf16>, vector<16x128xf32> -> vector<16x128xf32>
    %7 = arith.addf %4, %6 : vector<16x128xf32>
    %c0_6 = arith.constant 0 : index
    %c0_7 = arith.constant 0 : index
    %8 = vector.load %arg7[%c0_6, %c0_7] : memref<16x128xf32, #tpu.memory_space<vmem>>, vector<16x128xf32>
    tpu.vector_store %arg7[%c0_6, %c0_7], %7 {strides = array<i32>} : memref<16x128xf32, #tpu.memory_space<vmem>>, vector<16x128xf32>,
    %c0_i32_8 = arith.constant 0 : i32
    %9 = arith.cmpi eq, %arg2, %c0_i32_8 : i32
    %10 = arith.extui %9 : i1 to i32
    %c0_i32_9 = arith.constant 0 : i32
    %11 = arith.cmpi ne, %10, %c0_i32_9 : i32
    scf.if %11 {
      %c0_10 = arith.constant 0 : index
      %c0_11 = arith.constant 0 : index
      %12 = vector.load %arg7[%c0_10, %c0_11] : memref<16x128xf32, #tpu.memory_space<vmem>>, vector<16x128xf32>
      %c0_12 = arith.constant 0 : index
      %c0_13 = arith.constant 0 : index
      %13 = vector.load %arg5[%c0_12, %c0_13] : memref<1x128xf32, #tpu.memory_space<vmem>>, vector<1x128xf32>
      %14 = vector.broadcast %13 : vector<1x128xf32> to vector<16x128xf32>
      %15 = arith.addf %12, %14 : vector<16x128xf32>
      %cst_14 = arith.constant 0.000000e+00 : f32
      %16 = vector.broadcast %cst_14 : f32 to vector<16x128xf32>
      %17 = arith.maximumf %15, %16 : vector<16x128xf32>
      %18 = arith.truncf %17 : vector<16x128xf32> to vector<16x128xbf16>
      %c0_15 = arith.constant 0 : index
      %c0_16 = arith.constant 0 : index
      %19 = vector.load %arg6[%c0_15, %c0_16] : memref<16x128xbf16, #tpu.memory_space<vmem>>, vector<16x128xbf16>
      tpu.vector_store %arg6[%c0_15, %c0_16], %18 {strides = array<i32>} : memref<16x128xbf16, #tpu.memory_space<vmem>>, vector<16x128xbf16>,
    } else {
    }
    return
  }
  func.func @transform_0(%arg0: i32, %arg1: i32, %arg2: i32) -> (i32, i32) {
    %c0_i32 = arith.constant 0 : i32
    return %arg0, %arg2 : i32, i32
  }
  func.func @transform_1(%arg0: i32, %arg1: i32, %arg2: i32) -> (i32, i32) {
    %c0_i32 = arith.constant 0 : i32
    return %arg2, %arg1 : i32, i32
  }
  func.func @transform_2(%arg0: i32, %arg1: i32, %arg2: i32) -> (i32, i32) {
    %c0_i32 = arith.constant 0 : i32
    %c0_i32_0 = arith.constant 0 : i32
    return %c0_i32, %arg1 : i32, i32
  }
  func.func @transform_3(%arg0: i32, %arg1: i32, %arg2: i32) -> (i32, i32) {
    %c0_i32 = arith.constant 0 : i32
    return %arg0, %arg1 : i32, i32
  }
}

module attributes {stable_mosaic.version = 11 : i64} {
  func.func @_gemm_kernel(%arg0: i32, %arg1: i32, %arg2: i32, %arg3: memref<16x512xbf16, #tpu.memory_space<vmem>>, %arg4: memref<512x128xbf16, #tpu.memory_space<vmem>>, %arg5: memref<1x128xf32, #tpu.memory_space<vmem>>, %arg6: memref<16x128xbf16, #tpu.memory_space<vmem>>, %arg7: memref<16x128xbf16, #tpu.memory_space<vmem>>, %arg8: memref<16x128xf32, #tpu.memory_space<vmem>>) attributes {dimension_semantics = [#tpu.dimension_semantics<parallel>, #tpu.dimension_semantics<parallel>, #tpu.dimension_semantics<arbitrary>], iteration_bounds = array<i64: 1, 1, 2>, scalar_prefetch = 0 : i64, scratch_operands = 1 : i64, tpu.core_type = #tpu.core_type<tc>, window_params = [{transform_indices = @transform_0, window_bounds = array<i64: 16, 512>}, {transform_indices = @transform_1, window_bounds = array<i64: 512, 128>}, {transform_indices = @transform_2, window_bounds = array<i64: 1, 128>}, {transform_indices = @transform_3, window_bounds = array<i64: 16, 128>}, {transform_indices = @transform_4, window_bounds = array<i64: 16, 128>}]} {
    %c0_i32 = arith.constant 0 : i32
    %0 = arith.cmpi eq, %arg2, %c0_i32 : i32
    %1 = arith.extui %0 : i1 to i32
    %c0_i32_0 = arith.constant 0 : i32
    %2 = arith.cmpi ne, %1, %c0_i32_0 : i32
    scf.if %2 {
      %cst_9 = arith.constant 0.000000e+00 : f32
      %12 = vector.broadcast %cst_9 : f32 to vector<16x128xf32>
      %c0_10 = arith.constant 0 : index
      %c0_11 = arith.constant 0 : index
      %13 = vector.load %arg8[%c0_10, %c0_11] : memref<16x128xf32, #tpu.memory_space<vmem>>, vector<16x128xf32>
      tpu.vector_store %arg8[%c0_10, %c0_11], %12 {strides = array<i32>} : memref<16x128xf32, #tpu.memory_space<vmem>>, vector<16x128xf32>,
    } else {
    }
    %c0 = arith.constant 0 : index
    %c0_1 = arith.constant 0 : index
    %3 = vector.load %arg3[%c0, %c0_1] : memref<16x512xbf16, #tpu.memory_space<vmem>>, vector<16x512xbf16>
    %c0_2 = arith.constant 0 : index
    %c0_3 = arith.constant 0 : index
    %4 = vector.load %arg8[%c0_2, %c0_3] : memref<16x128xf32, #tpu.memory_space<vmem>>, vector<16x128xf32>
    %c0_4 = arith.constant 0 : index
    %c0_5 = arith.constant 0 : index
    %5 = vector.load %arg4[%c0_4, %c0_5] : memref<512x128xbf16, #tpu.memory_space<vmem>>, vector<512x128xbf16>
    %cst = arith.constant dense<0.000000e+00> : vector<16x128xf32>
    %6 = tpu.matmul %3, %5, %cst {dimension_numbers = #tpu.dot_dimension_numbers<[1], [0], [0], [1], [0, 0, 1, 1], [], []>} : vector<16x512xbf16>, vector<512x128xbf16>, vector<16x128xf32> -> vector<16x128xf32>
    %7 = arith.addf %4, %6 : vector<16x128xf32>
    %c0_6 = arith.constant 0 : index
    %c0_7 = arith.constant 0 : index
    %8 = vector.load %arg8[%c0_6, %c0_7] : memref<16x128xf32, #tpu.memory_space<vmem>>, vector<16x128xf32>
    tpu.vector_store %arg8[%c0_6, %c0_7], %7 {strides = array<i32>} : memref<16x128xf32, #tpu.memory_space<vmem>>, vector<16x128xf32>,
    %c1_i32 = arith.constant 1 : i32
    %9 = arith.cmpi eq, %arg2, %c1_i32 : i32
    %10 = arith.extui %9 : i1 to i32
    %c0_i32_8 = arith.constant 0 : i32
    %11 = arith.cmpi ne, %10, %c0_i32_8 : i32
    scf.if %11 {
      %c0_9 = arith.constant 0 : index
      %c0_10 = arith.constant 0 : index
      %12 = vector.load %arg8[%c0_9, %c0_10] : memref<16x128xf32, #tpu.memory_space<vmem>>, vector<16x128xf32>
      %c0_11 = arith.constant 0 : index
      %c0_12 = arith.constant 0 : index
      %13 = vector.load %arg5[%c0_11, %c0_12] : memref<1x128xf32, #tpu.memory_space<vmem>>, vector<1x128xf32>
      %14 = vector.broadcast %13 : vector<1x128xf32> to vector<16x128xf32>
      %15 = arith.addf %12, %14 : vector<16x128xf32>
      %c0_13 = arith.constant 0 : index
      %c0_14 = arith.constant 0 : index
      %16 = vector.load %arg6[%c0_13, %c0_14] : memref<16x128xbf16, #tpu.memory_space<vmem>>, vector<16x128xbf16>
      %17 = arith.extf %16 : vector<16x128xbf16> to vector<16x128xf32>
      %18 = arith.addf %15, %17 : vector<16x128xf32>
      %cst_15 = arith.constant 0.000000e+00 : f32
      %19 = vector.broadcast %cst_15 : f32 to vector<16x128xf32>
      %20 = arith.maximumf %18, %19 : vector<16x128xf32>
      %21 = arith.truncf %20 : vector<16x128xf32> to vector<16x128xbf16>
      %c0_16 = arith.constant 0 : index
      %c0_17 = arith.constant 0 : index
      %22 = vector.load %arg7[%c0_16, %c0_17] : memref<16x128xbf16, #tpu.memory_space<vmem>>, vector<16x128xbf16>
      tpu.vector_store %arg7[%c0_16, %c0_17], %21 {strides = array<i32>} : memref<16x128xbf16, #tpu.memory_space<vmem>>, vector<16x128xbf16>,
    } else {
    }
    return
  }
  func.func @transform_0(%arg0: i32, %arg1: i32, %arg2: i32) -> (i32, i32) {
    %c0_i32 = arith.constant 0 : i32
    return %arg0, %arg2 : i32, i32
  }
  func.func @transform_1(%arg0: i32, %arg1: i32, %arg2: i32) -> (i32, i32) {
    %c0_i32 = arith.constant 0 : i32
    return %arg2, %arg1 : i32, i32
  }
  func.func @transform_2(%arg0: i32, %arg1: i32, %arg2: i32) -> (i32, i32) {
    %c0_i32 = arith.constant 0 : i32
    %c0_i32_0 = arith.constant 0 : i32
    return %c0_i32, %arg1 : i32, i32
  }
  func.func @transform_3(%arg0: i32, %arg1: i32, %arg2: i32) -> (i32, i32) {
    %c0_i32 = arith.constant 0 : i32
    return %arg0, %arg1 : i32, i32
  }
  func.func @transform_4(%arg0: i32, %arg1: i32, %arg2: i32) -> (i32, i32) {
    %c0_i32 = arith.constant 0 : i32
    return %arg0, %arg1 : i32, i32
  }
}

module attributes {stable_mosaic.version = 11 : i64} {
  func.func @_tstp_kernel(%arg0: memref<2x64x2xf32, #tpu.memory_space<vmem>>, %arg1: memref<2x128xf32, #tpu.memory_space<vmem>>) attributes {dimension_semantics = [], scalar_prefetch = 0 : i64, scratch_operands = 0 : i64, tpu.core_type = #tpu.core_type<tc>} {
    %c0 = arith.constant 0 : index
    %c0_0 = arith.constant 0 : index
    %c0_1 = arith.constant 0 : index
    %0 = vector.load %arg0[%c0, %c0_0, %c0_1] : memref<2x64x2xf32, #tpu.memory_space<vmem>>, vector<2x64x2xf32>
    %cst = arith.constant dense<0.000000e+00> : vector<2x64xf32>
    %1 = vector.multi_reduction <add>, %0, %cst [2] : vector<2x64x2xf32> to vector<2x64xf32>
    %2 = arith.mulf %0, %0 : vector<2x64x2xf32>
    %cst_2 = arith.constant dense<0.000000e+00> : vector<2x64xf32>
    %3 = vector.multi_reduction <add>, %2, %cst_2 [2] : vector<2x64x2xf32> to vector<2x64xf32>
    %cst_3 = arith.constant 5.000000e-01 : f32
    %4 = vector.broadcast %cst_3 : f32 to vector<2x64xf32>
    %5 = arith.mulf %1, %4 : vector<2x64xf32>
    %cst_4 = arith.constant 2.000000e+00 : f32
    %6 = vector.broadcast %cst_4 : f32 to vector<2x64xf32>
    %7 = arith.mulf %6, %5 : vector<2x64xf32>
    %8 = arith.mulf %7, %5 : vector<2x64xf32>
    %9 = arith.subf %3, %8 : vector<2x64xf32>
    %cst_5 = arith.constant 1.000000e+00 : f32
    %10 = vector.broadcast %cst_5 : f32 to vector<2x64xf32>
    %11 = arith.mulf %9, %10 : vector<2x64xf32>
    %cst_6 = arith.constant 0.000000e+00 : f32
    %12 = vector.broadcast %cst_6 : f32 to vector<2x64xf32>
    %13 = arith.maximumf %11, %12 : vector<2x64xf32>
    %cst_7 = arith.constant 1.000000e-07 : f32
    %14 = vector.broadcast %cst_7 : f32 to vector<2x64xf32>
    %15 = arith.addf %13, %14 : vector<2x64xf32>
    %16 = math.sqrt %15 : vector<2x64xf32>
    %17 = tpu.concatenate %5, %16 in 1 : vector<2x64xf32>, vector<2x64xf32> -> vector<2x128xf32>
    %c0_8 = arith.constant 0 : index
    %c0_9 = arith.constant 0 : index
    %18 = vector.load %arg1[%c0_8, %c0_9] : memref<2x128xf32, #tpu.memory_space<vmem>>, vector<2x128xf32>
    tpu.vector_store %arg1[%c0_8, %c0_9], %17 {strides = array<i32>} : memref<2x128xf32, #tpu.memory_space<vmem>>, vector<2x128xf32>,
    return
  }
}

module attributes {stable_mosaic.version = 11 : i64} {
  func.func @_gemm_kernel(%arg0: i32, %arg1: i32, %arg2: i32, %arg3: memref<16x128xbf16, #tpu.memory_space<vmem>>, %arg4: memref<128x128xbf16, #tpu.memory_space<vmem>>, %arg5: memref<1x128xf32, #tpu.memory_space<vmem>>, %arg6: memref<16x128xf32, #tpu.memory_space<vmem>>, %arg7: memref<16x128xf32, #tpu.memory_space<vmem>>) attributes {dimension_semantics = [#tpu.dimension_semantics<parallel>, #tpu.dimension_semantics<parallel>, #tpu.dimension_semantics<arbitrary>], iteration_bounds = array<i64: 1, 1, 1>, scalar_prefetch = 0 : i64, scratch_operands = 1 : i64, tpu.core_type = #tpu.core_type<tc>, window_params = [{transform_indices = @transform_0, window_bounds = array<i64: 16, 128>}, {transform_indices = @transform_1, window_bounds = array<i64: 128, 128>}, {transform_indices = @transform_2, window_bounds = array<i64: 1, 128>}, {transform_indices = @transform_3, window_bounds = array<i64: 16, 128>}]} {
    %c0_i32 = arith.constant 0 : i32
    %0 = arith.cmpi eq, %arg2, %c0_i32 : i32
    %1 = arith.extui %0 : i1 to i32
    %c0_i32_0 = arith.constant 0 : i32
    %2 = arith.cmpi ne, %1, %c0_i32_0 : i32
    scf.if %2 {
      %cst_10 = arith.constant 0.000000e+00 : f32
      %12 = vector.broadcast %cst_10 : f32 to vector<16x128xf32>
      %c0_11 = arith.constant 0 : index
      %c0_12 = arith.constant 0 : index
      %13 = vector.load %arg7[%c0_11, %c0_12] : memref<16x128xf32, #tpu.memory_space<vmem>>, vector<16x128xf32>
      tpu.vector_store %arg7[%c0_11, %c0_12], %12 {strides = array<i32>} : memref<16x128xf32, #tpu.memory_space<vmem>>, vector<16x128xf32>,
    } else {
    }
    %c0 = arith.constant 0 : index
    %c0_1 = arith.constant 0 : index
    %3 = vector.load %arg3[%c0, %c0_1] : memref<16x128xbf16, #tpu.memory_space<vmem>>, vector<16x128xbf16>
    %c0_2 = arith.constant 0 : index
    %c0_3 = arith.constant 0 : index
    %4 = vector.load %arg7[%c0_2, %c0_3] : memref<16x128xf32, #tpu.memory_space<vmem>>, vector<16x128xf32>
    %c0_4 = arith.constant 0 : index
    %c0_5 = arith.constant 0 : index
    %5 = vector.load %arg4[%c0_4, %c0_5] : memref<128x128xbf16, #tpu.memory_space<vmem>>, vector<128x128xbf16>
    %cst = arith.constant dense<0.000000e+00> : vector<16x128xf32>
    %6 = tpu.matmul %3, %5, %cst {dimension_numbers = #tpu.dot_dimension_numbers<[1], [0], [0], [1], [0, 0, 1, 1], [], []>} : vector<16x128xbf16>, vector<128x128xbf16>, vector<16x128xf32> -> vector<16x128xf32>
    %7 = arith.addf %4, %6 : vector<16x128xf32>
    %c0_6 = arith.constant 0 : index
    %c0_7 = arith.constant 0 : index
    %8 = vector.load %arg7[%c0_6, %c0_7] : memref<16x128xf32, #tpu.memory_space<vmem>>, vector<16x128xf32>
    tpu.vector_store %arg7[%c0_6, %c0_7], %7 {strides = array<i32>} : memref<16x128xf32, #tpu.memory_space<vmem>>, vector<16x128xf32>,
    %c0_i32_8 = arith.constant 0 : i32
    %9 = arith.cmpi eq, %arg2, %c0_i32_8 : i32
    %10 = arith.extui %9 : i1 to i32
    %c0_i32_9 = arith.constant 0 : i32
    %11 = arith.cmpi ne, %10, %c0_i32_9 : i32
    scf.if %11 {
      %c0_10 = arith.constant 0 : index
      %c0_11 = arith.constant 0 : index
      %12 = vector.load %arg7[%c0_10, %c0_11] : memref<16x128xf32, #tpu.memory_space<vmem>>, vector<16x128xf32>
      %c0_12 = arith.constant 0 : index
      %c0_13 = arith.constant 0 : index
      %13 = vector.load %arg5[%c0_12, %c0_13] : memref<1x128xf32, #tpu.memory_space<vmem>>, vector<1x128xf32>
      %14 = vector.broadcast %13 : vector<1x128xf32> to vector<16x128xf32>
      %15 = arith.addf %12, %14 : vector<16x128xf32>
      %c0_14 = arith.constant 0 : index
      %c0_15 = arith.constant 0 : index
      %16 = vector.load %arg6[%c0_14, %c0_15] : memref<16x128xf32, #tpu.memory_space<vmem>>, vector<16x128xf32>
      tpu.vector_store %arg6[%c0_14, %c0_15], %15 {strides = array<i32>} : memref<16x128xf32, #tpu.memory_space<vmem>>, vector<16x128xf32>,
    } else {
    }
    return
  }
  func.func @transform_0(%arg0: i32, %arg1: i32, %arg2: i32) -> (i32, i32) {
    %c0_i32 = arith.constant 0 : i32
    return %arg0, %arg2 : i32, i32
  }
  func.func @transform_1(%arg0: i32, %arg1: i32, %arg2: i32) -> (i32, i32) {
    %c0_i32 = arith.constant 0 : i32
    return %arg2, %arg1 : i32, i32
  }
  func.func @transform_2(%arg0: i32, %arg1: i32, %arg2: i32) -> (i32, i32) {
    %c0_i32 = arith.constant 0 : i32
    %c0_i32_0 = arith.constant 0 : i32
    return %c0_i32, %arg1 : i32, i32
  }
  func.func @transform_3(%arg0: i32, %arg1: i32, %arg2: i32) -> (i32, i32) {
    %c0_i32 = arith.constant 0 : i32
    return %arg0, %arg1 : i32, i32
  }
}

module attributes {stable_mosaic.version = 11 : i64} {
  func.func @_gemm_kernel(%arg0: i32, %arg1: i32, %arg2: i32, %arg3: memref<16x128xbf16, #tpu.memory_space<vmem>>, %arg4: memref<128x128xbf16, #tpu.memory_space<vmem>>, %arg5: memref<1x128xf32, #tpu.memory_space<vmem>>, %arg6: memref<16x128xf32, #tpu.memory_space<vmem>>, %arg7: memref<16x128xf32, #tpu.memory_space<vmem>>) attributes {dimension_semantics = [#tpu.dimension_semantics<parallel>, #tpu.dimension_semantics<parallel>, #tpu.dimension_semantics<arbitrary>], iteration_bounds = array<i64: 1, 1, 1>, scalar_prefetch = 0 : i64, scratch_operands = 1 : i64, tpu.core_type = #tpu.core_type<tc>, window_params = [{transform_indices = @transform_0, window_bounds = array<i64: 16, 128>}, {transform_indices = @transform_1, window_bounds = array<i64: 128, 128>}, {transform_indices = @transform_2, window_bounds = array<i64: 1, 128>}, {transform_indices = @transform_3, window_bounds = array<i64: 16, 128>}]} {
    %c0_i32 = arith.constant 0 : i32
    %0 = arith.cmpi eq, %arg2, %c0_i32 : i32
    %1 = arith.extui %0 : i1 to i32
    %c0_i32_0 = arith.constant 0 : i32
    %2 = arith.cmpi ne, %1, %c0_i32_0 : i32
    scf.if %2 {
      %cst_11 = arith.constant 0.000000e+00 : f32
      %14 = vector.broadcast %cst_11 : f32 to vector<16x128xf32>
      %c0_12 = arith.constant 0 : index
      %c0_13 = arith.constant 0 : index
      %15 = vector.load %arg7[%c0_12, %c0_13] : memref<16x128xf32, #tpu.memory_space<vmem>>, vector<16x128xf32>
      tpu.vector_store %arg7[%c0_12, %c0_13], %14 {strides = array<i32>} : memref<16x128xf32, #tpu.memory_space<vmem>>, vector<16x128xf32>,
    } else {
    }
    %c0 = arith.constant 0 : index
    %c0_1 = arith.constant 0 : index
    %3 = vector.load %arg3[%c0, %c0_1] : memref<16x128xbf16, #tpu.memory_space<vmem>>, vector<16x128xbf16>
    %cst = arith.constant 0.000000e+00 : bf16
    %4 = vector.broadcast %cst : bf16 to vector<16x128xbf16>
    %5 = arith.maximumf %3, %4 : vector<16x128xbf16>
    %c0_2 = arith.constant 0 : index
    %c0_3 = arith.constant 0 : index
    %6 = vector.load %arg7[%c0_2, %c0_3] : memref<16x128xf32, #tpu.memory_space<vmem>>, vector<16x128xf32>
    %c0_4 = arith.constant 0 : index
    %c0_5 = arith.constant 0 : index
    %7 = vector.load %arg4[%c0_4, %c0_5] : memref<128x128xbf16, #tpu.memory_space<vmem>>, vector<128x128xbf16>
    %cst_6 = arith.constant dense<0.000000e+00> : vector<16x128xf32>
    %8 = tpu.matmul %5, %7, %cst_6 {dimension_numbers = #tpu.dot_dimension_numbers<[1], [0], [0], [1], [0, 0, 1, 1], [], []>} : vector<16x128xbf16>, vector<128x128xbf16>, vector<16x128xf32> -> vector<16x128xf32>
    %9 = arith.addf %6, %8 : vector<16x128xf32>
    %c0_7 = arith.constant 0 : index
    %c0_8 = arith.constant 0 : index
    %10 = vector.load %arg7[%c0_7, %c0_8] : memref<16x128xf32, #tpu.memory_space<vmem>>, vector<16x128xf32>
    tpu.vector_store %arg7[%c0_7, %c0_8], %9 {strides = array<i32>} : memref<16x128xf32, #tpu.memory_space<vmem>>, vector<16x128xf32>,
    %c0_i32_9 = arith.constant 0 : i32
    %11 = arith.cmpi eq, %arg2, %c0_i32_9 : i32
    %12 = arith.extui %11 : i1 to i32
    %c0_i32_10 = arith.constant 0 : i32
    %13 = arith.cmpi ne, %12, %c0_i32_10 : i32
    scf.if %13 {
      %c0_11 = arith.constant 0 : index
      %c0_12 = arith.constant 0 : index
      %14 = vector.load %arg7[%c0_11, %c0_12] : memref<16x128xf32, #tpu.memory_space<vmem>>, vector<16x128xf32>
      %c0_13 = arith.constant 0 : index
      %c0_14 = arith.constant 0 : index
      %15 = vector.load %arg5[%c0_13, %c0_14] : memref<1x128xf32, #tpu.memory_space<vmem>>, vector<1x128xf32>
      %16 = vector.broadcast %15 : vector<1x128xf32> to vector<16x128xf32>
      %17 = arith.addf %14, %16 : vector<16x128xf32>
      %c0_15 = arith.constant 0 : index
      %c0_16 = arith.constant 0 : index
      %18 = vector.load %arg6[%c0_15, %c0_16] : memref<16x128xf32, #tpu.memory_space<vmem>>, vector<16x128xf32>
      tpu.vector_store %arg6[%c0_15, %c0_16], %17 {strides = array<i32>} : memref<16x128xf32, #tpu.memory_space<vmem>>, vector<16x128xf32>,
    } else {
    }
    return
  }
  func.func @transform_0(%arg0: i32, %arg1: i32, %arg2: i32) -> (i32, i32) {
    %c0_i32 = arith.constant 0 : i32
    return %arg0, %arg2 : i32, i32
  }
  func.func @transform_1(%arg0: i32, %arg1: i32, %arg2: i32) -> (i32, i32) {
    %c0_i32 = arith.constant 0 : i32
    return %arg2, %arg1 : i32, i32
  }
  func.func @transform_2(%arg0: i32, %arg1: i32, %arg2: i32) -> (i32, i32) {
    %c0_i32 = arith.constant 0 : i32
    %c0_i32_0 = arith.constant 0 : i32
    return %c0_i32, %arg1 : i32, i32
  }
  func.func @transform_3(%arg0: i32, %arg1: i32, %arg2: i32) -> (i32, i32) {
    %c0_i32 = arith.constant 0 : i32
    return %arg0, %arg1 : i32, i32
  }
}

</mosaic_0001>

<llo_original>
// kernel: _lambda_.17
$region0: #{_lambda_.17}
  #allocation0 [shape = 'u32[]', space=smem, size = 0x4, offset = 0x4, fixed_abs, tag = 'smem constant byte address 0x4 - core index']
  #allocation1 [shape = 'u32[144,128]{1,0:T(1,128)}', space=vmem, size = 0x12000, scoped, tag = 'internal scratch']
  #allocation2 [shape = 'f32[256,128]{1,0:T(8,128)}', space=vmem, size = 0x20000, scoped, tag = 'scratch operand']
  %s0 = inlined_call_operand.vmem [shape: bf16[256,128], index: 0, kind: input, shape index: {}]
  %s1 = inlined_call_operand.vmem [shape: bf16[128,128], index: 1, kind: input, shape index: {}]
  %s2 = inlined_call_operand.vmem [shape: f32[1,128], index: 2, kind: input, shape index: {}]
  %s3 = inlined_call_operand.vmem [shape: bf16[256,128], index: 3, kind: input, shape index: {}]
  %s4 = inlined_call_operand.vmem [shape: bf16[256,128], index: 4, kind: output, shape index: {}]
  %s5 = sld [smem:[#allocation0]]
  $region34: #{_lambda_.17} parent=0
    _
  %s7 = ssub.s32 1, %s5
  %s8 = scalar_select 0, %s7, %s5
  // Predicated region
  $region2: #{_lambda_.17} parent=0 // pred_check
    _
  $region3: #{_lambda_.17} parent=0 // pred_check_branch
    %10 = sbr.rel (0) target = $region5
  $region4: #{_lambda_.17} parent=0 // pred_region
    _
  $region5: #{_lambda_.17} parent=0 // pred_fallthru
    _
  // Predicated region
  $region6: #{_lambda_.17} parent=0 // pred_check
    _
  $region7: #{_lambda_.17} parent=0 // pred_check_branch
    %12 = sbr.rel (0) target = $region9
  $region8: #{_lambda_.17} parent=0 // pred_region
    _
  $region9: #{_lambda_.17} parent=0 // pred_fallthru
    _
  // Predicated region
  $region10: #{_lambda_.17} parent=0 // pred_check
    _
  $region11: #{_lambda_.17} parent=0 // pred_check_branch
    %14 = sbr.rel (0) target = $region13
  $region12: #{_lambda_.17} parent=0 // pred_region
    _
  $region13: #{_lambda_.17} parent=0 // pred_fallthru
    _
  // Predicated region
  $region14: #{_lambda_.17} parent=0 // pred_check
    _
  $region15: #{_lambda_.17} parent=0 // pred_check_branch
    %16 = sbr.rel (0) target = $region17
  $region16: #{_lambda_.17} parent=0 // pred_region
    _
  $region17: #{_lambda_.17} parent=0 // pred_fallthru
    _
  %p18 = scmp.eq.s32.totalorder 0, 0
  // Predicated region
  $region18: #{_lambda_.17} parent=0 // pred_check
    %p19 = pneg %p18
  $region19: #{_lambda_.17} parent=0 // pred_check_branch
    %21 = sbr.rel (%p19) target = $region21
  $region20: #{_lambda_.17} parent=0 // pred_region
    %22 = vst [vmem:[#allocation2] sm:$0xff] 0.0
    %23 = vst [vmem:[#allocation2 + $0x8] sm:$0xff] 0.0
    %24 = vst [vmem:[#allocation2 + $0x10] sm:$0xff] 0.0
    %25 = vst [vmem:[#allocation2 + $0x18] sm:$0xff] 0.0
    %26 = vst [vmem:[#allocation2 + $0x20] sm:$0xff] 0.0
    %27 = vst [vmem:[#allocation2 + $0x28] sm:$0xff] 0.0
    %28 = vst [vmem:[#allocation2 + $0x30] sm:$0xff] 0.0
    %29 = vst [vmem:[#allocation2 + $0x38] sm:$0xff] 0.0
    %30 = vst [vmem:[#allocation2 + $0x40] sm:$0xff] 0.0
    %31 = vst [vmem:[#allocation2 + $0x48] sm:$0xff] 0.0
    %32 = vst [vmem:[#allocation2 + $0x50] sm:$0xff] 0.0
    %33 = vst [vmem:[#allocation2 + $0x58] sm:$0xff] 0.0
    %34 = vst [vmem:[#allocation2 + $0x60] sm:$0xff] 0.0
    %35 = vst [vmem:[#allocation2 + $0x68] sm:$0xff] 0.0
    %36 = vst [vmem:[#allocation2 + $0x70] sm:$0xff] 0.0
    %37 = vst [vmem:[#allocation2 + $0x78] sm:$0xff] 0.0
    %38 = vst [vmem:[#allocation2 + $0x80] sm:$0xff] 0.0
    %39 = vst [vmem:[#allocation2 + $0x88] sm:$0xff] 0.0
    %40 = vst [vmem:[#allocation2 + $0x90] sm:$0xff] 0.0
    %41 = vst [vmem:[#allocation2 + $0x98] sm:$0xff] 0.0
    %42 = vst [vmem:[#allocation2 + $0xa0] sm:$0xff] 0.0
    %43 = vst [vmem:[#allocation2 + $0xa8] sm:$0xff] 0.0
    %44 = vst [vmem:[#allocation2 + $0xb0] sm:$0xff] 0.0
    %45 = vst [vmem:[#allocation2 + $0xb8] sm:$0xff] 0.0
    %46 = vst [vmem:[#allocation2 + $0xc0] sm:$0xff] 0.0
    %47 = vst [vmem:[#allocation2 + $0xc8] sm:$0xff] 0.0
    %48 = vst [vmem:[#allocation2 + $0xd0] sm:$0xff] 0.0
    %49 = vst [vmem:[#allocation2 + $0xd8] sm:$0xff] 0.0
    %50 = vst [vmem:[#allocation2 + $0xe0] sm:$0xff] 0.0
    %51 = vst [vmem:[#allocation2 + $0xe8] sm:$0xff] 0.0
    %52 = vst [vmem:[#allocation2 + $0xf0] sm:$0xff] 0.0
    %53 = vst [vmem:[#allocation2 + $0xf8] sm:$0xff] 0.0
  $region21: #{_lambda_.17} parent=0 // pred_fallthru
    _
  %v54 = vld [vmem:[%s0] sm:$0xf]
  %v55 = vld [vmem:[%s0 + $0x4] sm:$0xf]
  %v56 = vld [vmem:[%s0 + $0x8] sm:$0xf]
  %v57 = vld [vmem:[%s0 + $0xc] sm:$0xf]
  %v58 = vld [vmem:[%s0 + $0x10] sm:$0xf]
  %v59 = vld [vmem:[%s0 + $0x14] sm:$0xf]
  %v60 = vld [vmem:[%s0 + $0x18] sm:$0xf]
  %v61 = vld [vmem:[%s0 + $0x1c] sm:$0xf]
  %v62 = vld [vmem:[%s0 + $0x20] sm:$0xf]
  %v63 = vld [vmem:[%s0 + $0x24] sm:$0xf]
  %v64 = vld [vmem:[%s0 + $0x28] sm:$0xf]
  %v65 = vld [vmem:[%s0 + $0x2c] sm:$0xf]
  %v66 = vld [vmem:[%s0 + $0x30] sm:$0xf]
  %v67 = vld [vmem:[%s0 + $0x34] sm:$0xf]
  %v68 = vld [vmem:[%s0 + $0x38] sm:$0xf]
  %v69 = vld [vmem:[%s0 + $0x3c] sm:$0xf]
  %v70 = vld [vmem:[%s0 + $0x40] sm:$0xf]
  %v71 = vld [vmem:[%s0 + $0x44] sm:$0xf]
  %v72 = vld [vmem:[%s0 + $0x48] sm:$0xf]
  %v73 = vld [vmem:[%s0 + $0x4c] sm:$0xf]
  %v74 = vld [vmem:[%s0 + $0x50] sm:$0xf]
  %v75 = vld [vmem:[%s0 + $0x54] sm:$0xf]
  %v76 = vld [vmem:[%s0 + $0x58] sm:$0xf]
  %v77 = vld [vmem:[%s0 + $0x5c] sm:$0xf]
  %v78 = vld [vmem:[%s0 + $0x60] sm:$0xf]
  %v79 = vld [vmem:[%s0 + $0x64] sm:$0xf]
  %v80 = vld [vmem:[%s0 + $0x68] sm:$0xf]
  %v81 = vld [vmem:[%s0 + $0x6c] sm:$0xf]
  %v82 = vld [vmem:[%s0 + $0x70] sm:$0xf]
  %v83 = vld [vmem:[%s0 + $0x74] sm:$0xf]
  %v84 = vld [vmem:[%s0 + $0x78] sm:$0xf]
  %v85 = vld [vmem:[%s0 + $0x7c] sm:$0xf]
  %v86 = vld [vmem:[#allocation2] sm:$0xff]
  %v87 = vld [vmem:[#allocation2 + $0x8] sm:$0xff]
  %v88 = vld [vmem:[#allocation2 + $0x10] sm:$0xff]
  %v89 = vld [vmem:[#allocation2 + $0x18] sm:$0xff]
  %v90 = vld [vmem:[#allocation2 + $0x20] sm:$0xff]
  %v91 = vld [vmem:[#allocation2 + $0x28] sm:$0xff]
  %v92 = vld [vmem:[#allocation2 + $0x30] sm:$0xff]
  %v93 = vld [vmem:[#allocation2 + $0x38] sm:$0xff]
  %v94 = vld [vmem:[#allocation2 + $0x40] sm:$0xff]
  %v95 = vld [vmem:[#allocation2 + $0x48] sm:$0xff]
  %v96 = vld [vmem:[#allocation2 + $0x50] sm:$0xff]
  %v97 = vld [vmem:[#allocation2 + $0x58] sm:$0xff]
  %v98 = vld [vmem:[#allocation2 + $0x60] sm:$0xff]
  %v99 = vld [vmem:[#allocation2 + $0x68] sm:$0xff]
  %v100 = vld [vmem:[#allocation2 + $0x70] sm:$0xff]
  %v101 = vld [vmem:[#allocation2 + $0x78] sm:$0xff]
  %v102 = vld [vmem:[#allocation2 + $0x80] sm:$0xff]
  %v103 = vld [vmem:[#allocation2 + $0x88] sm:$0xff]
  %v104 = vld [vmem:[#allocation2 + $0x90] sm:$0xff]
  %v105 = vld [vmem:[#allocation2 + $0x98] sm:$0xff]
  %v106 = vld [vmem:[#allocation2 + $0xa0] sm:$0xff]
  %v107 = vld [vmem:[#allocation2 + $0xa8] sm:$0xff]
  %v108 = vld [vmem:[#allocation2 + $0xb0] sm:$0xff]
  %v109 = vld [vmem:[#allocation2 + $0xb8] sm:$0xff]
  %v110 = vld [vmem:[#allocation2 + $0xc0] sm:$0xff]
  %v111 = vld [vmem:[#allocation2 + $0xc8] sm:$0xff]
  %v112 = vld [vmem:[#allocation2 + $0xd0] sm:$0xff]
  %v113 = vld [vmem:[#allocation2 + $0xd8] sm:$0xff]
  %v114 = vld [vmem:[#allocation2 + $0xe0] sm:$0xff]
  %v115 = vld [vmem:[#allocation2 + $0xe8] sm:$0xff]
  %v116 = vld [vmem:[#allocation2 + $0xf0] sm:$0xff]
  %v117 = vld [vmem:[#allocation2 + $0xf8] sm:$0xff]
  %v118 = vld [vmem:[%s1] sm:$0xf]
  %v119 = vld [vmem:[%s1 + $0x4] sm:$0xf]
  %v120 = vld [vmem:[%s1 + $0x8] sm:$0xf]
  %v121 = vld [vmem:[%s1 + $0xc] sm:$0xf]
  %v122 = vld [vmem:[%s1 + $0x10] sm:$0xf]
  %v123 = vld [vmem:[%s1 + $0x14] sm:$0xf]
  %v124 = vld [vmem:[%s1 + $0x18] sm:$0xf]
  %v125 = vld [vmem:[%s1 + $0x1c] sm:$0xf]
  %v126 = vld [vmem:[%s1 + $0x20] sm:$0xf]
  %v127 = vld [vmem:[%s1 + $0x24] sm:$0xf]
  %v128 = vld [vmem:[%s1 + $0x28] sm:$0xf]
  %v129 = vld [vmem:[%s1 + $0x2c] sm:$0xf]
  %v130 = vld [vmem:[%s1 + $0x30] sm:$0xf]
  %v131 = vld [vmem:[%s1 + $0x34] sm:$0xf]
  %v132 = vld [vmem:[%s1 + $0x38] sm:$0xf]
  %v133 = vld [vmem:[%s1 + $0x3c] sm:$0xf]
  %v166 = vunpack.c.l.b16 %v54
  %v167 = vunpack.c.l.b16 %v55
  %v168 = vunpack.c.l.b16 %v56
  %v169 = vunpack.c.l.b16 %v57
  %v170 = vunpack.c.l.b16 %v58
  %v171 = vunpack.c.l.b16 %v59
  %v172 = vunpack.c.l.b16 %v60
  %v173 = vunpack.c.l.b16 %v61
  %v174 = vunpack.c.l.b16 %v62
  %v175 = vunpack.c.l.b16 %v63
  %v176 = vunpack.c.l.b16 %v64
  %v177 = vunpack.c.l.b16 %v65
  %v178 = vunpack.c.l.b16 %v66
  %v179 = vunpack.c.l.b16 %v67
  %v180 = vunpack.c.l.b16 %v68
  %v181 = vunpack.c.l.b16 %v69
  %v182 = vunpack.c.l.b16 %v70
  %v183 = vunpack.c.l.b16 %v71
  %v184 = vunpack.c.l.b16 %v72
  %v185 = vunpack.c.l.b16 %v73
  %v186 = vunpack.c.l.b16 %v74
  %v187 = vunpack.c.l.b16 %v75
  %v188 = vunpack.c.l.b16 %v76
  %v189 = vunpack.c.l.b16 %v77
  %v190 = vunpack.c.l.b16 %v78
  %v191 = vunpack.c.l.b16 %v79
  %v192 = vunpack.c.l.b16 %v80
  %v193 = vunpack.c.l.b16 %v81
  %v194 = vunpack.c.l.b16 %v82
  %v195 = vunpack.c.l.b16 %v83
  %v196 = vunpack.c.l.b16 %v84
  %v197 = vunpack.c.l.b16 %v85
  %v198 = vpack.c.b16 %v167, %v166
  %v199 = vpack.c.b16 %v169, %v168
  %v200 = vpack.c.b16 %v171, %v170
  %v201 = vpack.c.b16 %v173, %v172
  %v202 = vpack.c.b16 %v175, %v174
  %v203 = vpack.c.b16 %v177, %v176
  %v204 = vpack.c.b16 %v179, %v178
  %v205 = vpack.c.b16 %v181, %v180
  %v206 = vpack.c.b16 %v183, %v182
  %v207 = vpack.c.b16 %v185, %v184
  %v208 = vpack.c.b16 %v187, %v186
  %v209 = vpack.c.b16 %v189, %v188
  %v210 = vpack.c.b16 %v191, %v190
  %v211 = vpack.c.b16 %v193, %v192
  %v212 = vpack.c.b16 %v195, %v194
  %v213 = vpack.c.b16 %v197, %v196
  %v246 = vunpack.c.l.b16 %v118
  %v247 = vunpack.c.l.b16 %v119
  %v248 = vunpack.c.l.b16 %v120
  %v249 = vunpack.c.l.b16 %v121
  %v250 = vunpack.c.l.b16 %v122
  %v251 = vunpack.c.l.b16 %v123
  %v252 = vunpack.c.l.b16 %v124
  %v253 = vunpack.c.l.b16 %v125
  %v254 = vunpack.c.l.b16 %v126
  %v255 = vunpack.c.l.b16 %v127
  %v256 = vunpack.c.l.b16 %v128
  %v257 = vunpack.c.l.b16 %v129
  %v258 = vunpack.c.l.b16 %v130
  %v259 = vunpack.c.l.b16 %v131
  %v260 = vunpack.c.l.b16 %v132
  %v261 = vunpack.c.l.b16 %v133
  %v262 = vpack.c.b16 %v247, %v246
  %v263 = vpack.c.b16 %v249, %v248
  %v264 = vpack.c.b16 %v251, %v250
  %v265 = vpack.c.b16 %v253, %v252
  %v266 = vpack.c.b16 %v255, %v254
  %v267 = vpack.c.b16 %v257, %v256
  %v268 = vpack.c.b16 %v259, %v258
  %v269 = vpack.c.b16 %v261, %v260
  %278 = vmatprep.subr.bf16.mxu0 0
  %279 = vmatpush1.bf16.msra.mxu0 %v262
  %280 = vmatprep.subr.bf16.mxu0 0
  %281 = vmatpush1.bf16.msra.mxu0 %v263
  %282 = vmatprep.subr.bf16.mxu0 0
  %283 = vmatpush1.bf16.msra.mxu0 %v264
  %284 = vmatprep.subr.bf16.mxu0 0
  %285 = vmatpush1.bf16.msra.mxu0 %v265
  %286 = vmatprep.subr.bf16.mxu0 0
  %287 = vmatpush1.bf16.msra.mxu0 %v266
  %288 = vmatprep.subr.bf16.mxu0 0
  %289 = vmatpush1.bf16.msra.mxu0 %v267
  %290 = vmatprep.subr.bf16.mxu0 0
  %291 = vmatpush1.bf16.msra.mxu0 %v268
  %292 = vmatprep.subr.bf16.mxu0 0
  %293 = vmatpush1.bf16.msra.mxu0 %v269
  %294 = vmatprep.subr.bf16.mxu0 0
  %295 = vmatpush1.bf16.msra.mxu0 0
  %296 = vmatprep.subr.bf16.mxu0 0
  %297 = vmatpush1.bf16.msra.mxu0 0
  %298 = vmatprep.subr.bf16.mxu0 0
  %299 = vmatpush1.bf16.msra.mxu0 0
  %300 = vmatprep.subr.bf16.mxu0 0
  %301 = vmatpush1.bf16.msra.mxu0 0
  %302 = vmatprep.subr.bf16.mxu0 0
  %303 = vmatpush1.bf16.msra.mxu0 0
  %304 = vmatprep.subr.bf16.mxu0 0
  %305 = vmatpush1.bf16.msra.mxu0 0
  %306 = vmatprep.subr.bf16.mxu0 0
  %307 = vmatpush1.bf16.msra.mxu0 0
  %308 = vmatprep.subr.bf16.mxu0 0
  %309 = vmatpush1.bf16.msra.mxu0 0
  %310 = vmatprep.mubr.bf16.mxu0 0
  %311 = vmatmul.mubr.bf16.gmra.mrb[0].mxu0 %v198
  %v312 = vpop.f32.mrb[0].mxu0
  %v313 = vadd.f32 0.0, %v312
  %v314 = vpop.f32.mrb[0].mxu0
  %v315 = vpop.f32.mrb[0].mxu0
  %v316 = vadd.f32 0.0, %v315
  %v317 = vpop.f32.mrb[0].mxu0
  %318 = vmatprep.mubr.bf16.mxu0 0
  %319 = vmatmul.mubr.bf16.gmra.mrb[0].mxu0 %v199
  %v320 = vpop.f32.mrb[0].mxu0
  %v321 = vadd.f32 0.0, %v320
  %v322 = vpop.f32.mrb[0].mxu0
  %v323 = vpop.f32.mrb[0].mxu0
  %v324 = vadd.f32 0.0, %v323
  %v325 = vpop.f32.mrb[0].mxu0
  %326 = vmatprep.mubr.bf16.mxu0 0
  %327 = vmatmul.mubr.bf16.gmra.mrb[0].mxu0 %v200
  %v328 = vpop.f32.mrb[0].mxu0
  %v329 = vadd.f32 0.0, %v328
  %v330 = vpop.f32.mrb[0].mxu0
  %v331 = vpop.f32.mrb[0].mxu0
  %v332 = vadd.f32 0.0, %v331
  %v333 = vpop.f32.mrb[0].mxu0
  %334 = vmatprep.mubr.bf16.mxu0 0
  %335 = vmatmul.mubr.bf16.gmra.mrb[0].mxu0 %v201
  %v336 = vpop.f32.mrb[0].mxu0
  %v337 = vadd.f32 0.0, %v336
  %v338 = vpop.f32.mrb[0].mxu0
  %v339 = vpop.f32.mrb[0].mxu0
  %v340 = vadd.f32 0.0, %v339
  %v341 = vpop.f32.mrb[0].mxu0
  %342 = vmatprep.mubr.bf16.mxu0 0
  %343 = vmatmul.mubr.bf16.gmra.mrb[0].mxu0 %v202
  %v344 = vpop.f32.mrb[0].mxu0
  %v345 = vadd.f32 0.0, %v344
  %v346 = vpop.f32.mrb[0].mxu0
  %v347 = vpop.f32.mrb[0].mxu0
  %v348 = vadd.f32 0.0, %v347
  %v349 = vpop.f32.mrb[0].mxu0
  %350 = vmatprep.mubr.bf16.mxu0 0
  %351 = vmatmul.mubr.bf16.gmra.mrb[0].mxu0 %v203
  %v352 = vpop.f32.mrb[0].mxu0
  %v353 = vadd.f32 0.0, %v352
  %v354 = vpop.f32.mrb[0].mxu0
  %v355 = vpop.f32.mrb[0].mxu0
  %v356 = vadd.f32 0.0, %v355
  %v357 = vpop.f32.mrb[0].mxu0
  %358 = vmatprep.mubr.bf16.mxu0 0
  %359 = vmatmul.mubr.bf16.gmra.mrb[0].mxu0 %v204
  %v360 = vpop.f32.mrb[0].mxu0
  %v361 = vadd.f32 0.0, %v360
  %v362 = vpop.f32.mrb[0].mxu0
  %v363 = vpop.f32.mrb[0].mxu0
  %v364 = vadd.f32 0.0, %v363
  %v365 = vpop.f32.mrb[0].mxu0
  %366 = vmatprep.mubr.bf16.mxu0 0
  %367 = vmatmul.mubr.bf16.gmra.mrb[0].mxu0 %v205
  %v368 = vpop.f32.mrb[0].mxu0
  %v369 = vadd.f32 0.0, %v368
  %v370 = vpop.f32.mrb[0].mxu0
  %v371 = vpop.f32.mrb[0].mxu0
  %v372 = vadd.f32 0.0, %v371
  %v373 = vpop.f32.mrb[0].mxu0
  %374 = vmatprep.mubr.bf16.mxu0 0
  %375 = vmatmul.mubr.bf16.gmra.mrb[0].mxu0 %v206
  %v376 = vpop.f32.mrb[0].mxu0
  %v377 = vadd.f32 0.0, %v376
  %v378 = vpop.f32.mrb[0].mxu0
  %v379 = vpop.f32.mrb[0].mxu0
  %v380 = vadd.f32 0.0, %v379
  %v381 = vpop.f32.mrb[0].mxu0
  %382 = vmatprep.mubr.bf16.mxu0 0
  %383 = vmatmul.mubr.bf16.gmra.mrb[0].mxu0 %v207
  %v384 = vpop.f32.mrb[0].mxu0
  %v385 = vadd.f32 0.0, %v384
  %v386 = vpop.f32.mrb[0].mxu0
  %v387 = vpop.f32.mrb[0].mxu0
  %v388 = vadd.f32 0.0, %v387
  %v389 = vpop.f32.mrb[0].mxu0
  %390 = vmatprep.mubr.bf16.mxu0 0
  %391 = vmatmul.mubr.bf16.gmra.mrb[0].mxu0 %v208
  %v392 = vpop.f32.mrb[0].mxu0
  %v393 = vadd.f32 0.0, %v392
  %v394 = vpop.f32.mrb[0].mxu0
  %v395 = vpop.f32.mrb[0].mxu0
  %v396 = vadd.f32 0.0, %v395
  %v397 = vpop.f32.mrb[0].mxu0
  %398 = vmatprep.mubr.bf16.mxu0 0
  %399 = vmatmul.mubr.bf16.gmra.mrb[0].mxu0 %v209
  %v400 = vpop.f32.mrb[0].mxu0
  %v401 = vadd.f32 0.0, %v400
  %v402 = vpop.f32.mrb[0].mxu0
  %v403 = vpop.f32.mrb[0].mxu0
  %v404 = vadd.f32 0.0, %v403
  %v405 = vpop.f32.mrb[0].mxu0
  %406 = vmatprep.mubr.bf16.mxu0 0
  %407 = vmatmul.mubr.bf16.gmra.mrb[0].mxu0 %v210
  %v408 = vpop.f32.mrb[0].mxu0
  %v409 = vadd.f32 0.0, %v408
  %v410 = vpop.f32.mrb[0].mxu0
  %v411 = vpop.f32.mrb[0].mxu0
  %v412 = vadd.f32 0.0, %v411
  %v413 = vpop.f32.mrb[0].mxu0
  %414 = vmatprep.mubr.bf16.mxu0 0
  %415 = vmatmul.mubr.bf16.gmra.mrb[0].mxu0 %v211
  %v416 = vpop.f32.mrb[0].mxu0
  %v417 = vadd.f32 0.0, %v416
  %v418 = vpop.f32.mrb[0].mxu0
  %v419 = vpop.f32.mrb[0].mxu0
  %v420 = vadd.f32 0.0, %v419
  %v421 = vpop.f32.mrb[0].mxu0
  %422 = vmatprep.mubr.bf16.mxu0 0
  %423 = vmatmul.mubr.bf16.gmra.mrb[0].mxu0 %v212
  %v424 = vpop.f32.mrb[0].mxu0
  %v425 = vadd.f32 0.0, %v424
  %v426 = vpop.f32.mrb[0].mxu0
  %v427 = vpop.f32.mrb[0].mxu0
  %v428 = vadd.f32 0.0, %v427
  %v429 = vpop.f32.mrb[0].mxu0
  %430 = vmatprep.mubr.bf16.mxu0 0
  %431 = vmatmul.mubr.bf16.gmra.mrb[0].mxu0 %v213
  %v432 = vpop.f32.mrb[0].mxu0
  %v433 = vadd.f32 0.0, %v432
  %v434 = vpop.f32.mrb[0].mxu0
  %v435 = vpop.f32.mrb[0].mxu0
  %v436 = vadd.f32 0.0, %v435
  %v437 = vpop.f32.mrb[0].mxu0
  %438 = vdwg.mxu0
  %v439 = vadd.f32 %v86, %v313
  %v440 = vadd.f32 %v87, %v316
  %v441 = vadd.f32 %v88, %v321
  %v442 = vadd.f32 %v89, %v324
  %v443 = vadd.f32 %v90, %v329
  %v444 = vadd.f32 %v91, %v332
  %v445 = vadd.f32 %v92, %v337
  %v446 = vadd.f32 %v93, %v340
  %v447 = vadd.f32 %v94, %v345
  %v448 = vadd.f32 %v95, %v348
  %v449 = vadd.f32 %v96, %v353
  %v450 = vadd.f32 %v97, %v356
  %v451 = vadd.f32 %v98, %v361
  %v452 = vadd.f32 %v99, %v364
  %v453 = vadd.f32 %v100, %v369
  %v454 = vadd.f32 %v101, %v372
  %v455 = vadd.f32 %v102, %v377
  %v456 = vadd.f32 %v103, %v380
  %v457 = vadd.f32 %v104, %v385
  %v458 = vadd.f32 %v105, %v388
  %v459 = vadd.f32 %v106, %v393
  %v460 = vadd.f32 %v107, %v396
  %v461 = vadd.f32 %v108, %v401
  %v462 = vadd.f32 %v109, %v404
  %v463 = vadd.f32 %v110, %v409
  %v464 = vadd.f32 %v111, %v412
  %v465 = vadd.f32 %v112, %v417
  %v466 = vadd.f32 %v113, %v420
  %v467 = vadd.f32 %v114, %v425
  %v468 = vadd.f32 %v115, %v428
  %v469 = vadd.f32 %v116, %v433
  %v470 = vadd.f32 %v117, %v436
  %471 = vst [vmem:[#allocation2] sm:$0xff] %v439
  %472 = vst [vmem:[#allocation2 + $0x8] sm:$0xff] %v440
  %473 = vst [vmem:[#allocation2 + $0x10] sm:$0xff] %v441
  %474 = vst [vmem:[#allocation2 + $0x18] sm:$0xff] %v442
  %475 = vst [vmem:[#allocation2 + $0x20] sm:$0xff] %v443
  %476 = vst [vmem:[#allocation2 + $0x28] sm:$0xff] %v444
  %477 = vst [vmem:[#allocation2 + $0x30] sm:$0xff] %v445
  %478 = vst [vmem:[#allocation2 + $0x38] sm:$0xff] %v446
  %479 = vst [vmem:[#allocation2 + $0x40] sm:$0xff] %v447
  %480 = vst [vmem:[#allocation2 + $0x48] sm:$0xff] %v448
  %481 = vst [vmem:[#allocation2 + $0x50] sm:$0xff] %v449
  %482 = vst [vmem:[#allocation2 + $0x58] sm:$0xff] %v450
  %483 = vst [vmem:[#allocation2 + $0x60] sm:$0xff] %v451
  %484 = vst [vmem:[#allocation2 + $0x68] sm:$0xff] %v452
  %485 = vst [vmem:[#allocation2 + $0x70] sm:$0xff] %v453
  %486 = vst [vmem:[#allocation2 + $0x78] sm:$0xff] %v454
  %487 = vst [vmem:[#allocation2 + $0x80] sm:$0xff] %v455
  %488 = vst [vmem:[#allocation2 + $0x88] sm:$0xff] %v456
  %489 = vst [vmem:[#allocation2 + $0x90] sm:$0xff] %v457
  %490 = vst [vmem:[#allocation2 + $0x98] sm:$0xff] %v458
  %491 = vst [vmem:[#allocation2 + $0xa0] sm:$0xff] %v459
  %492 = vst [vmem:[#allocation2 + $0xa8] sm:$0xff] %v460
  %493 = vst [vmem:[#allocation2 + $0xb0] sm:$0xff] %v461
  %494 = vst [vmem:[#allocation2 + $0xb8] sm:$0xff] %v462
  %495 = vst [vmem:[#allocation2 + $0xc0] sm:$0xff] %v463
  %496 = vst [vmem:[#allocation2 + $0xc8] sm:$0xff] %v464
  %497 = vst [vmem:[#allocation2 + $0xd0] sm:$0xff] %v465
  %498 = vst [vmem:[#allocation2 + $0xd8] sm:$0xff] %v466
  %499 = vst [vmem:[#allocation2 + $0xe0] sm:$0xff] %v467
  %500 = vst [vmem:[#allocation2 + $0xe8] sm:$0xff] %v468
  %501 = vst [vmem:[#allocation2 + $0xf0] sm:$0xff] %v469
  %502 = vst [vmem:[#allocation2 + $0xf8] sm:$0xff] %v470
  // Predicated region
  $region22: #{_lambda_.17} parent=0 // pred_check
    %p503 = pneg %p18
  $region23: #{_lambda_.17} parent=0 // pred_check_branch
    %505 = sbr.rel (%p503) target = $region25
  $region24: #{_lambda_.17} parent=0 // pred_region
    %v506 = vld [vmem:[#allocation2] sm:$0xff]
    %v507 = vld [vmem:[#allocation2 + $0x8] sm:$0xff]
    %v508 = vld [vmem:[#allocation2 + $0x10] sm:$0xff]
    %v509 = vld [vmem:[#allocation2 + $0x18] sm:$0xff]
    %v510 = vld [vmem:[#allocation2 + $0x20] sm:$0xff]
    %v511 = vld [vmem:[#allocation2 + $0x28] sm:$0xff]
    %v512 = vld [vmem:[#allocation2 + $0x30] sm:$0xff]
    %v513 = vld [vmem:[#allocation2 + $0x38] sm:$0xff]
    %v514 = vld [vmem:[#allocation2 + $0x40] sm:$0xff]
    %v515 = vld [vmem:[#allocation2 + $0x48] sm:$0xff]
    %v516 = vld [vmem:[#allocation2 + $0x50] sm:$0xff]
    %v517 = vld [vmem:[#allocation2 + $0x58] sm:$0xff]
    %v518 = vld [vmem:[#allocation2 + $0x60] sm:$0xff]
    %v519 = vld [vmem:[#allocation2 + $0x68] sm:$0xff]
    %v520 = vld [vmem:[#allocation2 + $0x70] sm:$0xff]
    %v521 = vld [vmem:[#allocation2 + $0x78] sm:$0xff]
    %v522 = vld [vmem:[#allocation2 + $0x80] sm:$0xff]
    %v523 = vld [vmem:[#allocation2 + $0x88] sm:$0xff]
    %v524 = vld [vmem:[#allocation2 + $0x90] sm:$0xff]
    %v525 = vld [vmem:[#allocation2 + $0x98] sm:$0xff]
    %v526 = vld [vmem:[#allocation2 + $0xa0] sm:$0xff]
    %v527 = vld [vmem:[#allocation2 + $0xa8] sm:$0xff]
    %v528 = vld [vmem:[#allocation2 + $0xb0] sm:$0xff]
    %v529 = vld [vmem:[#allocation2 + $0xb8] sm:$0xff]
    %v530 = vld [vmem:[#allocation2 + $0xc0] sm:$0xff]
    %v531 = vld [vmem:[#allocation2 + $0xc8] sm:$0xff]
    %v532 = vld [vmem:[#allocation2 + $0xd0] sm:$0xff]
    %v533 = vld [vmem:[#allocation2 + $0xd8] sm:$0xff]
    %v534 = vld [vmem:[#allocation2 + $0xe0] sm:$0xff]
    %v535 = vld [vmem:[#allocation2 + $0xe8] sm:$0xff]
    %v536 = vld [vmem:[#allocation2 + $0xf0] sm:$0xff]
    %v537 = vld [vmem:[#allocation2 + $0xf8] sm:$0xff]
    %v538 = vld [vmem:[%s2] sm:$0x1]
    %v540 = vlaneseq
    %v541 = vshrl.u32 %v540, 7
    %v542 = vsub.s32 0, %v541
    %v543 = vrot.slane %v538, %v542
    %v545 = vadd.f32 %v506, %v543
    %v546 = vadd.f32 %v507, %v543
    %v547 = vadd.f32 %v508, %v543
    %v548 = vadd.f32 %v509, %v543
    %v549 = vadd.f32 %v510, %v543
    %v550 = vadd.f32 %v511, %v543
    %v551 = vadd.f32 %v512, %v543
    %v552 = vadd.f32 %v513, %v543
    %v553 = vadd.f32 %v514, %v543
    %v554 = vadd.f32 %v515, %v543
    %v555 = vadd.f32 %v516, %v543
    %v556 = vadd.f32 %v517, %v543
    %v557 = vadd.f32 %v518, %v543
    %v558 = vadd.f32 %v519, %v543
    %v559 = vadd.f32 %v520, %v543
    %v560 = vadd.f32 %v521, %v543
    %v561 = vadd.f32 %v522, %v543
    %v562 = vadd.f32 %v523, %v543
    %v563 = vadd.f32 %v524, %v543
    %v564 = vadd.f32 %v525, %v543
    %v565 = vadd.f32 %v526, %v543
    %v566 = vadd.f32 %v527, %v543
    %v567 = vadd.f32 %v528, %v543
    %v568 = vadd.f32 %v529, %v543
    %v569 = vadd.f32 %v530, %v543
    %v570 = vadd.f32 %v531, %v543
    %v571 = vadd.f32 %v532, %v543
    %v572 = vadd.f32 %v533, %v543
    %v573 = vadd.f32 %v534, %v543
    %v574 = vadd.f32 %v535, %v543
    %v575 = vadd.f32 %v536, %v543
    %v576 = vadd.f32 %v537, %v543
    %v577 = vld [vmem:[%s3] sm:$0xf]
    %v578 = vld [vmem:[%s3 + $0x4] sm:$0xf]
    %v579 = vld [vmem:[%s3 + $0x8] sm:$0xf]
    %v580 = vld [vmem:[%s3 + $0xc] sm:$0xf]
    %v581 = vld [vmem:[%s3 + $0x10] sm:$0xf]
    %v582 = vld [vmem:[%s3 + $0x14] sm:$0xf]
    %v583 = vld [vmem:[%s3 + $0x18] sm:$0xf]
    %v584 = vld [vmem:[%s3 + $0x1c] sm:$0xf]
    %v585 = vld [vmem:[%s3 + $0x20] sm:$0xf]
    %v586 = vld [vmem:[%s3 + $0x24] sm:$0xf]
    %v587 = vld [vmem:[%s3 + $0x28] sm:$0xf]
    %v588 = vld [vmem:[%s3 + $0x2c] sm:$0xf]
    %v589 = vld [vmem:[%s3 + $0x30] sm:$0xf]
    %v590 = vld [vmem:[%s3 + $0x34] sm:$0xf]
    %v591 = vld [vmem:[%s3 + $0x38] sm:$0xf]
    %v592 = vld [vmem:[%s3 + $0x3c] sm:$0xf]
    %v593 = vld [vmem:[%s3 + $0x40] sm:$0xf]
    %v594 = vld [vmem:[%s3 + $0x44] sm:$0xf]
    %v595 = vld [vmem:[%s3 + $0x48] sm:$0xf]
    %v596 = vld [vmem:[%s3 + $0x4c] sm:$0xf]
    %v597 = vld [vmem:[%s3 + $0x50] sm:$0xf]
    %v598 = vld [vmem:[%s3 + $0x54] sm:$0xf]
    %v599 = vld [vmem:[%s3 + $0x58] sm:$0xf]
    %v600 = vld [vmem:[%s3 + $0x5c] sm:$0xf]
    %v601 = vld [vmem:[%s3 + $0x60] sm:$0xf]
    %v602 = vld [vmem:[%s3 + $0x64] sm:$0xf]
    %v603 = vld [vmem:[%s3 + $0x68] sm:$0xf]
    %v604 = vld [vmem:[%s3 + $0x6c] sm:$0xf]
    %v605 = vld [vmem:[%s3 + $0x70] sm:$0xf]
    %v606 = vld [vmem:[%s3 + $0x74] sm:$0xf]
    %v607 = vld [vmem:[%s3 + $0x78] sm:$0xf]
    %v608 = vld [vmem:[%s3 + $0x7c] sm:$0xf]
    %v609 = vunpack.c.l.bf16 %v577
    %v610 = vunpack.c.l.bf16 %v578
    %v611 = vunpack.c.l.bf16 %v579
    %v612 = vunpack.c.l.bf16 %v580
    %v613 = vunpack.c.l.bf16 %v581
    %v614 = vunpack.c.l.bf16 %v582
    %v615 = vunpack.c.l.bf16 %v583
    %v616 = vunpack.c.l.bf16 %v584
    %v617 = vunpack.c.l.bf16 %v585
    %v618 = vunpack.c.l.bf16 %v586
    %v619 = vunpack.c.l.bf16 %v587
    %v620 = vunpack.c.l.bf16 %v588
    %v621 = vunpack.c.l.bf16 %v589
    %v622 = vunpack.c.l.bf16 %v590
    %v623 = vunpack.c.l.bf16 %v591
    %v624 = vunpack.c.l.bf16 %v592
    %v625 = vunpack.c.l.bf16 %v593
    %v626 = vunpack.c.l.bf16 %v594
    %v627 = vunpack.c.l.bf16 %v595
    %v628 = vunpack.c.l.bf16 %v596
    %v629 = vunpack.c.l.bf16 %v597
    %v630 = vunpack.c.l.bf16 %v598
    %v631 = vunpack.c.l.bf16 %v599
    %v632 = vunpack.c.l.bf16 %v600
    %v633 = vunpack.c.l.bf16 %v601
    %v634 = vunpack.c.l.bf16 %v602
    %v635 = vunpack.c.l.bf16 %v603
    %v636 = vunpack.c.l.bf16 %v604
    %v637 = vunpack.c.l.bf16 %v605
    %v638 = vunpack.c.l.bf16 %v606
    %v639 = vunpack.c.l.bf16 %v607
    %v640 = vunpack.c.l.bf16 %v608
    %v641 = vadd.f32 %v545, %v609
    %v642 = vadd.f32 %v546, %v610
    %v643 = vadd.f32 %v547, %v611
    %v644 = vadd.f32 %v548, %v612
    %v645 = vadd.f32 %v549, %v613
    %v646 = vadd.f32 %v550, %v614
    %v647 = vadd.f32 %v551, %v615
    %v648 = vadd.f32 %v552, %v616
    %v649 = vadd.f32 %v553, %v617
    %v650 = vadd.f32 %v554, %v618
    %v651 = vadd.f32 %v555, %v619
    %v652 = vadd.f32 %v556, %v620
    %v653 = vadd.f32 %v557, %v621
    %v654 = vadd.f32 %v558, %v622
    %v655 = vadd.f32 %v559, %v623
    %v656 = vadd.f32 %v560, %v624
    %v657 = vadd.f32 %v561, %v625
    %v658 = vadd.f32 %v562, %v626
    %v659 = vadd.f32 %v563, %v627
    %v660 = vadd.f32 %v564, %v628
    %v661 = vadd.f32 %v565, %v629
    %v662 = vadd.f32 %v566, %v630
    %v663 = vadd.f32 %v567, %v631
    %v664 = vadd.f32 %v568, %v632
    %v665 = vadd.f32 %v569, %v633
    %v666 = vadd.f32 %v570, %v634
    %v667 = vadd.f32 %v571, %v635
    %v668 = vadd.f32 %v572, %v636
    %v669 = vadd.f32 %v573, %v637
    %v670 = vadd.f32 %v574, %v638
    %v671 = vadd.f32 %v575, %v639
    %v672 = vadd.f32 %v576, %v640
    %v673 = vmax.f32 %v641, 0.0
    %v674 = vmax.f32 %v642, 0.0
    %v675 = vmax.f32 %v643, 0.0
    %v676 = vmax.f32 %v644, 0.0
    %v677 = vmax.f32 %v645, 0.0
    %v678 = vmax.f32 %v646, 0.0
    %v679 = vmax.f32 %v647, 0.0
    %v680 = vmax.f32 %v648, 0.0
    %v681 = vmax.f32 %v649, 0.0
    %v682 = vmax.f32 %v650, 0.0
    %v683 = vmax.f32 %v651, 0.0
    %v684 = vmax.f32 %v652, 0.0
    %v685 = vmax.f32 %v653, 0.0
    %v686 = vmax.f32 %v654, 0.0
    %v687 = vmax.f32 %v655, 0.0
    %v688 = vmax.f32 %v656, 0.0
    %v689 = vmax.f32 %v657, 0.0
    %v690 = vmax.f32 %v658, 0.0
    %v691 = vmax.f32 %v659, 0.0
    %v692 = vmax.f32 %v660, 0.0
    %v693 = vmax.f32 %v661, 0.0
    %v694 = vmax.f32 %v662, 0.0
    %v695 = vmax.f32 %v663, 0.0
    %v696 = vmax.f32 %v664, 0.0
    %v697 = vmax.f32 %v665, 0.0
    %v698 = vmax.f32 %v666, 0.0
    %v699 = vmax.f32 %v667, 0.0
    %v700 = vmax.f32 %v668, 0.0
    %v701 = vmax.f32 %v669, 0.0
    %v702 = vmax.f32 %v670, 0.0
    %v703 = vmax.f32 %v671, 0.0
    %v704 = vmax.f32 %v672, 0.0
    %v705 = vpack.c.bf16 %v674, %v673
    %v706 = vpack.c.bf16 %v676, %v675
    %v707 = vpack.c.bf16 %v678, %v677
    %v708 = vpack.c.bf16 %v680, %v679
    %v709 = vpack.c.bf16 %v682, %v681
    %v710 = vpack.c.bf16 %v684, %v683
    %v711 = vpack.c.bf16 %v686, %v685
    %v712 = vpack.c.bf16 %v688, %v687
    %v713 = vpack.c.bf16 %v690, %v689
    %v714 = vpack.c.bf16 %v692, %v691
    %v715 = vpack.c.bf16 %v694, %v693
    %v716 = vpack.c.bf16 %v696, %v695
    %v717 = vpack.c.bf16 %v698, %v697
    %v718 = vpack.c.bf16 %v700, %v699
    %v719 = vpack.c.bf16 %v702, %v701
    %v720 = vpack.c.bf16 %v704, %v703
    %v737 = vunpack.c.l.b16 %v705
    %v738 = vunpack.c.h.b16 %v705
    %v739 = vunpack.c.l.b16 %v706
    %v740 = vunpack.c.h.b16 %v706
    %v741 = vunpack.c.l.b16 %v707
    %v742 = vunpack.c.h.b16 %v707
    %v743 = vunpack.c.l.b16 %v708
    %v744 = vunpack.c.h.b16 %v708
    %v745 = vunpack.c.l.b16 %v709
    %v746 = vunpack.c.h.b16 %v709
    %v747 = vunpack.c.l.b16 %v710
    %v748 = vunpack.c.h.b16 %v710
    %v749 = vunpack.c.l.b16 %v711
    %v750 = vunpack.c.h.b16 %v711
    %v751 = vunpack.c.l.b16 %v712
    %v752 = vunpack.c.h.b16 %v712
    %v753 = vunpack.c.l.b16 %v713
    %v754 = vunpack.c.h.b16 %v713
    %v755 = vunpack.c.l.b16 %v714
    %v756 = vunpack.c.h.b16 %v714
    %v757 = vunpack.c.l.b16 %v715
    %v758 = vunpack.c.h.b16 %v715
    %v759 = vunpack.c.l.b16 %v716
    %v760 = vunpack.c.h.b16 %v716
    %v761 = vunpack.c.l.b16 %v717
    %v762 = vunpack.c.h.b16 %v717
    %v763 = vunpack.c.l.b16 %v718
    %v764 = vunpack.c.h.b16 %v718
    %v765 = vunpack.c.l.b16 %v719
    %v766 = vunpack.c.h.b16 %v719
    %v767 = vunpack.c.l.b16 %v720
    %v768 = vunpack.c.h.b16 %v720
    %v769 = vpack.c.b16 %v737, %v737
    %v770 = vpack.c.b16 %v738, %v738
    %v771 = vpack.c.b16 %v739, %v739
    %v772 = vpack.c.b16 %v740, %v740
    %v773 = vpack.c.b16 %v741, %v741
    %v774 = vpack.c.b16 %v742, %v742
    %v775 = vpack.c.b16 %v743, %v743
    %v776 = vpack.c.b16 %v744, %v744
    %v777 = vpack.c.b16 %v745, %v745
    %v778 = vpack.c.b16 %v746, %v746
    %v779 = vpack.c.b16 %v747, %v747
    %v780 = vpack.c.b16 %v748, %v748
    %v781 = vpack.c.b16 %v749, %v749
    %v782 = vpack.c.b16 %v750, %v750
    %v783 = vpack.c.b16 %v751, %v751
    %v784 = vpack.c.b16 %v752, %v752
    %v785 = vpack.c.b16 %v753, %v753
    %v786 = vpack.c.b16 %v754, %v754
    %v787 = vpack.c.b16 %v755, %v755
    %v788 = vpack.c.b16 %v756, %v756
    %v789 = vpack.c.b16 %v757, %v757
    %v790 = vpack.c.b16 %v758, %v758
    %v791 = vpack.c.b16 %v759, %v759
    %v792 = vpack.c.b16 %v760, %v760
    %v793 = vpack.c.b16 %v761, %v761
    %v794 = vpack.c.b16 %v762, %v762
    %v795 = vpack.c.b16 %v763, %v763
    %v796 = vpack.c.b16 %v764, %v764
    %v797 = vpack.c.b16 %v765, %v765
    %v798 = vpack.c.b16 %v766, %v766
    %v799 = vpack.c.b16 %v767, %v767
    %v800 = vpack.c.b16 %v768, %v768
    %833 = vst [vmem:[%s4] sm:$0xf] %v769
    %834 = vst [vmem:[%s4 + $0x4] sm:$0xf] %v770
    %835 = vst [vmem:[%s4 + $0x8] sm:$0xf] %v771
    %836 = vst [vmem:[%s4 + $0xc] sm:$0xf] %v772
    %837 = vst [vmem:[%s4 + $0x10] sm:$0xf] %v773
    %838 = vst [vmem:[%s4 + $0x14] sm:$0xf] %v774
    %839 = vst [vmem:[%s4 + $0x18] sm:$0xf] %v775
    %840 = vst [vmem:[%s4 + $0x1c] sm:$0xf] %v776
    %841 = vst [vmem:[%s4 + $0x20] sm:$0xf] %v777
    %842 = vst [vmem:[%s4 + $0x24] sm:$0xf] %v778
    %843 = vst [vmem:[%s4 + $0x28] sm:$0xf] %v779
    %844 = vst [vmem:[%s4 + $0x2c] sm:$0xf] %v780
    %845 = vst [vmem:[%s4 + $0x30] sm:$0xf] %v781
    %846 = vst [vmem:[%s4 + $0x34] sm:$0xf] %v782
    %847 = vst [vmem:[%s4 + $0x38] sm:$0xf] %v783
    %848 = vst [vmem:[%s4 + $0x3c] sm:$0xf] %v784
    %849 = vst [vmem:[%s4 + $0x40] sm:$0xf] %v785
    %850 = vst [vmem:[%s4 + $0x44] sm:$0xf] %v786
    %851 = vst [vmem:[%s4 + $0x48] sm:$0xf] %v787
    %852 = vst [vmem:[%s4 + $0x4c] sm:$0xf] %v788
    %853 = vst [vmem:[%s4 + $0x50] sm:$0xf] %v789
    %854 = vst [vmem:[%s4 + $0x54] sm:$0xf] %v790
    %855 = vst [vmem:[%s4 + $0x58] sm:$0xf] %v791
    %856 = vst [vmem:[%s4 + $0x5c] sm:$0xf] %v792
    %857 = vst [vmem:[%s4 + $0x60] sm:$0xf] %v793
    %858 = vst [vmem:[%s4 + $0x64] sm:$0xf] %v794
    %859 = vst [vmem:[%s4 + $0x68] sm:$0xf] %v795
    %860 = vst [vmem:[%s4 + $0x6c] sm:$0xf] %v796
    %861 = vst [vmem:[%s4 + $0x70] sm:$0xf] %v797
    %862 = vst [vmem:[%s4 + $0x74] sm:$0xf] %v798
    %863 = vst [vmem:[%s4 + $0x78] sm:$0xf] %v799
    %864 = vst [vmem:[%s4 + $0x7c] sm:$0xf] %v800
  $region25: #{_lambda_.17} parent=0 // pred_fallthru
    _
  // Predicated region
  $region26: #{_lambda_.17} parent=0 // pred_check
    _
  $region27: #{_lambda_.17} parent=0 // pred_check_branch
    %866 = sbr.rel (0) target = $region29
  $region28: #{_lambda_.17} parent=0 // pred_region
    _
  $region29: #{_lambda_.17} parent=0 // pred_fallthru
    _
  // Predicated region
  $region30: #{_lambda_.17} parent=0 // pred_check
    _
  $region31: #{_lambda_.17} parent=0 // pred_check_branch
    %868 = sbr.rel (0) target = $region33
  $region32: #{_lambda_.17} parent=0 // pred_region
    _
  $region33: #{_lambda_.17} parent=0 // pred_fallthru
    _

// kernel: _lambda_.15
$region0: #{_lambda_.15}
  #allocation0 [shape = 'u32[]', space=smem, size = 0x4, offset = 0x4, fixed_abs, tag = 'smem constant byte address 0x4 - core index']
  #allocation1 [shape = 'u32[144,128]{1,0:T(1,128)}', space=vmem, size = 0x12000, scoped, tag = 'internal scratch']
  #allocation2 [shape = 'f32[256,128]{1,0:T(8,128)}', space=vmem, size = 0x20000, scoped, tag = 'scratch operand']
  %s0 = inlined_call_operand.vmem [shape: bf16[256,128], index: 0, kind: input, shape index: {}]
  %s1 = inlined_call_operand.vmem [shape: bf16[128,128], index: 1, kind: input, shape index: {}]
  %s2 = inlined_call_operand.vmem [shape: f32[1,128], index: 2, kind: input, shape index: {}]
  %s3 = inlined_call_operand.vmem [shape: bf16[256,128], index: 3, kind: output, shape index: {}]
  %s4 = sld [smem:[#allocation0]]
  $region30: #{_lambda_.15} parent=0
    _
  %s6 = ssub.s32 1, %s4
  %s7 = scalar_select 0, %s6, %s4
  // Predicated region
  $region2: #{_lambda_.15} parent=0 // pred_check
    _
  $region3: #{_lambda_.15} parent=0 // pred_check_branch
    %9 = sbr.rel (0) target = $region5
  $region4: #{_lambda_.15} parent=0 // pred_region
    _
  $region5: #{_lambda_.15} parent=0 // pred_fallthru
    _
  // Predicated region
  $region6: #{_lambda_.15} parent=0 // pred_check
    _
  $region7: #{_lambda_.15} parent=0 // pred_check_branch
    %11 = sbr.rel (0) target = $region9
  $region8: #{_lambda_.15} parent=0 // pred_region
    _
  $region9: #{_lambda_.15} parent=0 // pred_fallthru
    _
  // Predicated region
  $region10: #{_lambda_.15} parent=0 // pred_check
    _
  $region11: #{_lambda_.15} parent=0 // pred_check_branch
    %13 = sbr.rel (0) target = $region13
  $region12: #{_lambda_.15} parent=0 // pred_region
    _
  $region13: #{_lambda_.15} parent=0 // pred_fallthru
    _
  %p15 = scmp.eq.s32.totalorder 0, 0
  // Predicated region
  $region14: #{_lambda_.15} parent=0 // pred_check
    %p16 = pneg %p15
  $region15: #{_lambda_.15} parent=0 // pred_check_branch
    %18 = sbr.rel (%p16) target = $region17
  $region16: #{_lambda_.15} parent=0 // pred_region
    %19 = vst [vmem:[#allocation2] sm:$0xff] 0.0
    %20 = vst [vmem:[#allocation2 + $0x8] sm:$0xff] 0.0
    %21 = vst [vmem:[#allocation2 + $0x10] sm:$0xff] 0.0
    %22 = vst [vmem:[#allocation2 + $0x18] sm:$0xff] 0.0
    %23 = vst [vmem:[#allocation2 + $0x20] sm:$0xff] 0.0
    %24 = vst [vmem:[#allocation2 + $0x28] sm:$0xff] 0.0
    %25 = vst [vmem:[#allocation2 + $0x30] sm:$0xff] 0.0
    %26 = vst [vmem:[#allocation2 + $0x38] sm:$0xff] 0.0
    %27 = vst [vmem:[#allocation2 + $0x40] sm:$0xff] 0.0
    %28 = vst [vmem:[#allocation2 + $0x48] sm:$0xff] 0.0
    %29 = vst [vmem:[#allocation2 + $0x50] sm:$0xff] 0.0
    %30 = vst [vmem:[#allocation2 + $0x58] sm:$0xff] 0.0
    %31 = vst [vmem:[#allocation2 + $0x60] sm:$0xff] 0.0
    %32 = vst [vmem:[#allocation2 + $0x68] sm:$0xff] 0.0
    %33 = vst [vmem:[#allocation2 + $0x70] sm:$0xff] 0.0
    %34 = vst [vmem:[#allocation2 + $0x78] sm:$0xff] 0.0
    %35 = vst [vmem:[#allocation2 + $0x80] sm:$0xff] 0.0
    %36 = vst [vmem:[#allocation2 + $0x88] sm:$0xff] 0.0
    %37 = vst [vmem:[#allocation2 + $0x90] sm:$0xff] 0.0
    %38 = vst [vmem:[#allocation2 + $0x98] sm:$0xff] 0.0
    %39 = vst [vmem:[#allocation2 + $0xa0] sm:$0xff] 0.0
    %40 = vst [vmem:[#allocation2 + $0xa8] sm:$0xff] 0.0
    %41 = vst [vmem:[#allocation2 + $0xb0] sm:$0xff] 0.0
    %42 = vst [vmem:[#allocation2 + $0xb8] sm:$0xff] 0.0
    %43 = vst [vmem:[#allocation2 + $0xc0] sm:$0xff] 0.0
    %44 = vst [vmem:[#allocation2 + $0xc8] sm:$0xff] 0.0
    %45 = vst [vmem:[#allocation2 + $0xd0] sm:$0xff] 0.0
    %46 = vst [vmem:[#allocation2 + $0xd8] sm:$0xff] 0.0
    %47 = vst [vmem:[#allocation2 + $0xe0] sm:$0xff] 0.0
    %48 = vst [vmem:[#allocation2 + $0xe8] sm:$0xff] 0.0
    %49 = vst [vmem:[#allocation2 + $0xf0] sm:$0xff] 0.0
    %50 = vst [vmem:[#allocation2 + $0xf8] sm:$0xff] 0.0
  $region17: #{_lambda_.15} parent=0 // pred_fallthru
    _
  %v51 = vld [vmem:[%s0] sm:$0xf]
  %v52 = vld [vmem:[%s0 + $0x4] sm:$0xf]
  %v53 = vld [vmem:[%s0 + $0x8] sm:$0xf]
  %v54 = vld [vmem:[%s0 + $0xc] sm:$0xf]
  %v55 = vld [vmem:[%s0 + $0x10] sm:$0xf]
  %v56 = vld [vmem:[%s0 + $0x14] sm:$0xf]
  %v57 = vld [vmem:[%s0 + $0x18] sm:$0xf]
  %v58 = vld [vmem:[%s0 + $0x1c] sm:$0xf]
  %v59 = vld [vmem:[%s0 + $0x20] sm:$0xf]
  %v60 = vld [vmem:[%s0 + $0x24] sm:$0xf]
  %v61 = vld [vmem:[%s0 + $0x28] sm:$0xf]
  %v62 = vld [vmem:[%s0 + $0x2c] sm:$0xf]
  %v63 = vld [vmem:[%s0 + $0x30] sm:$0xf]
  %v64 = vld [vmem:[%s0 + $0x34] sm:$0xf]
  %v65 = vld [vmem:[%s0 + $0x38] sm:$0xf]
  %v66 = vld [vmem:[%s0 + $0x3c] sm:$0xf]
  %v67 = vld [vmem:[%s0 + $0x40] sm:$0xf]
  %v68 = vld [vmem:[%s0 + $0x44] sm:$0xf]
  %v69 = vld [vmem:[%s0 + $0x48] sm:$0xf]
  %v70 = vld [vmem:[%s0 + $0x4c] sm:$0xf]
  %v71 = vld [vmem:[%s0 + $0x50] sm:$0xf]
  %v72 = vld [vmem:[%s0 + $0x54] sm:$0xf]
  %v73 = vld [vmem:[%s0 + $0x58] sm:$0xf]
  %v74 = vld [vmem:[%s0 + $0x5c] sm:$0xf]
  %v75 = vld [vmem:[%s0 + $0x60] sm:$0xf]
  %v76 = vld [vmem:[%s0 + $0x64] sm:$0xf]
  %v77 = vld [vmem:[%s0 + $0x68] sm:$0xf]
  %v78 = vld [vmem:[%s0 + $0x6c] sm:$0xf]
  %v79 = vld [vmem:[%s0 + $0x70] sm:$0xf]
  %v80 = vld [vmem:[%s0 + $0x74] sm:$0xf]
  %v81 = vld [vmem:[%s0 + $0x78] sm:$0xf]
  %v82 = vld [vmem:[%s0 + $0x7c] sm:$0xf]
  %v83 = vld [vmem:[#allocation2] sm:$0xff]
  %v84 = vld [vmem:[#allocation2 + $0x8] sm:$0xff]
  %v85 = vld [vmem:[#allocation2 + $0x10] sm:$0xff]
  %v86 = vld [vmem:[#allocation2 + $0x18] sm:$0xff]
  %v87 = vld [vmem:[#allocation2 + $0x20] sm:$0xff]
  %v88 = vld [vmem:[#allocation2 + $0x28] sm:$0xff]
  %v89 = vld [vmem:[#allocation2 + $0x30] sm:$0xff]
  %v90 = vld [vmem:[#allocation2 + $0x38] sm:$0xff]
  %v91 = vld [vmem:[#allocation2 + $0x40] sm:$0xff]
  %v92 = vld [vmem:[#allocation2 + $0x48] sm:$0xff]
  %v93 = vld [vmem:[#allocation2 + $0x50] sm:$0xff]
  %v94 = vld [vmem:[#allocation2 + $0x58] sm:$0xff]
  %v95 = vld [vmem:[#allocation2 + $0x60] sm:$0xff]
  %v96 = vld [vmem:[#allocation2 + $0x68] sm:$0xff]
  %v97 = vld [vmem:[#allocation2 + $0x70] sm:$0xff]
  %v98 = vld [vmem:[#allocation2 + $0x78] sm:$0xff]
  %v99 = vld [vmem:[#allocation2 + $0x80] sm:$0xff]
  %v100 = vld [vmem:[#allocation2 + $0x88] sm:$0xff]
  %v101 = vld [vmem:[#allocation2 + $0x90] sm:$0xff]
  %v102 = vld [vmem:[#allocation2 + $0x98] sm:$0xff]
  %v103 = vld [vmem:[#allocation2 + $0xa0] sm:$0xff]
  %v104 = vld [vmem:[#allocation2 + $0xa8] sm:$0xff]
  %v105 = vld [vmem:[#allocation2 + $0xb0] sm:$0xff]
  %v106 = vld [vmem:[#allocation2 + $0xb8] sm:$0xff]
  %v107 = vld [vmem:[#allocation2 + $0xc0] sm:$0xff]
  %v108 = vld [vmem:[#allocation2 + $0xc8] sm:$0xff]
  %v109 = vld [vmem:[#allocation2 + $0xd0] sm:$0xff]
  %v110 = vld [vmem:[#allocation2 + $0xd8] sm:$0xff]
  %v111 = vld [vmem:[#allocation2 + $0xe0] sm:$0xff]
  %v112 = vld [vmem:[#allocation2 + $0xe8] sm:$0xff]
  %v113 = vld [vmem:[#allocation2 + $0xf0] sm:$0xff]
  %v114 = vld [vmem:[#allocation2 + $0xf8] sm:$0xff]
  %v115 = vld [vmem:[%s1] sm:$0xf]
  %v116 = vld [vmem:[%s1 + $0x4] sm:$0xf]
  %v117 = vld [vmem:[%s1 + $0x8] sm:$0xf]
  %v118 = vld [vmem:[%s1 + $0xc] sm:$0xf]
  %v119 = vld [vmem:[%s1 + $0x10] sm:$0xf]
  %v120 = vld [vmem:[%s1 + $0x14] sm:$0xf]
  %v121 = vld [vmem:[%s1 + $0x18] sm:$0xf]
  %v122 = vld [vmem:[%s1 + $0x1c] sm:$0xf]
  %v123 = vld [vmem:[%s1 + $0x20] sm:$0xf]
  %v124 = vld [vmem:[%s1 + $0x24] sm:$0xf]
  %v125 = vld [vmem:[%s1 + $0x28] sm:$0xf]
  %v126 = vld [vmem:[%s1 + $0x2c] sm:$0xf]
  %v127 = vld [vmem:[%s1 + $0x30] sm:$0xf]
  %v128 = vld [vmem:[%s1 + $0x34] sm:$0xf]
  %v129 = vld [vmem:[%s1 + $0x38] sm:$0xf]
  %v130 = vld [vmem:[%s1 + $0x3c] sm:$0xf]
  %v163 = vunpack.c.l.b16 %v51
  %v164 = vunpack.c.l.b16 %v52
  %v165 = vunpack.c.l.b16 %v53
  %v166 = vunpack.c.l.b16 %v54
  %v167 = vunpack.c.l.b16 %v55
  %v168 = vunpack.c.l.b16 %v56
  %v169 = vunpack.c.l.b16 %v57
  %v170 = vunpack.c.l.b16 %v58
  %v171 = vunpack.c.l.b16 %v59
  %v172 = vunpack.c.l.b16 %v60
  %v173 = vunpack.c.l.b16 %v61
  %v174 = vunpack.c.l.b16 %v62
  %v175 = vunpack.c.l.b16 %v63
  %v176 = vunpack.c.l.b16 %v64
  %v177 = vunpack.c.l.b16 %v65
  %v178 = vunpack.c.l.b16 %v66
  %v179 = vunpack.c.l.b16 %v67
  %v180 = vunpack.c.l.b16 %v68
  %v181 = vunpack.c.l.b16 %v69
  %v182 = vunpack.c.l.b16 %v70
  %v183 = vunpack.c.l.b16 %v71
  %v184 = vunpack.c.l.b16 %v72
  %v185 = vunpack.c.l.b16 %v73
  %v186 = vunpack.c.l.b16 %v74
  %v187 = vunpack.c.l.b16 %v75
  %v188 = vunpack.c.l.b16 %v76
  %v189 = vunpack.c.l.b16 %v77
  %v190 = vunpack.c.l.b16 %v78
  %v191 = vunpack.c.l.b16 %v79
  %v192 = vunpack.c.l.b16 %v80
  %v193 = vunpack.c.l.b16 %v81
  %v194 = vunpack.c.l.b16 %v82
  %v195 = vpack.c.b16 %v164, %v163
  %v196 = vpack.c.b16 %v166, %v165
  %v197 = vpack.c.b16 %v168, %v167
  %v198 = vpack.c.b16 %v170, %v169
  %v199 = vpack.c.b16 %v172, %v171
  %v200 = vpack.c.b16 %v174, %v173
  %v201 = vpack.c.b16 %v176, %v175
  %v202 = vpack.c.b16 %v178, %v177
  %v203 = vpack.c.b16 %v180, %v179
  %v204 = vpack.c.b16 %v182, %v181
  %v205 = vpack.c.b16 %v184, %v183
  %v206 = vpack.c.b16 %v186, %v185
  %v207 = vpack.c.b16 %v188, %v187
  %v208 = vpack.c.b16 %v190, %v189
  %v209 = vpack.c.b16 %v192, %v191
  %v210 = vpack.c.b16 %v194, %v193
  %v243 = vunpack.c.l.b16 %v115
  %v244 = vunpack.c.l.b16 %v116
  %v245 = vunpack.c.l.b16 %v117
  %v246 = vunpack.c.l.b16 %v118
  %v247 = vunpack.c.l.b16 %v119
  %v248 = vunpack.c.l.b16 %v120
  %v249 = vunpack.c.l.b16 %v121
  %v250 = vunpack.c.l.b16 %v122
  %v251 = vunpack.c.l.b16 %v123
  %v252 = vunpack.c.l.b16 %v124
  %v253 = vunpack.c.l.b16 %v125
  %v254 = vunpack.c.l.b16 %v126
  %v255 = vunpack.c.l.b16 %v127
  %v256 = vunpack.c.l.b16 %v128
  %v257 = vunpack.c.l.b16 %v129
  %v258 = vunpack.c.l.b16 %v130
  %v259 = vpack.c.b16 %v244, %v243
  %v260 = vpack.c.b16 %v246, %v245
  %v261 = vpack.c.b16 %v248, %v247
  %v262 = vpack.c.b16 %v250, %v249
  %v263 = vpack.c.b16 %v252, %v251
  %v264 = vpack.c.b16 %v254, %v253
  %v265 = vpack.c.b16 %v256, %v255
  %v266 = vpack.c.b16 %v258, %v257
  %275 = vmatprep.subr.bf16.mxu0 0
  %276 = vmatpush1.bf16.msra.mxu0 %v259
  %277 = vmatprep.subr.bf16.mxu0 0
  %278 = vmatpush1.bf16.msra.mxu0 %v260
  %279 = vmatprep.subr.bf16.mxu0 0
  %280 = vmatpush1.bf16.msra.mxu0 %v261
  %281 = vmatprep.subr.bf16.mxu0 0
  %282 = vmatpush1.bf16.msra.mxu0 %v262
  %283 = vmatprep.subr.bf16.mxu0 0
  %284 = vmatpush1.bf16.msra.mxu0 %v263
  %285 = vmatprep.subr.bf16.mxu0 0
  %286 = vmatpush1.bf16.msra.mxu0 %v264
  %287 = vmatprep.subr.bf16.mxu0 0
  %288 = vmatpush1.bf16.msra.mxu0 %v265
  %289 = vmatprep.subr.bf16.mxu0 0
  %290 = vmatpush1.bf16.msra.mxu0 %v266
  %291 = vmatprep.subr.bf16.mxu0 0
  %292 = vmatpush1.bf16.msra.mxu0 0
  %293 = vmatprep.subr.bf16.mxu0 0
  %294 = vmatpush1.bf16.msra.mxu0 0
  %295 = vmatprep.subr.bf16.mxu0 0
  %296 = vmatpush1.bf16.msra.mxu0 0
  %297 = vmatprep.subr.bf16.mxu0 0
  %298 = vmatpush1.bf16.msra.mxu0 0
  %299 = vmatprep.subr.bf16.mxu0 0
  %300 = vmatpush1.bf16.msra.mxu0 0
  %301 = vmatprep.subr.bf16.mxu0 0
  %302 = vmatpush1.bf16.msra.mxu0 0
  %303 = vmatprep.subr.bf16.mxu0 0
  %304 = vmatpush1.bf16.msra.mxu0 0
  %305 = vmatprep.subr.bf16.mxu0 0
  %306 = vmatpush1.bf16.msra.mxu0 0
  %307 = vmatprep.mubr.bf16.mxu0 0
  %308 = vmatmul.mubr.bf16.gmra.mrb[0].mxu0 %v195
  %v309 = vpop.f32.mrb[0].mxu0
  %v310 = vadd.f32 0.0, %v309
  %v311 = vpop.f32.mrb[0].mxu0
  %v312 = vpop.f32.mrb[0].mxu0
  %v313 = vadd.f32 0.0, %v312
  %v314 = vpop.f32.mrb[0].mxu0
  %315 = vmatprep.mubr.bf16.mxu0 0
  %316 = vmatmul.mubr.bf16.gmra.mrb[0].mxu0 %v196
  %v317 = vpop.f32.mrb[0].mxu0
  %v318 = vadd.f32 0.0, %v317
  %v319 = vpop.f32.mrb[0].mxu0
  %v320 = vpop.f32.mrb[0].mxu0
  %v321 = vadd.f32 0.0, %v320
  %v322 = vpop.f32.mrb[0].mxu0
  %323 = vmatprep.mubr.bf16.mxu0 0
  %324 = vmatmul.mubr.bf16.gmra.mrb[0].mxu0 %v197
  %v325 = vpop.f32.mrb[0].mxu0
  %v326 = vadd.f32 0.0, %v325
  %v327 = vpop.f32.mrb[0].mxu0
  %v328 = vpop.f32.mrb[0].mxu0
  %v329 = vadd.f32 0.0, %v328
  %v330 = vpop.f32.mrb[0].mxu0
  %331 = vmatprep.mubr.bf16.mxu0 0
  %332 = vmatmul.mubr.bf16.gmra.mrb[0].mxu0 %v198
  %v333 = vpop.f32.mrb[0].mxu0
  %v334 = vadd.f32 0.0, %v333
  %v335 = vpop.f32.mrb[0].mxu0
  %v336 = vpop.f32.mrb[0].mxu0
  %v337 = vadd.f32 0.0, %v336
  %v338 = vpop.f32.mrb[0].mxu0
  %339 = vmatprep.mubr.bf16.mxu0 0
  %340 = vmatmul.mubr.bf16.gmra.mrb[0].mxu0 %v199
  %v341 = vpop.f32.mrb[0].mxu0
  %v342 = vadd.f32 0.0, %v341
  %v343 = vpop.f32.mrb[0].mxu0
  %v344 = vpop.f32.mrb[0].mxu0
  %v345 = vadd.f32 0.0, %v344
  %v346 = vpop.f32.mrb[0].mxu0
  %347 = vmatprep.mubr.bf16.mxu0 0
  %348 = vmatmul.mubr.bf16.gmra.mrb[0].mxu0 %v200
  %v349 = vpop.f32.mrb[0].mxu0
  %v350 = vadd.f32 0.0, %v349
  %v351 = vpop.f32.mrb[0].mxu0
  %v352 = vpop.f32.mrb[0].mxu0
  %v353 = vadd.f32 0.0, %v352
  %v354 = vpop.f32.mrb[0].mxu0
  %355 = vmatprep.mubr.bf16.mxu0 0
  %356 = vmatmul.mubr.bf16.gmra.mrb[0].mxu0 %v201
  %v357 = vpop.f32.mrb[0].mxu0
  %v358 = vadd.f32 0.0, %v357
  %v359 = vpop.f32.mrb[0].mxu0
  %v360 = vpop.f32.mrb[0].mxu0
  %v361 = vadd.f32 0.0, %v360
  %v362 = vpop.f32.mrb[0].mxu0
  %363 = vmatprep.mubr.bf16.mxu0 0
  %364 = vmatmul.mubr.bf16.gmra.mrb[0].mxu0 %v202
  %v365 = vpop.f32.mrb[0].mxu0
  %v366 = vadd.f32 0.0, %v365
  %v367 = vpop.f32.mrb[0].mxu0
  %v368 = vpop.f32.mrb[0].mxu0
  %v369 = vadd.f32 0.0, %v368
  %v370 = vpop.f32.mrb[0].mxu0
  %371 = vmatprep.mubr.bf16.mxu0 0
  %372 = vmatmul.mubr.bf16.gmra.mrb[0].mxu0 %v203
  %v373 = vpop.f32.mrb[0].mxu0
  %v374 = vadd.f32 0.0, %v373
  %v375 = vpop.f32.mrb[0].mxu0
  %v376 = vpop.f32.mrb[0].mxu0
  %v377 = vadd.f32 0.0, %v376
  %v378 = vpop.f32.mrb[0].mxu0
  %379 = vmatprep.mubr.bf16.mxu0 0
  %380 = vmatmul.mubr.bf16.gmra.mrb[0].mxu0 %v204
  %v381 = vpop.f32.mrb[0].mxu0
  %v382 = vadd.f32 0.0, %v381
  %v383 = vpop.f32.mrb[0].mxu0
  %v384 = vpop.f32.mrb[0].mxu0
  %v385 = vadd.f32 0.0, %v384
  %v386 = vpop.f32.mrb[0].mxu0
  %387 = vmatprep.mubr.bf16.mxu0 0
  %388 = vmatmul.mubr.bf16.gmra.mrb[0].mxu0 %v205
  %v389 = vpop.f32.mrb[0].mxu0
  %v390 = vadd.f32 0.0, %v389
  %v391 = vpop.f32.mrb[0].mxu0
  %v392 = vpop.f32.mrb[0].mxu0
  %v393 = vadd.f32 0.0, %v392
  %v394 = vpop.f32.mrb[0].mxu0
  %395 = vmatprep.mubr.bf16.mxu0 0
  %396 = vmatmul.mubr.bf16.gmra.mrb[0].mxu0 %v206
  %v397 = vpop.f32.mrb[0].mxu0
  %v398 = vadd.f32 0.0, %v397
  %v399 = vpop.f32.mrb[0].mxu0
  %v400 = vpop.f32.mrb[0].mxu0
  %v401 = vadd.f32 0.0, %v400
  %v402 = vpop.f32.mrb[0].mxu0
  %403 = vmatprep.mubr.bf16.mxu0 0
  %404 = vmatmul.mubr.bf16.gmra.mrb[0].mxu0 %v207
  %v405 = vpop.f32.mrb[0].mxu0
  %v406 = vadd.f32 0.0, %v405
  %v407 = vpop.f32.mrb[0].mxu0
  %v408 = vpop.f32.mrb[0].mxu0
  %v409 = vadd.f32 0.0, %v408
  %v410 = vpop.f32.mrb[0].mxu0
  %411 = vmatprep.mubr.bf16.mxu0 0
  %412 = vmatmul.mubr.bf16.gmra.mrb[0].mxu0 %v208
  %v413 = vpop.f32.mrb[0].mxu0
  %v414 = vadd.f32 0.0, %v413
  %v415 = vpop.f32.mrb[0].mxu0
  %v416 = vpop.f32.mrb[0].mxu0
  %v417 = vadd.f32 0.0, %v416
  %v418 = vpop.f32.mrb[0].mxu0
  %419 = vmatprep.mubr.bf16.mxu0 0
  %420 = vmatmul.mubr.bf16.gmra.mrb[0].mxu0 %v209
  %v421 = vpop.f32.mrb[0].mxu0
  %v422 = vadd.f32 0.0, %v421
  %v423 = vpop.f32.mrb[0].mxu0
  %v424 = vpop.f32.mrb[0].mxu0
  %v425 = vadd.f32 0.0, %v424
  %v426 = vpop.f32.mrb[0].mxu0
  %427 = vmatprep.mubr.bf16.mxu0 0
  %428 = vmatmul.mubr.bf16.gmra.mrb[0].mxu0 %v210
  %v429 = vpop.f32.mrb[0].mxu0
  %v430 = vadd.f32 0.0, %v429
  %v431 = vpop.f32.mrb[0].mxu0
  %v432 = vpop.f32.mrb[0].mxu0
  %v433 = vadd.f32 0.0, %v432
  %v434 = vpop.f32.mrb[0].mxu0
  %435 = vdwg.mxu0
  %v436 = vadd.f32 %v83, %v310
  %v437 = vadd.f32 %v84, %v313
  %v438 = vadd.f32 %v85, %v318
  %v439 = vadd.f32 %v86, %v321
  %v440 = vadd.f32 %v87, %v326
  %v441 = vadd.f32 %v88, %v329
  %v442 = vadd.f32 %v89, %v334
  %v443 = vadd.f32 %v90, %v337
  %v444 = vadd.f32 %v91, %v342
  %v445 = vadd.f32 %v92, %v345
  %v446 = vadd.f32 %v93, %v350
  %v447 = vadd.f32 %v94, %v353
  %v448 = vadd.f32 %v95, %v358
  %v449 = vadd.f32 %v96, %v361
  %v450 = vadd.f32 %v97, %v366
  %v451 = vadd.f32 %v98, %v369
  %v452 = vadd.f32 %v99, %v374
  %v453 = vadd.f32 %v100, %v377
  %v454 = vadd.f32 %v101, %v382
  %v455 = vadd.f32 %v102, %v385
  %v456 = vadd.f32 %v103, %v390
  %v457 = vadd.f32 %v104, %v393
  %v458 = vadd.f32 %v105, %v398
  %v459 = vadd.f32 %v106, %v401
  %v460 = vadd.f32 %v107, %v406
  %v461 = vadd.f32 %v108, %v409
  %v462 = vadd.f32 %v109, %v414
  %v463 = vadd.f32 %v110, %v417
  %v464 = vadd.f32 %v111, %v422
  %v465 = vadd.f32 %v112, %v425
  %v466 = vadd.f32 %v113, %v430
  %v467 = vadd.f32 %v114, %v433
  %468 = vst [vmem:[#allocation2] sm:$0xff] %v436
  %469 = vst [vmem:[#allocation2 + $0x8] sm:$0xff] %v437
  %470 = vst [vmem:[#allocation2 + $0x10] sm:$0xff] %v438
  %471 = vst [vmem:[#allocation2 + $0x18] sm:$0xff] %v439
  %472 = vst [vmem:[#allocation2 + $0x20] sm:$0xff] %v440
  %473 = vst [vmem:[#allocation2 + $0x28] sm:$0xff] %v441
  %474 = vst [vmem:[#allocation2 + $0x30] sm:$0xff] %v442
  %475 = vst [vmem:[#allocation2 + $0x38] sm:$0xff] %v443
  %476 = vst [vmem:[#allocation2 + $0x40] sm:$0xff] %v444
  %477 = vst [vmem:[#allocation2 + $0x48] sm:$0xff] %v445
  %478 = vst [vmem:[#allocation2 + $0x50] sm:$0xff] %v446
  %479 = vst [vmem:[#allocation2 + $0x58] sm:$0xff] %v447
  %480 = vst [vmem:[#allocation2 + $0x60] sm:$0xff] %v448
  %481 = vst [vmem:[#allocation2 + $0x68] sm:$0xff] %v449
  %482 = vst [vmem:[#allocation2 + $0x70] sm:$0xff] %v450
  %483 = vst [vmem:[#allocation2 + $0x78] sm:$0xff] %v451
  %484 = vst [vmem:[#allocation2 + $0x80] sm:$0xff] %v452
  %485 = vst [vmem:[#allocation2 + $0x88] sm:$0xff] %v453
  %486 = vst [vmem:[#allocation2 + $0x90] sm:$0xff] %v454
  %487 = vst [vmem:[#allocation2 + $0x98] sm:$0xff] %v455
  %488 = vst [vmem:[#allocation2 + $0xa0] sm:$0xff] %v456
  %489 = vst [vmem:[#allocation2 + $0xa8] sm:$0xff] %v457
  %490 = vst [vmem:[#allocation2 + $0xb0] sm:$0xff] %v458
  %491 = vst [vmem:[#allocation2 + $0xb8] sm:$0xff] %v459
  %492 = vst [vmem:[#allocation2 + $0xc0] sm:$0xff] %v460
  %493 = vst [vmem:[#allocation2 + $0xc8] sm:$0xff] %v461
  %494 = vst [vmem:[#allocation2 + $0xd0] sm:$0xff] %v462
  %495 = vst [vmem:[#allocation2 + $0xd8] sm:$0xff] %v463
  %496 = vst [vmem:[#allocation2 + $0xe0] sm:$0xff] %v464
  %497 = vst [vmem:[#allocation2 + $0xe8] sm:$0xff] %v465
  %498 = vst [vmem:[#allocation2 + $0xf0] sm:$0xff] %v466
  %499 = vst [vmem:[#allocation2 + $0xf8] sm:$0xff] %v467
  // Predicated region
  $region18: #{_lambda_.15} parent=0 // pred_check
    %p500 = pneg %p15
  $region19: #{_lambda_.15} parent=0 // pred_check_branch
    %502 = sbr.rel (%p500) target = $region21
  $region20: #{_lambda_.15} parent=0 // pred_region
    %v503 = vld [vmem:[#allocation2] sm:$0xff]
    %v504 = vld [vmem:[#allocation2 + $0x8] sm:$0xff]
    %v505 = vld [vmem:[#allocation2 + $0x10] sm:$0xff]
    %v506 = vld [vmem:[#allocation2 + $0x18] sm:$0xff]
    %v507 = vld [vmem:[#allocation2 + $0x20] sm:$0xff]
    %v508 = vld [vmem:[#allocation2 + $0x28] sm:$0xff]
    %v509 = vld [vmem:[#allocation2 + $0x30] sm:$0xff]
    %v510 = vld [vmem:[#allocation2 + $0x38] sm:$0xff]
    %v511 = vld [vmem:[#allocation2 + $0x40] sm:$0xff]
    %v512 = vld [vmem:[#allocation2 + $0x48] sm:$0xff]
    %v513 = vld [vmem:[#allocation2 + $0x50] sm:$0xff]
    %v514 = vld [vmem:[#allocation2 + $0x58] sm:$0xff]
    %v515 = vld [vmem:[#allocation2 + $0x60] sm:$0xff]
    %v516 = vld [vmem:[#allocation2 + $0x68] sm:$0xff]
    %v517 = vld [vmem:[#allocation2 + $0x70] sm:$0xff]
    %v518 = vld [vmem:[#allocation2 + $0x78] sm:$0xff]
    %v519 = vld [vmem:[#allocation2 + $0x80] sm:$0xff]
    %v520 = vld [vmem:[#allocation2 + $0x88] sm:$0xff]
    %v521 = vld [vmem:[#allocation2 + $0x90] sm:$0xff]
    %v522 = vld [vmem:[#allocation2 + $0x98] sm:$0xff]
    %v523 = vld [vmem:[#allocation2 + $0xa0] sm:$0xff]
    %v524 = vld [vmem:[#allocation2 + $0xa8] sm:$0xff]
    %v525 = vld [vmem:[#allocation2 + $0xb0] sm:$0xff]
    %v526 = vld [vmem:[#allocation2 + $0xb8] sm:$0xff]
    %v527 = vld [vmem:[#allocation2 + $0xc0] sm:$0xff]
    %v528 = vld [vmem:[#allocation2 + $0xc8] sm:$0xff]
    %v529 = vld [vmem:[#allocation2 + $0xd0] sm:$0xff]
    %v530 = vld [vmem:[#allocation2 + $0xd8] sm:$0xff]
    %v531 = vld [vmem:[#allocation2 + $0xe0] sm:$0xff]
    %v532 = vld [vmem:[#allocation2 + $0xe8] sm:$0xff]
    %v533 = vld [vmem:[#allocation2 + $0xf0] sm:$0xff]
    %v534 = vld [vmem:[#allocation2 + $0xf8] sm:$0xff]
    %v535 = vld [vmem:[%s2] sm:$0x1]
    %v537 = vlaneseq
    %v538 = vshrl.u32 %v537, 7
    %v539 = vsub.s32 0, %v538
    %v540 = vrot.slane %v535, %v539
    %v542 = vadd.f32 %v503, %v540
    %v543 = vadd.f32 %v504, %v540
    %v544 = vadd.f32 %v505, %v540
    %v545 = vadd.f32 %v506, %v540
    %v546 = vadd.f32 %v507, %v540
    %v547 = vadd.f32 %v508, %v540
    %v548 = vadd.f32 %v509, %v540
    %v549 = vadd.f32 %v510, %v540
    %v550 = vadd.f32 %v511, %v540
    %v551 = vadd.f32 %v512, %v540
    %v552 = vadd.f32 %v513, %v540
    %v553 = vadd.f32 %v514, %v540
    %v554 = vadd.f32 %v515, %v540
    %v555 = vadd.f32 %v516, %v540
    %v556 = vadd.f32 %v517, %v540
    %v557 = vadd.f32 %v518, %v540
    %v558 = vadd.f32 %v519, %v540
    %v559 = vadd.f32 %v520, %v540
    %v560 = vadd.f32 %v521, %v540
    %v561 = vadd.f32 %v522, %v540
    %v562 = vadd.f32 %v523, %v540
    %v563 = vadd.f32 %v524, %v540
    %v564 = vadd.f32 %v525, %v540
    %v565 = vadd.f32 %v526, %v540
    %v566 = vadd.f32 %v527, %v540
    %v567 = vadd.f32 %v528, %v540
    %v568 = vadd.f32 %v529, %v540
    %v569 = vadd.f32 %v530, %v540
    %v570 = vadd.f32 %v531, %v540
    %v571 = vadd.f32 %v532, %v540
    %v572 = vadd.f32 %v533, %v540
    %v573 = vadd.f32 %v534, %v540
    %v574 = vmax.f32 %v542, 0.0
    %v575 = vmax.f32 %v543, 0.0
    %v576 = vmax.f32 %v544, 0.0
    %v577 = vmax.f32 %v545, 0.0
    %v578 = vmax.f32 %v546, 0.0
    %v579 = vmax.f32 %v547, 0.0
    %v580 = vmax.f32 %v548, 0.0
    %v581 = vmax.f32 %v549, 0.0
    %v582 = vmax.f32 %v550, 0.0
    %v583 = vmax.f32 %v551, 0.0
    %v584 = vmax.f32 %v552, 0.0
    %v585 = vmax.f32 %v553, 0.0
    %v586 = vmax.f32 %v554, 0.0
    %v587 = vmax.f32 %v555, 0.0
    %v588 = vmax.f32 %v556, 0.0
    %v589 = vmax.f32 %v557, 0.0
    %v590 = vmax.f32 %v558, 0.0
    %v591 = vmax.f32 %v559, 0.0
    %v592 = vmax.f32 %v560, 0.0
    %v593 = vmax.f32 %v561, 0.0
    %v594 = vmax.f32 %v562, 0.0
    %v595 = vmax.f32 %v563, 0.0
    %v596 = vmax.f32 %v564, 0.0
    %v597 = vmax.f32 %v565, 0.0
    %v598 = vmax.f32 %v566, 0.0
    %v599 = vmax.f32 %v567, 0.0
    %v600 = vmax.f32 %v568, 0.0
    %v601 = vmax.f32 %v569, 0.0
    %v602 = vmax.f32 %v570, 0.0
    %v603 = vmax.f32 %v571, 0.0
    %v604 = vmax.f32 %v572, 0.0
    %v605 = vmax.f32 %v573, 0.0
    %v606 = vpack.c.bf16 %v575, %v574
    %v607 = vpack.c.bf16 %v577, %v576
    %v608 = vpack.c.bf16 %v579, %v578
    %v609 = vpack.c.bf16 %v581, %v580
    %v610 = vpack.c.bf16 %v583, %v582
    %v611 = vpack.c.bf16 %v585, %v584
    %v612 = vpack.c.bf16 %v587, %v586
    %v613 = vpack.c.bf16 %v589, %v588
    %v614 = vpack.c.bf16 %v591, %v590
    %v615 = vpack.c.bf16 %v593, %v592
    %v616 = vpack.c.bf16 %v595, %v594
    %v617 = vpack.c.bf16 %v597, %v596
    %v618 = vpack.c.bf16 %v599, %v598
    %v619 = vpack.c.bf16 %v601, %v600
    %v620 = vpack.c.bf16 %v603, %v602
    %v621 = vpack.c.bf16 %v605, %v604
    %v638 = vunpack.c.l.b16 %v606
    %v639 = vunpack.c.h.b16 %v606
    %v640 = vunpack.c.l.b16 %v607
    %v641 = vunpack.c.h.b16 %v607
    %v642 = vunpack.c.l.b16 %v608
    %v643 = vunpack.c.h.b16 %v608
    %v644 = vunpack.c.l.b16 %v609
    %v645 = vunpack.c.h.b16 %v609
    %v646 = vunpack.c.l.b16 %v610
    %v647 = vunpack.c.h.b16 %v610
    %v648 = vunpack.c.l.b16 %v611
    %v649 = vunpack.c.h.b16 %v611
    %v650 = vunpack.c.l.b16 %v612
    %v651 = vunpack.c.h.b16 %v612
    %v652 = vunpack.c.l.b16 %v613
    %v653 = vunpack.c.h.b16 %v613
    %v654 = vunpack.c.l.b16 %v614
    %v655 = vunpack.c.h.b16 %v614
    %v656 = vunpack.c.l.b16 %v615
    %v657 = vunpack.c.h.b16 %v615
    %v658 = vunpack.c.l.b16 %v616
    %v659 = vunpack.c.h.b16 %v616
    %v660 = vunpack.c.l.b16 %v617
    %v661 = vunpack.c.h.b16 %v617
    %v662 = vunpack.c.l.b16 %v618
    %v663 = vunpack.c.h.b16 %v618
    %v664 = vunpack.c.l.b16 %v619
    %v665 = vunpack.c.h.b16 %v619
    %v666 = vunpack.c.l.b16 %v620
    %v667 = vunpack.c.h.b16 %v620
    %v668 = vunpack.c.l.b16 %v621
    %v669 = vunpack.c.h.b16 %v621
    %v670 = vpack.c.b16 %v638, %v638
    %v671 = vpack.c.b16 %v639, %v639
    %v672 = vpack.c.b16 %v640, %v640
    %v673 = vpack.c.b16 %v641, %v641
    %v674 = vpack.c.b16 %v642, %v642
    %v675 = vpack.c.b16 %v643, %v643
    %v676 = vpack.c.b16 %v644, %v644
    %v677 = vpack.c.b16 %v645, %v645
    %v678 = vpack.c.b16 %v646, %v646
    %v679 = vpack.c.b16 %v647, %v647
    %v680 = vpack.c.b16 %v648, %v648
    %v681 = vpack.c.b16 %v649, %v649
    %v682 = vpack.c.b16 %v650, %v650
    %v683 = vpack.c.b16 %v651, %v651
    %v684 = vpack.c.b16 %v652, %v652
    %v685 = vpack.c.b16 %v653, %v653
    %v686 = vpack.c.b16 %v654, %v654
    %v687 = vpack.c.b16 %v655, %v655
    %v688 = vpack.c.b16 %v656, %v656
    %v689 = vpack.c.b16 %v657, %v657
    %v690 = vpack.c.b16 %v658, %v658
    %v691 = vpack.c.b16 %v659, %v659
    %v692 = vpack.c.b16 %v660, %v660
    %v693 = vpack.c.b16 %v661, %v661
    %v694 = vpack.c.b16 %v662, %v662
    %v695 = vpack.c.b16 %v663, %v663
    %v696 = vpack.c.b16 %v664, %v664
    %v697 = vpack.c.b16 %v665, %v665
    %v698 = vpack.c.b16 %v666, %v666
    %v699 = vpack.c.b16 %v667, %v667
    %v700 = vpack.c.b16 %v668, %v668
    %v701 = vpack.c.b16 %v669, %v669
    %734 = vst [vmem:[%s3] sm:$0xf] %v670
    %735 = vst [vmem:[%s3 + $0x4] sm:$0xf] %v671
    %736 = vst [vmem:[%s3 + $0x8] sm:$0xf] %v672
    %737 = vst [vmem:[%s3 + $0xc] sm:$0xf] %v673
    %738 = vst [vmem:[%s3 + $0x10] sm:$0xf] %v674
    %739 = vst [vmem:[%s3 + $0x14] sm:$0xf] %v675
    %740 = vst [vmem:[%s3 + $0x18] sm:$0xf] %v676
    %741 = vst [vmem:[%s3 + $0x1c] sm:$0xf] %v677
    %742 = vst [vmem:[%s3 + $0x20] sm:$0xf] %v678
    %743 = vst [vmem:[%s3 + $0x24] sm:$0xf] %v679
    %744 = vst [vmem:[%s3 + $0x28] sm:$0xf] %v680
    %745 = vst [vmem:[%s3 + $0x2c] sm:$0xf] %v681
    %746 = vst [vmem:[%s3 + $0x30] sm:$0xf] %v682
    %747 = vst [vmem:[%s3 + $0x34] sm:$0xf] %v683
    %748 = vst [vmem:[%s3 + $0x38] sm:$0xf] %v684
    %749 = vst [vmem:[%s3 + $0x3c] sm:$0xf] %v685
    %750 = vst [vmem:[%s3 + $0x40] sm:$0xf] %v686
    %751 = vst [vmem:[%s3 + $0x44] sm:$0xf] %v687
    %752 = vst [vmem:[%s3 + $0x48] sm:$0xf] %v688
    %753 = vst [vmem:[%s3 + $0x4c] sm:$0xf] %v689
    %754 = vst [vmem:[%s3 + $0x50] sm:$0xf] %v690
    %755 = vst [vmem:[%s3 + $0x54] sm:$0xf] %v691
    %756 = vst [vmem:[%s3 + $0x58] sm:$0xf] %v692
    %757 = vst [vmem:[%s3 + $0x5c] sm:$0xf] %v693
    %758 = vst [vmem:[%s3 + $0x60] sm:$0xf] %v694
    %759 = vst [vmem:[%s3 + $0x64] sm:$0xf] %v695
    %760 = vst [vmem:[%s3 + $0x68] sm:$0xf] %v696
    %761 = vst [vmem:[%s3 + $0x6c] sm:$0xf] %v697
    %762 = vst [vmem:[%s3 + $0x70] sm:$0xf] %v698
    %763 = vst [vmem:[%s3 + $0x74] sm:$0xf] %v699
    %764 = vst [vmem:[%s3 + $0x78] sm:$0xf] %v700
    %765 = vst [vmem:[%s3 + $0x7c] sm:$0xf] %v701
  $region21: #{_lambda_.15} parent=0 // pred_fallthru
    _
  // Predicated region
  $region22: #{_lambda_.15} parent=0 // pred_check
    _
  $region23: #{_lambda_.15} parent=0 // pred_check_branch
    %767 = sbr.rel (0) target = $region25
  $region24: #{_lambda_.15} parent=0 // pred_region
    _
  $region25: #{_lambda_.15} parent=0 // pred_fallthru
    _
  // Predicated region
  $region26: #{_lambda_.15} parent=0 // pred_check
    _
  $region27: #{_lambda_.15} parent=0 // pred_check_branch
    %769 = sbr.rel (0) target = $region29
  $region28: #{_lambda_.15} parent=0 // pred_region
    _
  $region29: #{_lambda_.15} parent=0 // pred_fallthru
    _

// kernel: _lambda_.18
$region0: #{_lambda_.18}
  #allocation0 [shape = 'u32[]', space=smem, size = 0x4, offset = 0x4, fixed_abs, tag = 'smem constant byte address 0x4 - core index']
  #allocation1 [shape = 'u32[144,128]{1,0:T(1,128)}', space=vmem, size = 0x12000, scoped, tag = 'internal scratch']
  #allocation2 [shape = 'f32[64,128]{1,0:T(8,128)}', space=vmem, size = 0x8000, scoped, tag = 'scratch operand']
  %s0 = inlined_call_operand.vmem [shape: bf16[64,128], index: 0, kind: input, shape index: {}]
  %s1 = inlined_call_operand.vmem [shape: bf16[128,128], index: 1, kind: input, shape index: {}]
  %s2 = inlined_call_operand.vmem [shape: f32[1,128], index: 2, kind: input, shape index: {}]
  %s3 = inlined_call_operand.vmem [shape: bf16[64,128], index: 3, kind: output, shape index: {}]
  %s4 = sld [smem:[#allocation0]]
  $region30: #{_lambda_.18} parent=0
    _
  %s6 = ssub.s32 1, %s4
  %s7 = scalar_select 0, %s6, %s4
  // Predicated region
  $region2: #{_lambda_.18} parent=0 // pred_check
    _
  $region3: #{_lambda_.18} parent=0 // pred_check_branch
    %9 = sbr.rel (0) target = $region5
  $region4: #{_lambda_.18} parent=0 // pred_region
    _
  $region5: #{_lambda_.18} parent=0 // pred_fallthru
    _
  // Predicated region
  $region6: #{_lambda_.18} parent=0 // pred_check
    _
  $region7: #{_lambda_.18} parent=0 // pred_check_branch
    %11 = sbr.rel (0) target = $region9
  $region8: #{_lambda_.18} parent=0 // pred_region
    _
  $region9: #{_lambda_.18} parent=0 // pred_fallthru
    _
  // Predicated region
  $region10: #{_lambda_.18} parent=0 // pred_check
    _
  $region11: #{_lambda_.18} parent=0 // pred_check_branch
    %13 = sbr.rel (0) target = $region13
  $region12: #{_lambda_.18} parent=0 // pred_region
    _
  $region13: #{_lambda_.18} parent=0 // pred_fallthru
    _
  %p15 = scmp.eq.s32.totalorder 0, 0
  // Predicated region
  $region14: #{_lambda_.18} parent=0 // pred_check
    %p16 = pneg %p15
  $region15: #{_lambda_.18} parent=0 // pred_check_branch
    %18 = sbr.rel (%p16) target = $region17
  $region16: #{_lambda_.18} parent=0 // pred_region
    %19 = vst [vmem:[#allocation2] sm:$0xff] 0.0
    %20 = vst [vmem:[#allocation2 + $0x8] sm:$0xff] 0.0
    %21 = vst [vmem:[#allocation2 + $0x10] sm:$0xff] 0.0
    %22 = vst [vmem:[#allocation2 + $0x18] sm:$0xff] 0.0
    %23 = vst [vmem:[#allocation2 + $0x20] sm:$0xff] 0.0
    %24 = vst [vmem:[#allocation2 + $0x28] sm:$0xff] 0.0
    %25 = vst [vmem:[#allocation2 + $0x30] sm:$0xff] 0.0
    %26 = vst [vmem:[#allocation2 + $0x38] sm:$0xff] 0.0
  $region17: #{_lambda_.18} parent=0 // pred_fallthru
    _
  %v27 = vld [vmem:[%s0] sm:$0xf]
  %v28 = vld [vmem:[%s0 + $0x4] sm:$0xf]
  %v29 = vld [vmem:[%s0 + $0x8] sm:$0xf]
  %v30 = vld [vmem:[%s0 + $0xc] sm:$0xf]
  %v31 = vld [vmem:[%s0 + $0x10] sm:$0xf]
  %v32 = vld [vmem:[%s0 + $0x14] sm:$0xf]
  %v33 = vld [vmem:[%s0 + $0x18] sm:$0xf]
  %v34 = vld [vmem:[%s0 + $0x1c] sm:$0xf]
  %v35 = vld [vmem:[#allocation2] sm:$0xff]
  %v36 = vld [vmem:[#allocation2 + $0x8] sm:$0xff]
  %v37 = vld [vmem:[#allocation2 + $0x10] sm:$0xff]
  %v38 = vld [vmem:[#allocation2 + $0x18] sm:$0xff]
  %v39 = vld [vmem:[#allocation2 + $0x20] sm:$0xff]
  %v40 = vld [vmem:[#allocation2 + $0x28] sm:$0xff]
  %v41 = vld [vmem:[#allocation2 + $0x30] sm:$0xff]
  %v42 = vld [vmem:[#allocation2 + $0x38] sm:$0xff]
  %v43 = vld [vmem:[%s1] sm:$0xf]
  %v44 = vld [vmem:[%s1 + $0x4] sm:$0xf]
  %v45 = vld [vmem:[%s1 + $0x8] sm:$0xf]
  %v46 = vld [vmem:[%s1 + $0xc] sm:$0xf]
  %v47 = vld [vmem:[%s1 + $0x10] sm:$0xf]
  %v48 = vld [vmem:[%s1 + $0x14] sm:$0xf]
  %v49 = vld [vmem:[%s1 + $0x18] sm:$0xf]
  %v50 = vld [vmem:[%s1 + $0x1c] sm:$0xf]
  %v51 = vld [vmem:[%s1 + $0x20] sm:$0xf]
  %v52 = vld [vmem:[%s1 + $0x24] sm:$0xf]
  %v53 = vld [vmem:[%s1 + $0x28] sm:$0xf]
  %v54 = vld [vmem:[%s1 + $0x2c] sm:$0xf]
  %v55 = vld [vmem:[%s1 + $0x30] sm:$0xf]
  %v56 = vld [vmem:[%s1 + $0x34] sm:$0xf]
  %v57 = vld [vmem:[%s1 + $0x38] sm:$0xf]
  %v58 = vld [vmem:[%s1 + $0x3c] sm:$0xf]
  %v67 = vunpack.c.l.b16 %v27
  %v68 = vunpack.c.l.b16 %v28
  %v69 = vunpack.c.l.b16 %v29
  %v70 = vunpack.c.l.b16 %v30
  %v71 = vunpack.c.l.b16 %v31
  %v72 = vunpack.c.l.b16 %v32
  %v73 = vunpack.c.l.b16 %v33
  %v74 = vunpack.c.l.b16 %v34
  %v75 = vpack.c.b16 %v68, %v67
  %v76 = vpack.c.b16 %v70, %v69
  %v77 = vpack.c.b16 %v72, %v71
  %v78 = vpack.c.b16 %v74, %v73
  %v99 = vunpack.c.l.b16 %v43
  %v100 = vunpack.c.l.b16 %v44
  %v101 = vunpack.c.l.b16 %v45
  %v102 = vunpack.c.l.b16 %v46
  %v103 = vunpack.c.l.b16 %v47
  %v104 = vunpack.c.l.b16 %v48
  %v105 = vunpack.c.l.b16 %v49
  %v106 = vunpack.c.l.b16 %v50
  %v107 = vunpack.c.l.b16 %v51
  %v108 = vunpack.c.l.b16 %v52
  %v109 = vunpack.c.l.b16 %v53
  %v110 = vunpack.c.l.b16 %v54
  %v111 = vunpack.c.l.b16 %v55
  %v112 = vunpack.c.l.b16 %v56
  %v113 = vunpack.c.l.b16 %v57
  %v114 = vunpack.c.l.b16 %v58
  %v115 = vpack.c.b16 %v100, %v99
  %v116 = vpack.c.b16 %v102, %v101
  %v117 = vpack.c.b16 %v104, %v103
  %v118 = vpack.c.b16 %v106, %v105
  %v119 = vpack.c.b16 %v108, %v107
  %v120 = vpack.c.b16 %v110, %v109
  %v121 = vpack.c.b16 %v112, %v111
  %v122 = vpack.c.b16 %v114, %v113
  %131 = vmatprep.subr.bf16.mxu0 0
  %132 = vmatpush1.bf16.msra.mxu0 %v115
  %133 = vmatprep.subr.bf16.mxu0 0
  %134 = vmatpush1.bf16.msra.mxu0 %v116
  %135 = vmatprep.subr.bf16.mxu0 0
  %136 = vmatpush1.bf16.msra.mxu0 %v117
  %137 = vmatprep.subr.bf16.mxu0 0
  %138 = vmatpush1.bf16.msra.mxu0 %v118
  %139 = vmatprep.subr.bf16.mxu0 0
  %140 = vmatpush1.bf16.msra.mxu0 %v119
  %141 = vmatprep.subr.bf16.mxu0 0
  %142 = vmatpush1.bf16.msra.mxu0 %v120
  %143 = vmatprep.subr.bf16.mxu0 0
  %144 = vmatpush1.bf16.msra.mxu0 %v121
  %145 = vmatprep.subr.bf16.mxu0 0
  %146 = vmatpush1.bf16.msra.mxu0 %v122
  %147 = vmatprep.subr.bf16.mxu0 0
  %148 = vmatpush1.bf16.msra.mxu0 0
  %149 = vmatprep.subr.bf16.mxu0 0
  %150 = vmatpush1.bf16.msra.mxu0 0
  %151 = vmatprep.subr.bf16.mxu0 0
  %152 = vmatpush1.bf16.msra.mxu0 0
  %153 = vmatprep.subr.bf16.mxu0 0
  %154 = vmatpush1.bf16.msra.mxu0 0
  %155 = vmatprep.subr.bf16.mxu0 0
  %156 = vmatpush1.bf16.msra.mxu0 0
  %157 = vmatprep.subr.bf16.mxu0 0
  %158 = vmatpush1.bf16.msra.mxu0 0
  %159 = vmatprep.subr.bf16.mxu0 0
  %160 = vmatpush1.bf16.msra.mxu0 0
  %161 = vmatprep.subr.bf16.mxu0 0
  %162 = vmatpush1.bf16.msra.mxu0 0
  %163 = vmatprep.mubr.bf16.mxu0 0
  %164 = vmatmul.mubr.bf16.gmra.mrb[0].mxu0 %v75
  %v165 = vpop.f32.mrb[0].mxu0
  %v166 = vadd.f32 0.0, %v165
  %v167 = vpop.f32.mrb[0].mxu0
  %v168 = vpop.f32.mrb[0].mxu0
  %v169 = vadd.f32 0.0, %v168
  %v170 = vpop.f32.mrb[0].mxu0
  %171 = vmatprep.mubr.bf16.mxu0 0
  %172 = vmatmul.mubr.bf16.gmra.mrb[0].mxu0 %v76
  %v173 = vpop.f32.mrb[0].mxu0
  %v174 = vadd.f32 0.0, %v173
  %v175 = vpop.f32.mrb[0].mxu0
  %v176 = vpop.f32.mrb[0].mxu0
  %v177 = vadd.f32 0.0, %v176
  %v178 = vpop.f32.mrb[0].mxu0
  %179 = vmatprep.mubr.bf16.mxu0 0
  %180 = vmatmul.mubr.bf16.gmra.mrb[0].mxu0 %v77
  %v181 = vpop.f32.mrb[0].mxu0
  %v182 = vadd.f32 0.0, %v181
  %v183 = vpop.f32.mrb[0].mxu0
  %v184 = vpop.f32.mrb[0].mxu0
  %v185 = vadd.f32 0.0, %v184
  %v186 = vpop.f32.mrb[0].mxu0
  %187 = vmatprep.mubr.bf16.mxu0 0
  %188 = vmatmul.mubr.bf16.gmra.mrb[0].mxu0 %v78
  %v189 = vpop.f32.mrb[0].mxu0
  %v190 = vadd.f32 0.0, %v189
  %v191 = vpop.f32.mrb[0].mxu0
  %v192 = vpop.f32.mrb[0].mxu0
  %v193 = vadd.f32 0.0, %v192
  %v194 = vpop.f32.mrb[0].mxu0
  %195 = vdwg.mxu0
  %v196 = vadd.f32 %v35, %v166
  %v197 = vadd.f32 %v36, %v169
  %v198 = vadd.f32 %v37, %v174
  %v199 = vadd.f32 %v38, %v177
  %v200 = vadd.f32 %v39, %v182
  %v201 = vadd.f32 %v40, %v185
  %v202 = vadd.f32 %v41, %v190
  %v203 = vadd.f32 %v42, %v193
  %204 = vst [vmem:[#allocation2] sm:$0xff] %v196
  %205 = vst [vmem:[#allocation2 + $0x8] sm:$0xff] %v197
  %206 = vst [vmem:[#allocation2 + $0x10] sm:$0xff] %v198
  %207 = vst [vmem:[#allocation2 + $0x18] sm:$0xff] %v199
  %208 = vst [vmem:[#allocation2 + $0x20] sm:$0xff] %v200
  %209 = vst [vmem:[#allocation2 + $0x28] sm:$0xff] %v201
  %210 = vst [vmem:[#allocation2 + $0x30] sm:$0xff] %v202
  %211 = vst [vmem:[#allocation2 + $0x38] sm:$0xff] %v203
  // Predicated region
  $region18: #{_lambda_.18} parent=0 // pred_check
    %p212 = pneg %p15
  $region19: #{_lambda_.18} parent=0 // pred_check_branch
    %214 = sbr.rel (%p212) target = $region21
  $region20: #{_lambda_.18} parent=0 // pred_region
    %v215 = vld [vmem:[#allocation2] sm:$0xff]
    %v216 = vld [vmem:[#allocation2 + $0x8] sm:$0xff]
    %v217 = vld [vmem:[#allocation2 + $0x10] sm:$0xff]
    %v218 = vld [vmem:[#allocation2 + $0x18] sm:$0xff]
    %v219 = vld [vmem:[#allocation2 + $0x20] sm:$0xff]
    %v220 = vld [vmem:[#allocation2 + $0x28] sm:$0xff]
    %v221 = vld [vmem:[#allocation2 + $0x30] sm:$0xff]
    %v222 = vld [vmem:[#allocation2 + $0x38] sm:$0xff]
    %v223 = vld [vmem:[%s2] sm:$0x1]
    %v225 = vlaneseq
    %v226 = vshrl.u32 %v225, 7
    %v227 = vsub.s32 0, %v226
    %v228 = vrot.slane %v223, %v227
    %v230 = vadd.f32 %v215, %v228
    %v231 = vadd.f32 %v216, %v228
    %v232 = vadd.f32 %v217, %v228
    %v233 = vadd.f32 %v218, %v228
    %v234 = vadd.f32 %v219, %v228
    %v235 = vadd.f32 %v220, %v228
    %v236 = vadd.f32 %v221, %v228
    %v237 = vadd.f32 %v222, %v228
    %v238 = vmax.f32 %v230, 0.0
    %v239 = vmax.f32 %v231, 0.0
    %v240 = vmax.f32 %v232, 0.0
    %v241 = vmax.f32 %v233, 0.0
    %v242 = vmax.f32 %v234, 0.0
    %v243 = vmax.f32 %v235, 0.0
    %v244 = vmax.f32 %v236, 0.0
    %v245 = vmax.f32 %v237, 0.0
    %v246 = vpack.c.bf16 %v239, %v238
    %v247 = vpack.c.bf16 %v241, %v240
    %v248 = vpack.c.bf16 %v243, %v242
    %v249 = vpack.c.bf16 %v245, %v244
    %v254 = vunpack.c.l.b16 %v246
    %v255 = vunpack.c.h.b16 %v246
    %v256 = vunpack.c.l.b16 %v247
    %v257 = vunpack.c.h.b16 %v247
    %v258 = vunpack.c.l.b16 %v248
    %v259 = vunpack.c.h.b16 %v248
    %v260 = vunpack.c.l.b16 %v249
    %v261 = vunpack.c.h.b16 %v249
    %v262 = vpack.c.b16 %v254, %v254
    %v263 = vpack.c.b16 %v255, %v255
    %v264 = vpack.c.b16 %v256, %v256
    %v265 = vpack.c.b16 %v257, %v257
    %v266 = vpack.c.b16 %v258, %v258
    %v267 = vpack.c.b16 %v259, %v259
    %v268 = vpack.c.b16 %v260, %v260
    %v269 = vpack.c.b16 %v261, %v261
    %278 = vst [vmem:[%s3] sm:$0xf] %v262
    %279 = vst [vmem:[%s3 + $0x4] sm:$0xf] %v263
    %280 = vst [vmem:[%s3 + $0x8] sm:$0xf] %v264
    %281 = vst [vmem:[%s3 + $0xc] sm:$0xf] %v265
    %282 = vst [vmem:[%s3 + $0x10] sm:$0xf] %v266
    %283 = vst [vmem:[%s3 + $0x14] sm:$0xf] %v267
    %284 = vst [vmem:[%s3 + $0x18] sm:$0xf] %v268
    %285 = vst [vmem:[%s3 + $0x1c] sm:$0xf] %v269
  $region21: #{_lambda_.18} parent=0 // pred_fallthru
    _
  // Predicated region
  $region22: #{_lambda_.18} parent=0 // pred_check
    _
  $region23: #{_lambda_.18} parent=0 // pred_check_branch
    %287 = sbr.rel (0) target = $region25
  $region24: #{_lambda_.18} parent=0 // pred_region
    _
  $region25: #{_lambda_.18} parent=0 // pred_fallthru
    _
  // Predicated region
  $region26: #{_lambda_.18} parent=0 // pred_check
    _
  $region27: #{_lambda_.18} parent=0 // pred_check_branch
    %289 = sbr.rel (0) target = $region29
  $region28: #{_lambda_.18} parent=0 // pred_region
    _
  $region29: #{_lambda_.18} parent=0 // pred_fallthru
    _

// kernel: _lambda_.19
$region0: #{_lambda_.19}
  #allocation0 [shape = 'u32[]', space=smem, size = 0x4, offset = 0x4, fixed_abs, tag = 'smem constant byte address 0x4 - core index']
  #allocation1 [shape = 'u32[144,128]{1,0:T(1,128)}', space=vmem, size = 0x12000, scoped, tag = 'internal scratch']
  #allocation2 [shape = 'f32[64,128]{1,0:T(8,128)}', space=vmem, size = 0x8000, scoped, tag = 'scratch operand']
  %s0 = inlined_call_operand.vmem [shape: bf16[64,128], index: 0, kind: input, shape index: {}]
  %s1 = inlined_call_operand.vmem [shape: bf16[128,128], index: 1, kind: input, shape index: {}]
  %s2 = inlined_call_operand.vmem [shape: f32[1,128], index: 2, kind: input, shape index: {}]
  %s3 = inlined_call_operand.vmem [shape: bf16[64,128], index: 3, kind: output, shape index: {}]
  %s4 = sld [smem:[#allocation0]]
  $region30: #{_lambda_.19} parent=0
    _
  %s6 = ssub.s32 1, %s4
  %s7 = scalar_select 0, %s6, %s4
  // Predicated region
  $region2: #{_lambda_.19} parent=0 // pred_check
    _
  $region3: #{_lambda_.19} parent=0 // pred_check_branch
    %9 = sbr.rel (0) target = $region5
  $region4: #{_lambda_.19} parent=0 // pred_region
    _
  $region5: #{_lambda_.19} parent=0 // pred_fallthru
    _
  // Predicated region
  $region6: #{_lambda_.19} parent=0 // pred_check
    _
  $region7: #{_lambda_.19} parent=0 // pred_check_branch
    %11 = sbr.rel (0) target = $region9
  $region8: #{_lambda_.19} parent=0 // pred_region
    _
  $region9: #{_lambda_.19} parent=0 // pred_fallthru
    _
  // Predicated region
  $region10: #{_lambda_.19} parent=0 // pred_check
    _
  $region11: #{_lambda_.19} parent=0 // pred_check_branch
    %13 = sbr.rel (0) target = $region13
  $region12: #{_lambda_.19} parent=0 // pred_region
    _
  $region13: #{_lambda_.19} parent=0 // pred_fallthru
    _
  %p15 = scmp.eq.s32.totalorder 0, 0
  // Predicated region
  $region14: #{_lambda_.19} parent=0 // pred_check
    %p16 = pneg %p15
  $region15: #{_lambda_.19} parent=0 // pred_check_branch
    %18 = sbr.rel (%p16) target = $region17
  $region16: #{_lambda_.19} parent=0 // pred_region
    %19 = vst [vmem:[#allocation2] sm:$0xff] 0.0
    %20 = vst [vmem:[#allocation2 + $0x8] sm:$0xff] 0.0
    %21 = vst [vmem:[#allocation2 + $0x10] sm:$0xff] 0.0
    %22 = vst [vmem:[#allocation2 + $0x18] sm:$0xff] 0.0
    %23 = vst [vmem:[#allocation2 + $0x20] sm:$0xff] 0.0
    %24 = vst [vmem:[#allocation2 + $0x28] sm:$0xff] 0.0
    %25 = vst [vmem:[#allocation2 + $0x30] sm:$0xff] 0.0
    %26 = vst [vmem:[#allocation2 + $0x38] sm:$0xff] 0.0
  $region17: #{_lambda_.19} parent=0 // pred_fallthru
    _
  %v27 = vld [vmem:[%s0] sm:$0xf]
  %v28 = vld [vmem:[%s0 + $0x4] sm:$0xf]
  %v29 = vld [vmem:[%s0 + $0x8] sm:$0xf]
  %v30 = vld [vmem:[%s0 + $0xc] sm:$0xf]
  %v31 = vld [vmem:[%s0 + $0x10] sm:$0xf]
  %v32 = vld [vmem:[%s0 + $0x14] sm:$0xf]
  %v33 = vld [vmem:[%s0 + $0x18] sm:$0xf]
  %v34 = vld [vmem:[%s0 + $0x1c] sm:$0xf]
  %v35 = vld [vmem:[#allocation2] sm:$0xff]
  %v36 = vld [vmem:[#allocation2 + $0x8] sm:$0xff]
  %v37 = vld [vmem:[#allocation2 + $0x10] sm:$0xff]
  %v38 = vld [vmem:[#allocation2 + $0x18] sm:$0xff]
  %v39 = vld [vmem:[#allocation2 + $0x20] sm:$0xff]
  %v40 = vld [vmem:[#allocation2 + $0x28] sm:$0xff]
  %v41 = vld [vmem:[#allocation2 + $0x30] sm:$0xff]
  %v42 = vld [vmem:[#allocation2 + $0x38] sm:$0xff]
  %v43 = vld [vmem:[%s1] sm:$0xf]
  %v44 = vld [vmem:[%s1 + $0x4] sm:$0xf]
  %v45 = vld [vmem:[%s1 + $0x8] sm:$0xf]
  %v46 = vld [vmem:[%s1 + $0xc] sm:$0xf]
  %v47 = vld [vmem:[%s1 + $0x10] sm:$0xf]
  %v48 = vld [vmem:[%s1 + $0x14] sm:$0xf]
  %v49 = vld [vmem:[%s1 + $0x18] sm:$0xf]
  %v50 = vld [vmem:[%s1 + $0x1c] sm:$0xf]
  %v51 = vld [vmem:[%s1 + $0x20] sm:$0xf]
  %v52 = vld [vmem:[%s1 + $0x24] sm:$0xf]
  %v53 = vld [vmem:[%s1 + $0x28] sm:$0xf]
  %v54 = vld [vmem:[%s1 + $0x2c] sm:$0xf]
  %v55 = vld [vmem:[%s1 + $0x30] sm:$0xf]
  %v56 = vld [vmem:[%s1 + $0x34] sm:$0xf]
  %v57 = vld [vmem:[%s1 + $0x38] sm:$0xf]
  %v58 = vld [vmem:[%s1 + $0x3c] sm:$0xf]
  %v67 = vunpack.c.l.b16 %v27
  %v68 = vunpack.c.l.b16 %v28
  %v69 = vunpack.c.l.b16 %v29
  %v70 = vunpack.c.l.b16 %v30
  %v71 = vunpack.c.l.b16 %v31
  %v72 = vunpack.c.l.b16 %v32
  %v73 = vunpack.c.l.b16 %v33
  %v74 = vunpack.c.l.b16 %v34
  %v75 = vpack.c.b16 %v68, %v67
  %v76 = vpack.c.b16 %v70, %v69
  %v77 = vpack.c.b16 %v72, %v71
  %v78 = vpack.c.b16 %v74, %v73
  %v99 = vunpack.c.l.b16 %v43
  %v100 = vunpack.c.l.b16 %v44
  %v101 = vunpack.c.l.b16 %v45
  %v102 = vunpack.c.l.b16 %v46
  %v103 = vunpack.c.l.b16 %v47
  %v104 = vunpack.c.l.b16 %v48
  %v105 = vunpack.c.l.b16 %v49
  %v106 = vunpack.c.l.b16 %v50
  %v107 = vunpack.c.l.b16 %v51
  %v108 = vunpack.c.l.b16 %v52
  %v109 = vunpack.c.l.b16 %v53
  %v110 = vunpack.c.l.b16 %v54
  %v111 = vunpack.c.l.b16 %v55
  %v112 = vunpack.c.l.b16 %v56
  %v113 = vunpack.c.l.b16 %v57
  %v114 = vunpack.c.l.b16 %v58
  %v115 = vpack.c.b16 %v100, %v99
  %v116 = vpack.c.b16 %v102, %v101
  %v117 = vpack.c.b16 %v104, %v103
  %v118 = vpack.c.b16 %v106, %v105
  %v119 = vpack.c.b16 %v108, %v107
  %v120 = vpack.c.b16 %v110, %v109
  %v121 = vpack.c.b16 %v112, %v111
  %v122 = vpack.c.b16 %v114, %v113
  %131 = vmatprep.subr.bf16.mxu0 0
  %132 = vmatpush1.bf16.msra.mxu0 %v115
  %133 = vmatprep.subr.bf16.mxu0 0
  %134 = vmatpush1.bf16.msra.mxu0 %v116
  %135 = vmatprep.subr.bf16.mxu0 0
  %136 = vmatpush1.bf16.msra.mxu0 %v117
  %137 = vmatprep.subr.bf16.mxu0 0
  %138 = vmatpush1.bf16.msra.mxu0 %v118
  %139 = vmatprep.subr.bf16.mxu0 0
  %140 = vmatpush1.bf16.msra.mxu0 %v119
  %141 = vmatprep.subr.bf16.mxu0 0
  %142 = vmatpush1.bf16.msra.mxu0 %v120
  %143 = vmatprep.subr.bf16.mxu0 0
  %144 = vmatpush1.bf16.msra.mxu0 %v121
  %145 = vmatprep.subr.bf16.mxu0 0
  %146 = vmatpush1.bf16.msra.mxu0 %v122
  %147 = vmatprep.subr.bf16.mxu0 0
  %148 = vmatpush1.bf16.msra.mxu0 0
  %149 = vmatprep.subr.bf16.mxu0 0
  %150 = vmatpush1.bf16.msra.mxu0 0
  %151 = vmatprep.subr.bf16.mxu0 0
  %152 = vmatpush1.bf16.msra.mxu0 0
  %153 = vmatprep.subr.bf16.mxu0 0
  %154 = vmatpush1.bf16.msra.mxu0 0
  %155 = vmatprep.subr.bf16.mxu0 0
  %156 = vmatpush1.bf16.msra.mxu0 0
  %157 = vmatprep.subr.bf16.mxu0 0
  %158 = vmatpush1.bf16.msra.mxu0 0
  %159 = vmatprep.subr.bf16.mxu0 0
  %160 = vmatpush1.bf16.msra.mxu0 0
  %161 = vmatprep.subr.bf16.mxu0 0
  %162 = vmatpush1.bf16.msra.mxu0 0
  %163 = vmatprep.mubr.bf16.mxu0 0
  %164 = vmatmul.mubr.bf16.gmra.mrb[0].mxu0 %v75
  %v165 = vpop.f32.mrb[0].mxu0
  %v166 = vadd.f32 0.0, %v165
  %v167 = vpop.f32.mrb[0].mxu0
  %v168 = vpop.f32.mrb[0].mxu0
  %v169 = vadd.f32 0.0, %v168
  %v170 = vpop.f32.mrb[0].mxu0
  %171 = vmatprep.mubr.bf16.mxu0 0
  %172 = vmatmul.mubr.bf16.gmra.mrb[0].mxu0 %v76
  %v173 = vpop.f32.mrb[0].mxu0
  %v174 = vadd.f32 0.0, %v173
  %v175 = vpop.f32.mrb[0].mxu0
  %v176 = vpop.f32.mrb[0].mxu0
  %v177 = vadd.f32 0.0, %v176
  %v178 = vpop.f32.mrb[0].mxu0
  %179 = vmatprep.mubr.bf16.mxu0 0
  %180 = vmatmul.mubr.bf16.gmra.mrb[0].mxu0 %v77
  %v181 = vpop.f32.mrb[0].mxu0
  %v182 = vadd.f32 0.0, %v181
  %v183 = vpop.f32.mrb[0].mxu0
  %v184 = vpop.f32.mrb[0].mxu0
  %v185 = vadd.f32 0.0, %v184
  %v186 = vpop.f32.mrb[0].mxu0
  %187 = vmatprep.mubr.bf16.mxu0 0
  %188 = vmatmul.mubr.bf16.gmra.mrb[0].mxu0 %v78
  %v189 = vpop.f32.mrb[0].mxu0
  %v190 = vadd.f32 0.0, %v189
  %v191 = vpop.f32.mrb[0].mxu0
  %v192 = vpop.f32.mrb[0].mxu0
  %v193 = vadd.f32 0.0, %v192
  %v194 = vpop.f32.mrb[0].mxu0
  %195 = vdwg.mxu0
  %v196 = vadd.f32 %v35, %v166
  %v197 = vadd.f32 %v36, %v169
  %v198 = vadd.f32 %v37, %v174
  %v199 = vadd.f32 %v38, %v177
  %v200 = vadd.f32 %v39, %v182
  %v201 = vadd.f32 %v40, %v185
  %v202 = vadd.f32 %v41, %v190
  %v203 = vadd.f32 %v42, %v193
  %204 = vst [vmem:[#allocation2] sm:$0xff] %v196
  %205 = vst [vmem:[#allocation2 + $0x8] sm:$0xff] %v197
  %206 = vst [vmem:[#allocation2 + $0x10] sm:$0xff] %v198
  %207 = vst [vmem:[#allocation2 + $0x18] sm:$0xff] %v199
  %208 = vst [vmem:[#allocation2 + $0x20] sm:$0xff] %v200
  %209 = vst [vmem:[#allocation2 + $0x28] sm:$0xff] %v201
  %210 = vst [vmem:[#allocation2 + $0x30] sm:$0xff] %v202
  %211 = vst [vmem:[#allocation2 + $0x38] sm:$0xff] %v203
  // Predicated region
  $region18: #{_lambda_.19} parent=0 // pred_check
    %p212 = pneg %p15
  $region19: #{_lambda_.19} parent=0 // pred_check_branch
    %214 = sbr.rel (%p212) target = $region21
  $region20: #{_lambda_.19} parent=0 // pred_region
    %v215 = vld [vmem:[#allocation2] sm:$0xff]
    %v216 = vld [vmem:[#allocation2 + $0x8] sm:$0xff]
    %v217 = vld [vmem:[#allocation2 + $0x10] sm:$0xff]
    %v218 = vld [vmem:[#allocation2 + $0x18] sm:$0xff]
    %v219 = vld [vmem:[#allocation2 + $0x20] sm:$0xff]
    %v220 = vld [vmem:[#allocation2 + $0x28] sm:$0xff]
    %v221 = vld [vmem:[#allocation2 + $0x30] sm:$0xff]
    %v222 = vld [vmem:[#allocation2 + $0x38] sm:$0xff]
    %v223 = vld [vmem:[%s2] sm:$0x1]
    %v225 = vlaneseq
    %v226 = vshrl.u32 %v225, 7
    %v227 = vsub.s32 0, %v226
    %v228 = vrot.slane %v223, %v227
    %v230 = vadd.f32 %v215, %v228
    %v231 = vadd.f32 %v216, %v228
    %v232 = vadd.f32 %v217, %v228
    %v233 = vadd.f32 %v218, %v228
    %v234 = vadd.f32 %v219, %v228
    %v235 = vadd.f32 %v220, %v228
    %v236 = vadd.f32 %v221, %v228
    %v237 = vadd.f32 %v222, %v228
    %v238 = vpack.c.bf16 %v231, %v230
    %v239 = vpack.c.bf16 %v233, %v232
    %v240 = vpack.c.bf16 %v235, %v234
    %v241 = vpack.c.bf16 %v237, %v236
    %v246 = vunpack.c.l.b16 %v238
    %v247 = vunpack.c.h.b16 %v238
    %v248 = vunpack.c.l.b16 %v239
    %v249 = vunpack.c.h.b16 %v239
    %v250 = vunpack.c.l.b16 %v240
    %v251 = vunpack.c.h.b16 %v240
    %v252 = vunpack.c.l.b16 %v241
    %v253 = vunpack.c.h.b16 %v241
    %v254 = vpack.c.b16 %v246, %v246
    %v255 = vpack.c.b16 %v247, %v247
    %v256 = vpack.c.b16 %v248, %v248
    %v257 = vpack.c.b16 %v249, %v249
    %v258 = vpack.c.b16 %v250, %v250
    %v259 = vpack.c.b16 %v251, %v251
    %v260 = vpack.c.b16 %v252, %v252
    %v261 = vpack.c.b16 %v253, %v253
    %270 = vst [vmem:[%s3] sm:$0xf] %v254
    %271 = vst [vmem:[%s3 + $0x4] sm:$0xf] %v255
    %272 = vst [vmem:[%s3 + $0x8] sm:$0xf] %v256
    %273 = vst [vmem:[%s3 + $0xc] sm:$0xf] %v257
    %274 = vst [vmem:[%s3 + $0x10] sm:$0xf] %v258
    %275 = vst [vmem:[%s3 + $0x14] sm:$0xf] %v259
    %276 = vst [vmem:[%s3 + $0x18] sm:$0xf] %v260
    %277 = vst [vmem:[%s3 + $0x1c] sm:$0xf] %v261
  $region21: #{_lambda_.19} parent=0 // pred_fallthru
    _
  // Predicated region
  $region22: #{_lambda_.19} parent=0 // pred_check
    _
  $region23: #{_lambda_.19} parent=0 // pred_check_branch
    %279 = sbr.rel (0) target = $region25
  $region24: #{_lambda_.19} parent=0 // pred_region
    _
  $region25: #{_lambda_.19} parent=0 // pred_fallthru
    _
  // Predicated region
  $region26: #{_lambda_.19} parent=0 // pred_check
    _
  $region27: #{_lambda_.19} parent=0 // pred_check_branch
    %281 = sbr.rel (0) target = $region29
  $region28: #{_lambda_.19} parent=0 // pred_region
    _
  $region29: #{_lambda_.19} parent=0 // pred_fallthru
    _

// kernel: _lambda_.20
$region0: #{_lambda_.20}
  #allocation0 [shape = 'u32[]', space=smem, size = 0x4, offset = 0x4, fixed_abs, tag = 'smem constant byte address 0x4 - core index']
  #allocation1 [shape = 'u32[144,128]{1,0:T(1,128)}', space=vmem, size = 0x12000, scoped, tag = 'internal scratch']
  #allocation2 [shape = 'f32[64,128]{1,0:T(8,128)}', space=vmem, size = 0x8000, scoped, tag = 'scratch operand']
  %s0 = inlined_call_operand.vmem [shape: bf16[64,256], index: 0, kind: input, shape index: {}]
  %s1 = inlined_call_operand.vmem [shape: bf16[256,128], index: 1, kind: input, shape index: {}]
  %s2 = inlined_call_operand.vmem [shape: f32[1,128], index: 2, kind: input, shape index: {}]
  %s3 = inlined_call_operand.vmem [shape: bf16[64,128], index: 3, kind: input, shape index: {}]
  %s4 = inlined_call_operand.vmem [shape: bf16[64,128], index: 4, kind: output, shape index: {}]
  %s5 = sld [smem:[#allocation0]]
  $region34: #{_lambda_.20} parent=0
    _
  %s7 = ssub.s32 1, %s5
  %s8 = scalar_select 0, %s7, %s5
  // Predicated region
  $region2: #{_lambda_.20} parent=0 // pred_check
    _
  $region3: #{_lambda_.20} parent=0 // pred_check_branch
    %10 = sbr.rel (0) target = $region5
  $region4: #{_lambda_.20} parent=0 // pred_region
    _
  $region5: #{_lambda_.20} parent=0 // pred_fallthru
    _
  // Predicated region
  $region6: #{_lambda_.20} parent=0 // pred_check
    _
  $region7: #{_lambda_.20} parent=0 // pred_check_branch
    %12 = sbr.rel (0) target = $region9
  $region8: #{_lambda_.20} parent=0 // pred_region
    _
  $region9: #{_lambda_.20} parent=0 // pred_fallthru
    _
  // Predicated region
  $region10: #{_lambda_.20} parent=0 // pred_check
    _
  $region11: #{_lambda_.20} parent=0 // pred_check_branch
    %14 = sbr.rel (0) target = $region13
  $region12: #{_lambda_.20} parent=0 // pred_region
    _
  $region13: #{_lambda_.20} parent=0 // pred_fallthru
    _
  // Predicated region
  $region14: #{_lambda_.20} parent=0 // pred_check
    _
  $region15: #{_lambda_.20} parent=0 // pred_check_branch
    %16 = sbr.rel (0) target = $region17
  $region16: #{_lambda_.20} parent=0 // pred_region
    _
  $region17: #{_lambda_.20} parent=0 // pred_fallthru
    _
  %p18 = scmp.eq.s32.totalorder 0, 0
  // Predicated region
  $region18: #{_lambda_.20} parent=0 // pred_check
    %p19 = pneg %p18
  $region19: #{_lambda_.20} parent=0 // pred_check_branch
    %21 = sbr.rel (%p19) target = $region21
  $region20: #{_lambda_.20} parent=0 // pred_region
    %22 = vst [vmem:[#allocation2] sm:$0xff] 0.0
    %23 = vst [vmem:[#allocation2 + $0x8] sm:$0xff] 0.0
    %24 = vst [vmem:[#allocation2 + $0x10] sm:$0xff] 0.0
    %25 = vst [vmem:[#allocation2 + $0x18] sm:$0xff] 0.0
    %26 = vst [vmem:[#allocation2 + $0x20] sm:$0xff] 0.0
    %27 = vst [vmem:[#allocation2 + $0x28] sm:$0xff] 0.0
    %28 = vst [vmem:[#allocation2 + $0x30] sm:$0xff] 0.0
    %29 = vst [vmem:[#allocation2 + $0x38] sm:$0xff] 0.0
  $region21: #{_lambda_.20} parent=0 // pred_fallthru
    _
  %v30 = vld [vmem:[%s0] sm:$0xff]
  %v31 = vld [vmem:[%s0 + $0x8] sm:$0xff]
  %v32 = vld [vmem:[%s0 + $0x10] sm:$0xff]
  %v33 = vld [vmem:[%s0 + $0x18] sm:$0xff]
  %v34 = vld [vmem:[%s0 + $0x20] sm:$0xff]
  %v35 = vld [vmem:[%s0 + $0x28] sm:$0xff]
  %v36 = vld [vmem:[%s0 + $0x30] sm:$0xff]
  %v37 = vld [vmem:[%s0 + $0x38] sm:$0xff]
  %v38 = vld [vmem:[#allocation2] sm:$0xff]
  %v39 = vld [vmem:[#allocation2 + $0x8] sm:$0xff]
  %v40 = vld [vmem:[#allocation2 + $0x10] sm:$0xff]
  %v41 = vld [vmem:[#allocation2 + $0x18] sm:$0xff]
  %v42 = vld [vmem:[#allocation2 + $0x20] sm:$0xff]
  %v43 = vld [vmem:[#allocation2 + $0x28] sm:$0xff]
  %v44 = vld [vmem:[#allocation2 + $0x30] sm:$0xff]
  %v45 = vld [vmem:[#allocation2 + $0x38] sm:$0xff]
  %v46 = vld [vmem:[%s1] sm:$0xf]
  %v47 = vld [vmem:[%s1 + $0x4] sm:$0xf]
  %v48 = vld [vmem:[%s1 + $0x8] sm:$0xf]
  %v49 = vld [vmem:[%s1 + $0xc] sm:$0xf]
  %v50 = vld [vmem:[%s1 + $0x10] sm:$0xf]
  %v51 = vld [vmem:[%s1 + $0x14] sm:$0xf]
  %v52 = vld [vmem:[%s1 + $0x18] sm:$0xf]
  %v53 = vld [vmem:[%s1 + $0x1c] sm:$0xf]
  %v54 = vld [vmem:[%s1 + $0x20] sm:$0xf]
  %v55 = vld [vmem:[%s1 + $0x24] sm:$0xf]
  %v56 = vld [vmem:[%s1 + $0x28] sm:$0xf]
  %v57 = vld [vmem:[%s1 + $0x2c] sm:$0xf]
  %v58 = vld [vmem:[%s1 + $0x30] sm:$0xf]
  %v59 = vld [vmem:[%s1 + $0x34] sm:$0xf]
  %v60 = vld [vmem:[%s1 + $0x38] sm:$0xf]
  %v61 = vld [vmem:[%s1 + $0x3c] sm:$0xf]
  %v62 = vld [vmem:[%s1 + $0x40] sm:$0xf]
  %v63 = vld [vmem:[%s1 + $0x44] sm:$0xf]
  %v64 = vld [vmem:[%s1 + $0x48] sm:$0xf]
  %v65 = vld [vmem:[%s1 + $0x4c] sm:$0xf]
  %v66 = vld [vmem:[%s1 + $0x50] sm:$0xf]
  %v67 = vld [vmem:[%s1 + $0x54] sm:$0xf]
  %v68 = vld [vmem:[%s1 + $0x58] sm:$0xf]
  %v69 = vld [vmem:[%s1 + $0x5c] sm:$0xf]
  %v70 = vld [vmem:[%s1 + $0x60] sm:$0xf]
  %v71 = vld [vmem:[%s1 + $0x64] sm:$0xf]
  %v72 = vld [vmem:[%s1 + $0x68] sm:$0xf]
  %v73 = vld [vmem:[%s1 + $0x6c] sm:$0xf]
  %v74 = vld [vmem:[%s1 + $0x70] sm:$0xf]
  %v75 = vld [vmem:[%s1 + $0x74] sm:$0xf]
  %v76 = vld [vmem:[%s1 + $0x78] sm:$0xf]
  %v77 = vld [vmem:[%s1 + $0x7c] sm:$0xf]
  %v86 = vunpack.c.l.b16 %v30
  %v87 = vunpack.c.h.b16 %v30
  %v88 = vunpack.c.l.b16 %v31
  %v89 = vunpack.c.h.b16 %v31
  %v90 = vunpack.c.l.b16 %v32
  %v91 = vunpack.c.h.b16 %v32
  %v92 = vunpack.c.l.b16 %v33
  %v93 = vunpack.c.h.b16 %v33
  %v94 = vunpack.c.l.b16 %v34
  %v95 = vunpack.c.h.b16 %v34
  %v96 = vunpack.c.l.b16 %v35
  %v97 = vunpack.c.h.b16 %v35
  %v98 = vunpack.c.l.b16 %v36
  %v99 = vunpack.c.h.b16 %v36
  %v100 = vunpack.c.l.b16 %v37
  %v101 = vunpack.c.h.b16 %v37
  %v102 = vpack.c.b16 %v88, %v86
  %v103 = vpack.c.b16 %v89, %v87
  %v104 = vpack.c.b16 %v92, %v90
  %v105 = vpack.c.b16 %v93, %v91
  %v106 = vpack.c.b16 %v96, %v94
  %v107 = vpack.c.b16 %v97, %v95
  %v108 = vpack.c.b16 %v100, %v98
  %v109 = vpack.c.b16 %v101, %v99
  %v150 = vunpack.c.l.b16 %v46
  %v151 = vunpack.c.l.b16 %v47
  %v152 = vunpack.c.l.b16 %v48
  %v153 = vunpack.c.l.b16 %v49
  %v154 = vunpack.c.l.b16 %v50
  %v155 = vunpack.c.l.b16 %v51
  %v156 = vunpack.c.l.b16 %v52
  %v157 = vunpack.c.l.b16 %v53
  %v158 = vunpack.c.l.b16 %v54
  %v159 = vunpack.c.l.b16 %v55
  %v160 = vunpack.c.l.b16 %v56
  %v161 = vunpack.c.l.b16 %v57
  %v162 = vunpack.c.l.b16 %v58
  %v163 = vunpack.c.l.b16 %v59
  %v164 = vunpack.c.l.b16 %v60
  %v165 = vunpack.c.l.b16 %v61
  %v166 = vunpack.c.l.b16 %v62
  %v167 = vunpack.c.l.b16 %v63
  %v168 = vunpack.c.l.b16 %v64
  %v169 = vunpack.c.l.b16 %v65
  %v170 = vunpack.c.l.b16 %v66
  %v171 = vunpack.c.l.b16 %v67
  %v172 = vunpack.c.l.b16 %v68
  %v173 = vunpack.c.l.b16 %v69
  %v174 = vunpack.c.l.b16 %v70
  %v175 = vunpack.c.l.b16 %v71
  %v176 = vunpack.c.l.b16 %v72
  %v177 = vunpack.c.l.b16 %v73
  %v178 = vunpack.c.l.b16 %v74
  %v179 = vunpack.c.l.b16 %v75
  %v180 = vunpack.c.l.b16 %v76
  %v181 = vunpack.c.l.b16 %v77
  %v182 = vpack.c.b16 %v151, %v150
  %v183 = vpack.c.b16 %v153, %v152
  %v184 = vpack.c.b16 %v155, %v154
  %v185 = vpack.c.b16 %v157, %v156
  %v186 = vpack.c.b16 %v159, %v158
  %v187 = vpack.c.b16 %v161, %v160
  %v188 = vpack.c.b16 %v163, %v162
  %v189 = vpack.c.b16 %v165, %v164
  %v190 = vpack.c.b16 %v167, %v166
  %v191 = vpack.c.b16 %v169, %v168
  %v192 = vpack.c.b16 %v171, %v170
  %v193 = vpack.c.b16 %v173, %v172
  %v194 = vpack.c.b16 %v175, %v174
  %v195 = vpack.c.b16 %v177, %v176
  %v196 = vpack.c.b16 %v179, %v178
  %v197 = vpack.c.b16 %v181, %v180
  %214 = vmatprep.subr.bf16.mxu0 0
  %215 = vmatpush1.bf16.msra.mxu0 %v182
  %216 = vmatprep.subr.bf16.mxu0 0
  %217 = vmatpush1.bf16.msra.mxu0 %v183
  %218 = vmatprep.subr.bf16.mxu0 0
  %219 = vmatpush1.bf16.msra.mxu0 %v184
  %220 = vmatprep.subr.bf16.mxu0 0
  %221 = vmatpush1.bf16.msra.mxu0 %v185
  %222 = vmatprep.subr.bf16.mxu0 0
  %223 = vmatpush1.bf16.msra.mxu0 %v186
  %224 = vmatprep.subr.bf16.mxu0 0
  %225 = vmatpush1.bf16.msra.mxu0 %v187
  %226 = vmatprep.subr.bf16.mxu0 0
  %227 = vmatpush1.bf16.msra.mxu0 %v188
  %228 = vmatprep.subr.bf16.mxu0 0
  %229 = vmatpush1.bf16.msra.mxu0 %v189
  %230 = vmatprep.subr.bf16.mxu0 0
  %231 = vmatpush1.bf16.msra.mxu0 %v190
  %232 = vmatprep.subr.bf16.mxu0 0
  %233 = vmatpush1.bf16.msra.mxu0 %v191
  %234 = vmatprep.subr.bf16.mxu0 0
  %235 = vmatpush1.bf16.msra.mxu0 %v192
  %236 = vmatprep.subr.bf16.mxu0 0
  %237 = vmatpush1.bf16.msra.mxu0 %v193
  %238 = vmatprep.subr.bf16.mxu0 0
  %239 = vmatpush1.bf16.msra.mxu0 %v194
  %240 = vmatprep.subr.bf16.mxu0 0
  %241 = vmatpush1.bf16.msra.mxu0 %v195
  %242 = vmatprep.subr.bf16.mxu0 0
  %243 = vmatpush1.bf16.msra.mxu0 %v196
  %244 = vmatprep.subr.bf16.mxu0 0
  %245 = vmatpush1.bf16.msra.mxu0 %v197
  %246 = vmatprep.mubr.bf16.mxu0 %v103
  %247 = vmatmul.mubr.bf16.gmra.mrb[0].mxu0 %v102
  %v248 = vpop.f32.mrb[0].mxu0
  %v249 = vadd.f32 0.0, %v248
  %v250 = vpop.f32.mrb[0].mxu0
  %v251 = vpop.f32.mrb[0].mxu0
  %v252 = vadd.f32 0.0, %v251
  %v253 = vpop.f32.mrb[0].mxu0
  %254 = vmatprep.mubr.bf16.mxu0 %v105
  %255 = vmatmul.mubr.bf16.gmra.mrb[0].mxu0 %v104
  %v256 = vpop.f32.mrb[0].mxu0
  %v257 = vadd.f32 0.0, %v256
  %v258 = vpop.f32.mrb[0].mxu0
  %v259 = vpop.f32.mrb[0].mxu0
  %v260 = vadd.f32 0.0, %v259
  %v261 = vpop.f32.mrb[0].mxu0
  %262 = vmatprep.mubr.bf16.mxu0 %v107
  %263 = vmatmul.mubr.bf16.gmra.mrb[0].mxu0 %v106
  %v264 = vpop.f32.mrb[0].mxu0
  %v265 = vadd.f32 0.0, %v264
  %v266 = vpop.f32.mrb[0].mxu0
  %v267 = vpop.f32.mrb[0].mxu0
  %v268 = vadd.f32 0.0, %v267
  %v269 = vpop.f32.mrb[0].mxu0
  %270 = vmatprep.mubr.bf16.mxu0 %v109
  %271 = vmatmul.mubr.bf16.gmra.mrb[0].mxu0 %v108
  %v272 = vpop.f32.mrb[0].mxu0
  %v273 = vadd.f32 0.0, %v272
  %v274 = vpop.f32.mrb[0].mxu0
  %v275 = vpop.f32.mrb[0].mxu0
  %v276 = vadd.f32 0.0, %v275
  %v277 = vpop.f32.mrb[0].mxu0
  %278 = vdwg.mxu0
  %v279 = vadd.f32 %v38, %v249
  %v280 = vadd.f32 %v39, %v252
  %v281 = vadd.f32 %v40, %v257
  %v282 = vadd.f32 %v41, %v260
  %v283 = vadd.f32 %v42, %v265
  %v284 = vadd.f32 %v43, %v268
  %v285 = vadd.f32 %v44, %v273
  %v286 = vadd.f32 %v45, %v276
  %287 = vst [vmem:[#allocation2] sm:$0xff] %v279
  %288 = vst [vmem:[#allocation2 + $0x8] sm:$0xff] %v280
  %289 = vst [vmem:[#allocation2 + $0x10] sm:$0xff] %v281
  %290 = vst [vmem:[#allocation2 + $0x18] sm:$0xff] %v282
  %291 = vst [vmem:[#allocation2 + $0x20] sm:$0xff] %v283
  %292 = vst [vmem:[#allocation2 + $0x28] sm:$0xff] %v284
  %293 = vst [vmem:[#allocation2 + $0x30] sm:$0xff] %v285
  %294 = vst [vmem:[#allocation2 + $0x38] sm:$0xff] %v286
  // Predicated region
  $region22: #{_lambda_.20} parent=0 // pred_check
    %p295 = pneg %p18
  $region23: #{_lambda_.20} parent=0 // pred_check_branch
    %297 = sbr.rel (%p295) target = $region25
  $region24: #{_lambda_.20} parent=0 // pred_region
    %v298 = vld [vmem:[#allocation2] sm:$0xff]
    %v299 = vld [vmem:[#allocation2 + $0x8] sm:$0xff]
    %v300 = vld [vmem:[#allocation2 + $0x10] sm:$0xff]
    %v301 = vld [vmem:[#allocation2 + $0x18] sm:$0xff]
    %v302 = vld [vmem:[#allocation2 + $0x20] sm:$0xff]
    %v303 = vld [vmem:[#allocation2 + $0x28] sm:$0xff]
    %v304 = vld [vmem:[#allocation2 + $0x30] sm:$0xff]
    %v305 = vld [vmem:[#allocation2 + $0x38] sm:$0xff]
    %v306 = vld [vmem:[%s2] sm:$0x1]
    %v308 = vlaneseq
    %v309 = vshrl.u32 %v308, 7
    %v310 = vsub.s32 0, %v309
    %v311 = vrot.slane %v306, %v310
    %v313 = vadd.f32 %v298, %v311
    %v314 = vadd.f32 %v299, %v311
    %v315 = vadd.f32 %v300, %v311
    %v316 = vadd.f32 %v301, %v311
    %v317 = vadd.f32 %v302, %v311
    %v318 = vadd.f32 %v303, %v311
    %v319 = vadd.f32 %v304, %v311
    %v320 = vadd.f32 %v305, %v311
    %v321 = vld [vmem:[%s3] sm:$0xf]
    %v322 = vld [vmem:[%s3 + $0x4] sm:$0xf]
    %v323 = vld [vmem:[%s3 + $0x8] sm:$0xf]
    %v324 = vld [vmem:[%s3 + $0xc] sm:$0xf]
    %v325 = vld [vmem:[%s3 + $0x10] sm:$0xf]
    %v326 = vld [vmem:[%s3 + $0x14] sm:$0xf]
    %v327 = vld [vmem:[%s3 + $0x18] sm:$0xf]
    %v328 = vld [vmem:[%s3 + $0x1c] sm:$0xf]
    %v329 = vunpack.c.l.bf16 %v321
    %v330 = vunpack.c.l.bf16 %v322
    %v331 = vunpack.c.l.bf16 %v323
    %v332 = vunpack.c.l.bf16 %v324
    %v333 = vunpack.c.l.bf16 %v325
    %v334 = vunpack.c.l.bf16 %v326
    %v335 = vunpack.c.l.bf16 %v327
    %v336 = vunpack.c.l.bf16 %v328
    %v337 = vadd.f32 %v313, %v329
    %v338 = vadd.f32 %v314, %v330
    %v339 = vadd.f32 %v315, %v331
    %v340 = vadd.f32 %v316, %v332
    %v341 = vadd.f32 %v317, %v333
    %v342 = vadd.f32 %v318, %v334
    %v343 = vadd.f32 %v319, %v335
    %v344 = vadd.f32 %v320, %v336
    %v345 = vmax.f32 %v337, 0.0
    %v346 = vmax.f32 %v338, 0.0
    %v347 = vmax.f32 %v339, 0.0
    %v348 = vmax.f32 %v340, 0.0
    %v349 = vmax.f32 %v341, 0.0
    %v350 = vmax.f32 %v342, 0.0
    %v351 = vmax.f32 %v343, 0.0
    %v352 = vmax.f32 %v344, 0.0
    %v353 = vpack.c.bf16 %v346, %v345
    %v354 = vpack.c.bf16 %v348, %v347
    %v355 = vpack.c.bf16 %v350, %v349
    %v356 = vpack.c.bf16 %v352, %v351
    %v361 = vunpack.c.l.b16 %v353
    %v362 = vunpack.c.h.b16 %v353
    %v363 = vunpack.c.l.b16 %v354
    %v364 = vunpack.c.h.b16 %v354
    %v365 = vunpack.c.l.b16 %v355
    %v366 = vunpack.c.h.b16 %v355
    %v367 = vunpack.c.l.b16 %v356
    %v368 = vunpack.c.h.b16 %v356
    %v369 = vpack.c.b16 %v361, %v361
    %v370 = vpack.c.b16 %v362, %v362
    %v371 = vpack.c.b16 %v363, %v363
    %v372 = vpack.c.b16 %v364, %v364
    %v373 = vpack.c.b16 %v365, %v365
    %v374 = vpack.c.b16 %v366, %v366
    %v375 = vpack.c.b16 %v367, %v367
    %v376 = vpack.c.b16 %v368, %v368
    %385 = vst [vmem:[%s4] sm:$0xf] %v369
    %386 = vst [vmem:[%s4 + $0x4] sm:$0xf] %v370
    %387 = vst [vmem:[%s4 + $0x8] sm:$0xf] %v371
    %388 = vst [vmem:[%s4 + $0xc] sm:$0xf] %v372
    %389 = vst [vmem:[%s4 + $0x10] sm:$0xf] %v373
    %390 = vst [vmem:[%s4 + $0x14] sm:$0xf] %v374
    %391 = vst [vmem:[%s4 + $0x18] sm:$0xf] %v375
    %392 = vst [vmem:[%s4 + $0x1c] sm:$0xf] %v376
  $region25: #{_lambda_.20} parent=0 // pred_fallthru
    _
  // Predicated region
  $region26: #{_lambda_.20} parent=0 // pred_check
    _
  $region27: #{_lambda_.20} parent=0 // pred_check_branch
    %394 = sbr.rel (0) target = $region29
  $region28: #{_lambda_.20} parent=0 // pred_region
    _
  $region29: #{_lambda_.20} parent=0 // pred_fallthru
    _
  // Predicated region
  $region30: #{_lambda_.20} parent=0 // pred_check
    _
  $region31: #{_lambda_.20} parent=0 // pred_check_branch
    %396 = sbr.rel (0) target = $region33
  $region32: #{_lambda_.20} parent=0 // pred_region
    _
  $region33: #{_lambda_.20} parent=0 // pred_fallthru
    _

// kernel: _lambda_.21
$region0: #{_lambda_.21}
  #allocation0 [shape = 'u32[]', space=smem, size = 0x4, offset = 0x4, fixed_abs, tag = 'smem constant byte address 0x4 - core index']
  #allocation1 [shape = 'u32[144,128]{1,0:T(1,128)}', space=vmem, size = 0x12000, scoped, tag = 'internal scratch']
  #allocation2 [shape = 'f32[16,128]{1,0:T(8,128)}', space=vmem, size = 0x2000, scoped, tag = 'scratch operand']
  %s0 = inlined_call_operand.vmem [shape: bf16[16,256], index: 0, kind: input, shape index: {}]
  %s1 = inlined_call_operand.vmem [shape: bf16[256,128], index: 1, kind: input, shape index: {}]
  %s2 = inlined_call_operand.vmem [shape: f32[1,128], index: 2, kind: input, shape index: {}]
  %s3 = inlined_call_operand.vmem [shape: bf16[16,128], index: 3, kind: output, shape index: {}]
  %s4 = sld [smem:[#allocation0]]
  $region30: #{_lambda_.21} parent=0
    _
  %s6 = ssub.s32 1, %s4
  %s7 = scalar_select 0, %s6, %s4
  // Predicated region
  $region2: #{_lambda_.21} parent=0 // pred_check
    _
  $region3: #{_lambda_.21} parent=0 // pred_check_branch
    %9 = sbr.rel (0) target = $region5
  $region4: #{_lambda_.21} parent=0 // pred_region
    _
  $region5: #{_lambda_.21} parent=0 // pred_fallthru
    _
  // Predicated region
  $region6: #{_lambda_.21} parent=0 // pred_check
    _
  $region7: #{_lambda_.21} parent=0 // pred_check_branch
    %11 = sbr.rel (0) target = $region9
  $region8: #{_lambda_.21} parent=0 // pred_region
    _
  $region9: #{_lambda_.21} parent=0 // pred_fallthru
    _
  // Predicated region
  $region10: #{_lambda_.21} parent=0 // pred_check
    _
  $region11: #{_lambda_.21} parent=0 // pred_check_branch
    %13 = sbr.rel (0) target = $region13
  $region12: #{_lambda_.21} parent=0 // pred_region
    _
  $region13: #{_lambda_.21} parent=0 // pred_fallthru
    _
  %p15 = scmp.eq.s32.totalorder 0, 0
  // Predicated region
  $region14: #{_lambda_.21} parent=0 // pred_check
    %p16 = pneg %p15
  $region15: #{_lambda_.21} parent=0 // pred_check_branch
    %18 = sbr.rel (%p16) target = $region17
  $region16: #{_lambda_.21} parent=0 // pred_region
    %19 = vst [vmem:[#allocation2] sm:$0xff] 0.0
    %20 = vst [vmem:[#allocation2 + $0x8] sm:$0xff] 0.0
  $region17: #{_lambda_.21} parent=0 // pred_fallthru
    _
  %v21 = vld [vmem:[%s0] sm:$0xff]
  %v22 = vld [vmem:[%s0 + $0x8] sm:$0xff]
  %v23 = vld [vmem:[#allocation2] sm:$0xff]
  %v24 = vld [vmem:[#allocation2 + $0x8] sm:$0xff]
  %v25 = vld [vmem:[%s1] sm:$0xf]
  %v26 = vld [vmem:[%s1 + $0x4] sm:$0xf]
  %v27 = vld [vmem:[%s1 + $0x8] sm:$0xf]
  %v28 = vld [vmem:[%s1 + $0xc] sm:$0xf]
  %v29 = vld [vmem:[%s1 + $0x10] sm:$0xf]
  %v30 = vld [vmem:[%s1 + $0x14] sm:$0xf]
  %v31 = vld [vmem:[%s1 + $0x18] sm:$0xf]
  %v32 = vld [vmem:[%s1 + $0x1c] sm:$0xf]
  %v33 = vld [vmem:[%s1 + $0x20] sm:$0xf]
  %v34 = vld [vmem:[%s1 + $0x24] sm:$0xf]
  %v35 = vld [vmem:[%s1 + $0x28] sm:$0xf]
  %v36 = vld [vmem:[%s1 + $0x2c] sm:$0xf]
  %v37 = vld [vmem:[%s1 + $0x30] sm:$0xf]
  %v38 = vld [vmem:[%s1 + $0x34] sm:$0xf]
  %v39 = vld [vmem:[%s1 + $0x38] sm:$0xf]
  %v40 = vld [vmem:[%s1 + $0x3c] sm:$0xf]
  %v41 = vld [vmem:[%s1 + $0x40] sm:$0xf]
  %v42 = vld [vmem:[%s1 + $0x44] sm:$0xf]
  %v43 = vld [vmem:[%s1 + $0x48] sm:$0xf]
  %v44 = vld [vmem:[%s1 + $0x4c] sm:$0xf]
  %v45 = vld [vmem:[%s1 + $0x50] sm:$0xf]
  %v46 = vld [vmem:[%s1 + $0x54] sm:$0xf]
  %v47 = vld [vmem:[%s1 + $0x58] sm:$0xf]
  %v48 = vld [vmem:[%s1 + $0x5c] sm:$0xf]
  %v49 = vld [vmem:[%s1 + $0x60] sm:$0xf]
  %v50 = vld [vmem:[%s1 + $0x64] sm:$0xf]
  %v51 = vld [vmem:[%s1 + $0x68] sm:$0xf]
  %v52 = vld [vmem:[%s1 + $0x6c] sm:$0xf]
  %v53 = vld [vmem:[%s1 + $0x70] sm:$0xf]
  %v54 = vld [vmem:[%s1 + $0x74] sm:$0xf]
  %v55 = vld [vmem:[%s1 + $0x78] sm:$0xf]
  %v56 = vld [vmem:[%s1 + $0x7c] sm:$0xf]
  %v59 = vunpack.c.l.b16 %v21
  %v60 = vunpack.c.h.b16 %v21
  %v61 = vunpack.c.l.b16 %v22
  %v62 = vunpack.c.h.b16 %v22
  %v63 = vpack.c.b16 %v61, %v59
  %v64 = vpack.c.b16 %v62, %v60
  %v99 = vunpack.c.l.b16 %v25
  %v100 = vunpack.c.l.b16 %v26
  %v101 = vunpack.c.l.b16 %v27
  %v102 = vunpack.c.l.b16 %v28
  %v103 = vunpack.c.l.b16 %v29
  %v104 = vunpack.c.l.b16 %v30
  %v105 = vunpack.c.l.b16 %v31
  %v106 = vunpack.c.l.b16 %v32
  %v107 = vunpack.c.l.b16 %v33
  %v108 = vunpack.c.l.b16 %v34
  %v109 = vunpack.c.l.b16 %v35
  %v110 = vunpack.c.l.b16 %v36
  %v111 = vunpack.c.l.b16 %v37
  %v112 = vunpack.c.l.b16 %v38
  %v113 = vunpack.c.l.b16 %v39
  %v114 = vunpack.c.l.b16 %v40
  %v115 = vunpack.c.l.b16 %v41
  %v116 = vunpack.c.l.b16 %v42
  %v117 = vunpack.c.l.b16 %v43
  %v118 = vunpack.c.l.b16 %v44
  %v119 = vunpack.c.l.b16 %v45
  %v120 = vunpack.c.l.b16 %v46
  %v121 = vunpack.c.l.b16 %v47
  %v122 = vunpack.c.l.b16 %v48
  %v123 = vunpack.c.l.b16 %v49
  %v124 = vunpack.c.l.b16 %v50
  %v125 = vunpack.c.l.b16 %v51
  %v126 = vunpack.c.l.b16 %v52
  %v127 = vunpack.c.l.b16 %v53
  %v128 = vunpack.c.l.b16 %v54
  %v129 = vunpack.c.l.b16 %v55
  %v130 = vunpack.c.l.b16 %v56
  %v131 = vpack.c.b16 %v100, %v99
  %v132 = vpack.c.b16 %v102, %v101
  %v133 = vpack.c.b16 %v104, %v103
  %v134 = vpack.c.b16 %v106, %v105
  %v135 = vpack.c.b16 %v108, %v107
  %v136 = vpack.c.b16 %v110, %v109
  %v137 = vpack.c.b16 %v112, %v111
  %v138 = vpack.c.b16 %v114, %v113
  %v139 = vpack.c.b16 %v116, %v115
  %v140 = vpack.c.b16 %v118, %v117
  %v141 = vpack.c.b16 %v120, %v119
  %v142 = vpack.c.b16 %v122, %v121
  %v143 = vpack.c.b16 %v124, %v123
  %v144 = vpack.c.b16 %v126, %v125
  %v145 = vpack.c.b16 %v128, %v127
  %v146 = vpack.c.b16 %v130, %v129
  %163 = vmatprep.subr.bf16.mxu0 0
  %164 = vmatpush1.bf16.msra.mxu0 %v131
  %165 = vmatprep.subr.bf16.mxu0 0
  %166 = vmatpush1.bf16.msra.mxu0 %v132
  %167 = vmatprep.subr.bf16.mxu0 0
  %168 = vmatpush1.bf16.msra.mxu0 %v133
  %169 = vmatprep.subr.bf16.mxu0 0
  %170 = vmatpush1.bf16.msra.mxu0 %v134
  %171 = vmatprep.subr.bf16.mxu0 0
  %172 = vmatpush1.bf16.msra.mxu0 %v135
  %173 = vmatprep.subr.bf16.mxu0 0
  %174 = vmatpush1.bf16.msra.mxu0 %v136
  %175 = vmatprep.subr.bf16.mxu0 0
  %176 = vmatpush1.bf16.msra.mxu0 %v137
  %177 = vmatprep.subr.bf16.mxu0 0
  %178 = vmatpush1.bf16.msra.mxu0 %v138
  %179 = vmatprep.subr.bf16.mxu0 0
  %180 = vmatpush1.bf16.msra.mxu0 %v139
  %181 = vmatprep.subr.bf16.mxu0 0
  %182 = vmatpush1.bf16.msra.mxu0 %v140
  %183 = vmatprep.subr.bf16.mxu0 0
  %184 = vmatpush1.bf16.msra.mxu0 %v141
  %185 = vmatprep.subr.bf16.mxu0 0
  %186 = vmatpush1.bf16.msra.mxu0 %v142
  %187 = vmatprep.subr.bf16.mxu0 0
  %188 = vmatpush1.bf16.msra.mxu0 %v143
  %189 = vmatprep.subr.bf16.mxu0 0
  %190 = vmatpush1.bf16.msra.mxu0 %v144
  %191 = vmatprep.subr.bf16.mxu0 0
  %192 = vmatpush1.bf16.msra.mxu0 %v145
  %193 = vmatprep.subr.bf16.mxu0 0
  %194 = vmatpush1.bf16.msra.mxu0 %v146
  %195 = vmatprep.mubr.bf16.mxu0 %v64
  %196 = vmatmul.mubr.bf16.gmra.mrb[0].mxu0 %v63
  %v197 = vpop.f32.mrb[0].mxu0
  %v198 = vadd.f32 0.0, %v197
  %v199 = vpop.f32.mrb[0].mxu0
  %v200 = vpop.f32.mrb[0].mxu0
  %v201 = vadd.f32 0.0, %v200
  %v202 = vpop.f32.mrb[0].mxu0
  %203 = vdwg.mxu0
  %v204 = vadd.f32 %v23, %v198
  %v205 = vadd.f32 %v24, %v201
  %206 = vst [vmem:[#allocation2] sm:$0xff] %v204
  %207 = vst [vmem:[#allocation2 + $0x8] sm:$0xff] %v205
  // Predicated region
  $region18: #{_lambda_.21} parent=0 // pred_check
    %p208 = pneg %p15
  $region19: #{_lambda_.21} parent=0 // pred_check_branch
    %210 = sbr.rel (%p208) target = $region21
  $region20: #{_lambda_.21} parent=0 // pred_region
    %v211 = vld [vmem:[#allocation2] sm:$0xff]
    %v212 = vld [vmem:[#allocation2 + $0x8] sm:$0xff]
    %v213 = vld [vmem:[%s2] sm:$0x1]
    %v215 = vlaneseq
    %v216 = vshrl.u32 %v215, 7
    %v217 = vsub.s32 0, %v216
    %v218 = vrot.slane %v213, %v217
    %v220 = vadd.f32 %v211, %v218
    %v221 = vadd.f32 %v212, %v218
    %v222 = vmax.f32 %v220, 0.0
    %v223 = vmax.f32 %v221, 0.0
    %v224 = vpack.c.bf16 %v223, %v222
    %v226 = vunpack.c.l.b16 %v224
    %v227 = vunpack.c.h.b16 %v224
    %v228 = vpack.c.b16 %v226, %v226
    %v229 = vpack.c.b16 %v227, %v227
    %232 = vst [vmem:[%s3] sm:$0xf] %v228
    %233 = vst [vmem:[%s3 + $0x4] sm:$0xf] %v229
  $region21: #{_lambda_.21} parent=0 // pred_fallthru
    _
  // Predicated region
  $region22: #{_lambda_.21} parent=0 // pred_check
    _
  $region23: #{_lambda_.21} parent=0 // pred_check_branch
    %235 = sbr.rel (0) target = $region25
  $region24: #{_lambda_.21} parent=0 // pred_region
    _
  $region25: #{_lambda_.21} parent=0 // pred_fallthru
    _
  // Predicated region
  $region26: #{_lambda_.21} parent=0 // pred_check
    _
  $region27: #{_lambda_.21} parent=0 // pred_check_branch
    %237 = sbr.rel (0) target = $region29
  $region28: #{_lambda_.21} parent=0 // pred_region
    _
  $region29: #{_lambda_.21} parent=0 // pred_fallthru
    _

// kernel: _lambda_.22
$region0: #{_lambda_.22}
  #allocation0 [shape = 'u32[]', space=smem, size = 0x4, offset = 0x4, fixed_abs, tag = 'smem constant byte address 0x4 - core index']
  #allocation1 [shape = 'u32[144,128]{1,0:T(1,128)}', space=vmem, size = 0x12000, scoped, tag = 'internal scratch']
  #allocation2 [shape = 'f32[16,128]{1,0:T(8,128)}', space=vmem, size = 0x2000, scoped, tag = 'scratch operand']
  %s0 = inlined_call_operand.vmem [shape: bf16[16,128], index: 0, kind: input, shape index: {}]
  %s1 = inlined_call_operand.vmem [shape: bf16[128,128], index: 1, kind: input, shape index: {}]
  %s2 = inlined_call_operand.vmem [shape: f32[1,128], index: 2, kind: input, shape index: {}]
  %s3 = inlined_call_operand.vmem [shape: bf16[16,128], index: 3, kind: output, shape index: {}]
  %s4 = sld [smem:[#allocation0]]
  $region30: #{_lambda_.22} parent=0
    _
  %s6 = ssub.s32 1, %s4
  %s7 = scalar_select 0, %s6, %s4
  // Predicated region
  $region2: #{_lambda_.22} parent=0 // pred_check
    _
  $region3: #{_lambda_.22} parent=0 // pred_check_branch
    %9 = sbr.rel (0) target = $region5
  $region4: #{_lambda_.22} parent=0 // pred_region
    _
  $region5: #{_lambda_.22} parent=0 // pred_fallthru
    _
  // Predicated region
  $region6: #{_lambda_.22} parent=0 // pred_check
    _
  $region7: #{_lambda_.22} parent=0 // pred_check_branch
    %11 = sbr.rel (0) target = $region9
  $region8: #{_lambda_.22} parent=0 // pred_region
    _
  $region9: #{_lambda_.22} parent=0 // pred_fallthru
    _
  // Predicated region
  $region10: #{_lambda_.22} parent=0 // pred_check
    _
  $region11: #{_lambda_.22} parent=0 // pred_check_branch
    %13 = sbr.rel (0) target = $region13
  $region12: #{_lambda_.22} parent=0 // pred_region
    _
  $region13: #{_lambda_.22} parent=0 // pred_fallthru
    _
  %p15 = scmp.eq.s32.totalorder 0, 0
  // Predicated region
  $region14: #{_lambda_.22} parent=0 // pred_check
    %p16 = pneg %p15
  $region15: #{_lambda_.22} parent=0 // pred_check_branch
    %18 = sbr.rel (%p16) target = $region17
  $region16: #{_lambda_.22} parent=0 // pred_region
    %19 = vst [vmem:[#allocation2] sm:$0xff] 0.0
    %20 = vst [vmem:[#allocation2 + $0x8] sm:$0xff] 0.0
  $region17: #{_lambda_.22} parent=0 // pred_fallthru
    _
  %v21 = vld [vmem:[%s0] sm:$0xf]
  %v22 = vld [vmem:[%s0 + $0x4] sm:$0xf]
  %v23 = vld [vmem:[#allocation2] sm:$0xff]
  %v24 = vld [vmem:[#allocation2 + $0x8] sm:$0xff]
  %v25 = vld [vmem:[%s1] sm:$0xf]
  %v26 = vld [vmem:[%s1 + $0x4] sm:$0xf]
  %v27 = vld [vmem:[%s1 + $0x8] sm:$0xf]
  %v28 = vld [vmem:[%s1 + $0xc] sm:$0xf]
  %v29 = vld [vmem:[%s1 + $0x10] sm:$0xf]
  %v30 = vld [vmem:[%s1 + $0x14] sm:$0xf]
  %v31 = vld [vmem:[%s1 + $0x18] sm:$0xf]
  %v32 = vld [vmem:[%s1 + $0x1c] sm:$0xf]
  %v33 = vld [vmem:[%s1 + $0x20] sm:$0xf]
  %v34 = vld [vmem:[%s1 + $0x24] sm:$0xf]
  %v35 = vld [vmem:[%s1 + $0x28] sm:$0xf]
  %v36 = vld [vmem:[%s1 + $0x2c] sm:$0xf]
  %v37 = vld [vmem:[%s1 + $0x30] sm:$0xf]
  %v38 = vld [vmem:[%s1 + $0x34] sm:$0xf]
  %v39 = vld [vmem:[%s1 + $0x38] sm:$0xf]
  %v40 = vld [vmem:[%s1 + $0x3c] sm:$0xf]
  %v43 = vunpack.c.l.b16 %v21
  %v44 = vunpack.c.l.b16 %v22
  %v45 = vpack.c.b16 %v44, %v43
  %v63 = vunpack.c.l.b16 %v25
  %v64 = vunpack.c.l.b16 %v26
  %v65 = vunpack.c.l.b16 %v27
  %v66 = vunpack.c.l.b16 %v28
  %v67 = vunpack.c.l.b16 %v29
  %v68 = vunpack.c.l.b16 %v30
  %v69 = vunpack.c.l.b16 %v31
  %v70 = vunpack.c.l.b16 %v32
  %v71 = vunpack.c.l.b16 %v33
  %v72 = vunpack.c.l.b16 %v34
  %v73 = vunpack.c.l.b16 %v35
  %v74 = vunpack.c.l.b16 %v36
  %v75 = vunpack.c.l.b16 %v37
  %v76 = vunpack.c.l.b16 %v38
  %v77 = vunpack.c.l.b16 %v39
  %v78 = vunpack.c.l.b16 %v40
  %v79 = vpack.c.b16 %v64, %v63
  %v80 = vpack.c.b16 %v66, %v65
  %v81 = vpack.c.b16 %v68, %v67
  %v82 = vpack.c.b16 %v70, %v69
  %v83 = vpack.c.b16 %v72, %v71
  %v84 = vpack.c.b16 %v74, %v73
  %v85 = vpack.c.b16 %v76, %v75
  %v86 = vpack.c.b16 %v78, %v77
  %95 = vmatprep.subr.bf16.mxu0 0
  %96 = vmatpush1.bf16.msra.mxu0 %v79
  %97 = vmatprep.subr.bf16.mxu0 0
  %98 = vmatpush1.bf16.msra.mxu0 %v80
  %99 = vmatprep.subr.bf16.mxu0 0
  %100 = vmatpush1.bf16.msra.mxu0 %v81
  %101 = vmatprep.subr.bf16.mxu0 0
  %102 = vmatpush1.bf16.msra.mxu0 %v82
  %103 = vmatprep.subr.bf16.mxu0 0
  %104 = vmatpush1.bf16.msra.mxu0 %v83
  %105 = vmatprep.subr.bf16.mxu0 0
  %106 = vmatpush1.bf16.msra.mxu0 %v84
  %107 = vmatprep.subr.bf16.mxu0 0
  %108 = vmatpush1.bf16.msra.mxu0 %v85
  %109 = vmatprep.subr.bf16.mxu0 0
  %110 = vmatpush1.bf16.msra.mxu0 %v86
  %111 = vmatprep.subr.bf16.mxu0 0
  %112 = vmatpush1.bf16.msra.mxu0 0
  %113 = vmatprep.subr.bf16.mxu0 0
  %114 = vmatpush1.bf16.msra.mxu0 0
  %115 = vmatprep.subr.bf16.mxu0 0
  %116 = vmatpush1.bf16.msra.mxu0 0
  %117 = vmatprep.subr.bf16.mxu0 0
  %118 = vmatpush1.bf16.msra.mxu0 0
  %119 = vmatprep.subr.bf16.mxu0 0
  %120 = vmatpush1.bf16.msra.mxu0 0
  %121 = vmatprep.subr.bf16.mxu0 0
  %122 = vmatpush1.bf16.msra.mxu0 0
  %123 = vmatprep.subr.bf16.mxu0 0
  %124 = vmatpush1.bf16.msra.mxu0 0
  %125 = vmatprep.subr.bf16.mxu0 0
  %126 = vmatpush1.bf16.msra.mxu0 0
  %127 = vmatprep.mubr.bf16.mxu0 0
  %128 = vmatmul.mubr.bf16.gmra.mrb[0].mxu0 %v45
  %v129 = vpop.f32.mrb[0].mxu0
  %v130 = vadd.f32 0.0, %v129
  %v131 = vpop.f32.mrb[0].mxu0
  %v132 = vpop.f32.mrb[0].mxu0
  %v133 = vadd.f32 0.0, %v132
  %v134 = vpop.f32.mrb[0].mxu0
  %135 = vdwg.mxu0
  %v136 = vadd.f32 %v23, %v130
  %v137 = vadd.f32 %v24, %v133
  %138 = vst [vmem:[#allocation2] sm:$0xff] %v136
  %139 = vst [vmem:[#allocation2 + $0x8] sm:$0xff] %v137
  // Predicated region
  $region18: #{_lambda_.22} parent=0 // pred_check
    %p140 = pneg %p15
  $region19: #{_lambda_.22} parent=0 // pred_check_branch
    %142 = sbr.rel (%p140) target = $region21
  $region20: #{_lambda_.22} parent=0 // pred_region
    %v143 = vld [vmem:[#allocation2] sm:$0xff]
    %v144 = vld [vmem:[#allocation2 + $0x8] sm:$0xff]
    %v145 = vld [vmem:[%s2] sm:$0x1]
    %v147 = vlaneseq
    %v148 = vshrl.u32 %v147, 7
    %v149 = vsub.s32 0, %v148
    %v150 = vrot.slane %v145, %v149
    %v152 = vadd.f32 %v143, %v150
    %v153 = vadd.f32 %v144, %v150
    %v154 = vpack.c.bf16 %v153, %v152
    %v156 = vunpack.c.l.b16 %v154
    %v157 = vunpack.c.h.b16 %v154
    %v158 = vpack.c.b16 %v156, %v156
    %v159 = vpack.c.b16 %v157, %v157
    %162 = vst [vmem:[%s3] sm:$0xf] %v158
    %163 = vst [vmem:[%s3 + $0x4] sm:$0xf] %v159
  $region21: #{_lambda_.22} parent=0 // pred_fallthru
    _
  // Predicated region
  $region22: #{_lambda_.22} parent=0 // pred_check
    _
  $region23: #{_lambda_.22} parent=0 // pred_check_branch
    %165 = sbr.rel (0) target = $region25
  $region24: #{_lambda_.22} parent=0 // pred_region
    _
  $region25: #{_lambda_.22} parent=0 // pred_fallthru
    _
  // Predicated region
  $region26: #{_lambda_.22} parent=0 // pred_check
    _
  $region27: #{_lambda_.22} parent=0 // pred_check_branch
    %167 = sbr.rel (0) target = $region29
  $region28: #{_lambda_.22} parent=0 // pred_region
    _
  $region29: #{_lambda_.22} parent=0 // pred_fallthru
    _

// kernel: _lambda_.23
$region0: #{_lambda_.23}
  #allocation0 [shape = 'u32[]', space=smem, size = 0x4, offset = 0x4, fixed_abs, tag = 'smem constant byte address 0x4 - core index']
  #allocation1 [shape = 'u32[144,128]{1,0:T(1,128)}', space=vmem, size = 0x12000, scoped, tag = 'internal scratch']
  #allocation2 [shape = 'f32[16,128]{1,0:T(8,128)}', space=vmem, size = 0x2000, scoped, tag = 'scratch operand']
  %s0 = inlined_call_operand.vmem [shape: bf16[16,384], index: 0, kind: input, shape index: {}]
  %s1 = inlined_call_operand.vmem [shape: bf16[384,128], index: 1, kind: input, shape index: {}]
  %s2 = inlined_call_operand.vmem [shape: f32[1,128], index: 2, kind: input, shape index: {}]
  %s3 = inlined_call_operand.vmem [shape: bf16[16,128], index: 3, kind: input, shape index: {}]
  %s4 = inlined_call_operand.vmem [shape: bf16[16,128], index: 4, kind: output, shape index: {}]
  %s5 = sld [smem:[#allocation0]]
  $region34: #{_lambda_.23} parent=0
    _
  %s7 = ssub.s32 1, %s5
  %s8 = scalar_select 0, %s7, %s5
  // Predicated region
  $region2: #{_lambda_.23} parent=0 // pred_check
    _
  $region3: #{_lambda_.23} parent=0 // pred_check_branch
    %10 = sbr.rel (0) target = $region5
  $region4: #{_lambda_.23} parent=0 // pred_region
    _
  $region5: #{_lambda_.23} parent=0 // pred_fallthru
    _
  // Predicated region
  $region6: #{_lambda_.23} parent=0 // pred_check
    _
  $region7: #{_lambda_.23} parent=0 // pred_check_branch
    %12 = sbr.rel (0) target = $region9
  $region8: #{_lambda_.23} parent=0 // pred_region
    _
  $region9: #{_lambda_.23} parent=0 // pred_fallthru
    _
  // Predicated region
  $region10: #{_lambda_.23} parent=0 // pred_check
    _
  $region11: #{_lambda_.23} parent=0 // pred_check_branch
    %14 = sbr.rel (0) target = $region13
  $region12: #{_lambda_.23} parent=0 // pred_region
    _
  $region13: #{_lambda_.23} parent=0 // pred_fallthru
    _
  // Predicated region
  $region14: #{_lambda_.23} parent=0 // pred_check
    _
  $region15: #{_lambda_.23} parent=0 // pred_check_branch
    %16 = sbr.rel (0) target = $region17
  $region16: #{_lambda_.23} parent=0 // pred_region
    _
  $region17: #{_lambda_.23} parent=0 // pred_fallthru
    _
  %p18 = scmp.eq.s32.totalorder 0, 0
  // Predicated region
  $region18: #{_lambda_.23} parent=0 // pred_check
    %p19 = pneg %p18
  $region19: #{_lambda_.23} parent=0 // pred_check_branch
    %21 = sbr.rel (%p19) target = $region21
  $region20: #{_lambda_.23} parent=0 // pred_region
    %22 = vst [vmem:[#allocation2] sm:$0xff] 0.0
    %23 = vst [vmem:[#allocation2 + $0x8] sm:$0xff] 0.0
  $region21: #{_lambda_.23} parent=0 // pred_fallthru
    _
  %v24 = vld [vmem:[%s0] sm:$0xff]
  %v25 = vld [vmem:[%s0 + $0x8] sm:$0xf]
  %v26 = vld [vmem:[%s0 + $0xc] sm:$0xff]
  %v27 = vld [vmem:[%s0 + $0x14] sm:$0xf]
  %v28 = vld [vmem:[#allocation2] sm:$0xff]
  %v29 = vld [vmem:[#allocation2 + $0x8] sm:$0xff]
  %v30 = vld [vmem:[%s1] sm:$0xf]
  %v31 = vld [vmem:[%s1 + $0x4] sm:$0xf]
  %v32 = vld [vmem:[%s1 + $0x8] sm:$0xf]
  %v33 = vld [vmem:[%s1 + $0xc] sm:$0xf]
  %v34 = vld [vmem:[%s1 + $0x10] sm:$0xf]
  %v35 = vld [vmem:[%s1 + $0x14] sm:$0xf]
  %v36 = vld [vmem:[%s1 + $0x18] sm:$0xf]
  %v37 = vld [vmem:[%s1 + $0x1c] sm:$0xf]
  %v38 = vld [vmem:[%s1 + $0x20] sm:$0xf]
  %v39 = vld [vmem:[%s1 + $0x24] sm:$0xf]
  %v40 = vld [vmem:[%s1 + $0x28] sm:$0xf]
  %v41 = vld [vmem:[%s1 + $0x2c] sm:$0xf]
  %v42 = vld [vmem:[%s1 + $0x30] sm:$0xf]
  %v43 = vld [vmem:[%s1 + $0x34] sm:$0xf]
  %v44 = vld [vmem:[%s1 + $0x38] sm:$0xf]
  %v45 = vld [vmem:[%s1 + $0x3c] sm:$0xf]
  %v46 = vld [vmem:[%s1 + $0x40] sm:$0xf]
  %v47 = vld [vmem:[%s1 + $0x44] sm:$0xf]
  %v48 = vld [vmem:[%s1 + $0x48] sm:$0xf]
  %v49 = vld [vmem:[%s1 + $0x4c] sm:$0xf]
  %v50 = vld [vmem:[%s1 + $0x50] sm:$0xf]
  %v51 = vld [vmem:[%s1 + $0x54] sm:$0xf]
  %v52 = vld [vmem:[%s1 + $0x58] sm:$0xf]
  %v53 = vld [vmem:[%s1 + $0x5c] sm:$0xf]
  %v54 = vld [vmem:[%s1 + $0x60] sm:$0xf]
  %v55 = vld [vmem:[%s1 + $0x64] sm:$0xf]
  %v56 = vld [vmem:[%s1 + $0x68] sm:$0xf]
  %v57 = vld [vmem:[%s1 + $0x6c] sm:$0xf]
  %v58 = vld [vmem:[%s1 + $0x70] sm:$0xf]
  %v59 = vld [vmem:[%s1 + $0x74] sm:$0xf]
  %v60 = vld [vmem:[%s1 + $0x78] sm:$0xf]
  %v61 = vld [vmem:[%s1 + $0x7c] sm:$0xf]
  %v62 = vld [vmem:[%s1 + $0x80] sm:$0xf]
  %v63 = vld [vmem:[%s1 + $0x84] sm:$0xf]
  %v64 = vld [vmem:[%s1 + $0x88] sm:$0xf]
  %v65 = vld [vmem:[%s1 + $0x8c] sm:$0xf]
  %v66 = vld [vmem:[%s1 + $0x90] sm:$0xf]
  %v67 = vld [vmem:[%s1 + $0x94] sm:$0xf]
  %v68 = vld [vmem:[%s1 + $0x98] sm:$0xf]
  %v69 = vld [vmem:[%s1 + $0x9c] sm:$0xf]
  %v70 = vld [vmem:[%s1 + $0xa0] sm:$0xf]
  %v71 = vld [vmem:[%s1 + $0xa4] sm:$0xf]
  %v72 = vld [vmem:[%s1 + $0xa8] sm:$0xf]
  %v73 = vld [vmem:[%s1 + $0xac] sm:$0xf]
  %v74 = vld [vmem:[%s1 + $0xb0] sm:$0xf]
  %v75 = vld [vmem:[%s1 + $0xb4] sm:$0xf]
  %v76 = vld [vmem:[%s1 + $0xb8] sm:$0xf]
  %v77 = vld [vmem:[%s1 + $0xbc] sm:$0xf]
  %v82 = vunpack.c.l.b16 %v24
  %v83 = vunpack.c.h.b16 %v24
  %v84 = vunpack.c.l.b16 %v25
  %v85 = vunpack.c.l.b16 %v26
  %v86 = vunpack.c.h.b16 %v26
  %v87 = vunpack.c.l.b16 %v27
  %v88 = vpack.c.b16 %v85, %v82
  %v89 = vpack.c.b16 %v86, %v83
  %v90 = vpack.c.b16 %v87, %v84
  %v142 = vunpack.c.l.b16 %v30
  %v143 = vunpack.c.l.b16 %v31
  %v144 = vunpack.c.l.b16 %v32
  %v145 = vunpack.c.l.b16 %v33
  %v146 = vunpack.c.l.b16 %v34
  %v147 = vunpack.c.l.b16 %v35
  %v148 = vunpack.c.l.b16 %v36
  %v149 = vunpack.c.l.b16 %v37
  %v150 = vunpack.c.l.b16 %v38
  %v151 = vunpack.c.l.b16 %v39
  %v152 = vunpack.c.l.b16 %v40
  %v153 = vunpack.c.l.b16 %v41
  %v154 = vunpack.c.l.b16 %v42
  %v155 = vunpack.c.l.b16 %v43
  %v156 = vunpack.c.l.b16 %v44
  %v157 = vunpack.c.l.b16 %v45
  %v158 = vunpack.c.l.b16 %v46
  %v159 = vunpack.c.l.b16 %v47
  %v160 = vunpack.c.l.b16 %v48
  %v161 = vunpack.c.l.b16 %v49
  %v162 = vunpack.c.l.b16 %v50
  %v163 = vunpack.c.l.b16 %v51
  %v164 = vunpack.c.l.b16 %v52
  %v165 = vunpack.c.l.b16 %v53
  %v166 = vunpack.c.l.b16 %v54
  %v167 = vunpack.c.l.b16 %v55
  %v168 = vunpack.c.l.b16 %v56
  %v169 = vunpack.c.l.b16 %v57
  %v170 = vunpack.c.l.b16 %v58
  %v171 = vunpack.c.l.b16 %v59
  %v172 = vunpack.c.l.b16 %v60
  %v173 = vunpack.c.l.b16 %v61
  %v174 = vunpack.c.l.b16 %v62
  %v175 = vunpack.c.l.b16 %v63
  %v176 = vunpack.c.l.b16 %v64
  %v177 = vunpack.c.l.b16 %v65
  %v178 = vunpack.c.l.b16 %v66
  %v179 = vunpack.c.l.b16 %v67
  %v180 = vunpack.c.l.b16 %v68
  %v181 = vunpack.c.l.b16 %v69
  %v182 = vunpack.c.l.b16 %v70
  %v183 = vunpack.c.l.b16 %v71
  %v184 = vunpack.c.l.b16 %v72
  %v185 = vunpack.c.l.b16 %v73
  %v186 = vunpack.c.l.b16 %v74
  %v187 = vunpack.c.l.b16 %v75
  %v188 = vunpack.c.l.b16 %v76
  %v189 = vunpack.c.l.b16 %v77
  %v190 = vpack.c.b16 %v143, %v142
  %v191 = vpack.c.b16 %v145, %v144
  %v192 = vpack.c.b16 %v147, %v146
  %v193 = vpack.c.b16 %v149, %v148
  %v194 = vpack.c.b16 %v151, %v150
  %v195 = vpack.c.b16 %v153, %v152
  %v196 = vpack.c.b16 %v155, %v154
  %v197 = vpack.c.b16 %v157, %v156
  %v198 = vpack.c.b16 %v159, %v158
  %v199 = vpack.c.b16 %v161, %v160
  %v200 = vpack.c.b16 %v163, %v162
  %v201 = vpack.c.b16 %v165, %v164
  %v202 = vpack.c.b16 %v167, %v166
  %v203 = vpack.c.b16 %v169, %v168
  %v204 = vpack.c.b16 %v171, %v170
  %v205 = vpack.c.b16 %v173, %v172
  %v206 = vpack.c.b16 %v175, %v174
  %v207 = vpack.c.b16 %v177, %v176
  %v208 = vpack.c.b16 %v179, %v178
  %v209 = vpack.c.b16 %v181, %v180
  %v210 = vpack.c.b16 %v183, %v182
  %v211 = vpack.c.b16 %v185, %v184
  %v212 = vpack.c.b16 %v187, %v186
  %v213 = vpack.c.b16 %v189, %v188
  %238 = vmatprep.subr.bf16.mxu0 0
  %239 = vmatpush1.bf16.msra.mxu0 %v190
  %240 = vmatprep.subr.bf16.mxu0 0
  %241 = vmatpush1.bf16.msra.mxu0 %v191
  %242 = vmatprep.subr.bf16.mxu0 0
  %243 = vmatpush1.bf16.msra.mxu0 %v192
  %244 = vmatprep.subr.bf16.mxu0 0
  %245 = vmatpush1.bf16.msra.mxu0 %v193
  %246 = vmatprep.subr.bf16.mxu0 0
  %247 = vmatpush1.bf16.msra.mxu0 %v194
  %248 = vmatprep.subr.bf16.mxu0 0
  %249 = vmatpush1.bf16.msra.mxu0 %v195
  %250 = vmatprep.subr.bf16.mxu0 0
  %251 = vmatpush1.bf16.msra.mxu0 %v196
  %252 = vmatprep.subr.bf16.mxu0 0
  %253 = vmatpush1.bf16.msra.mxu0 %v197
  %254 = vmatprep.subr.bf16.mxu0 0
  %255 = vmatpush1.bf16.msra.mxu0 %v198
  %256 = vmatprep.subr.bf16.mxu0 0
  %257 = vmatpush1.bf16.msra.mxu0 %v199
  %258 = vmatprep.subr.bf16.mxu0 0
  %259 = vmatpush1.bf16.msra.mxu0 %v200
  %260 = vmatprep.subr.bf16.mxu0 0
  %261 = vmatpush1.bf16.msra.mxu0 %v201
  %262 = vmatprep.subr.bf16.mxu0 0
  %263 = vmatpush1.bf16.msra.mxu0 %v202
  %264 = vmatprep.subr.bf16.mxu0 0
  %265 = vmatpush1.bf16.msra.mxu0 %v203
  %266 = vmatprep.subr.bf16.mxu0 0
  %267 = vmatpush1.bf16.msra.mxu0 %v204
  %268 = vmatprep.subr.bf16.mxu0 0
  %269 = vmatpush1.bf16.msra.mxu0 %v205
  %270 = vmatprep.mubr.bf16.mxu0 %v89
  %271 = vmatmul.mubr.bf16.gmra.mrb[0].mxu0 %v88
  %v272 = vpop.f32.mrb[0].mxu0
  %v273 = vadd.f32 0.0, %v272
  %v274 = vpop.f32.mrb[0].mxu0
  %v275 = vpop.f32.mrb[0].mxu0
  %v276 = vadd.f32 0.0, %v275
  %v277 = vpop.f32.mrb[0].mxu0
  %278 = vdwg.mxu0
  %279 = vmatprep.subr.bf16.mxu0 0
  %280 = vmatpush1.bf16.msra.mxu0 %v206
  %281 = vmatprep.subr.bf16.mxu0 0
  %282 = vmatpush1.bf16.msra.mxu0 %v207
  %283 = vmatprep.subr.bf16.mxu0 0
  %284 = vmatpush1.bf16.msra.mxu0 %v208
  %285 = vmatprep.subr.bf16.mxu0 0
  %286 = vmatpush1.bf16.msra.mxu0 %v209
  %287 = vmatprep.subr.bf16.mxu0 0
  %288 = vmatpush1.bf16.msra.mxu0 %v210
  %289 = vmatprep.subr.bf16.mxu0 0
  %290 = vmatpush1.bf16.msra.mxu0 %v211
  %291 = vmatprep.subr.bf16.mxu0 0
  %292 = vmatpush1.bf16.msra.mxu0 %v212
  %293 = vmatprep.subr.bf16.mxu0 0
  %294 = vmatpush1.bf16.msra.mxu0 %v213
  %295 = vmatprep.subr.bf16.mxu0 0
  %296 = vmatpush1.bf16.msra.mxu0 0
  %297 = vmatprep.subr.bf16.mxu0 0
  %298 = vmatpush1.bf16.msra.mxu0 0
  %299 = vmatprep.subr.bf16.mxu0 0
  %300 = vmatpush1.bf16.msra.mxu0 0
  %301 = vmatprep.subr.bf16.mxu0 0
  %302 = vmatpush1.bf16.msra.mxu0 0
  %303 = vmatprep.subr.bf16.mxu0 0
  %304 = vmatpush1.bf16.msra.mxu0 0
  %305 = vmatprep.subr.bf16.mxu0 0
  %306 = vmatpush1.bf16.msra.mxu0 0
  %307 = vmatprep.subr.bf16.mxu0 0
  %308 = vmatpush1.bf16.msra.mxu0 0
  %309 = vmatprep.subr.bf16.mxu0 0
  %310 = vmatpush1.bf16.msra.mxu0 0
  %311 = vmatprep.mubr.bf16.mxu0 0
  %312 = vmatmul.mubr.bf16.gmra.mrb[0].mxu0 %v90
  %v313 = vpop.f32.mrb[0].mxu0
  %v314 = vadd.f32 %v273, %v313
  %v315 = vpop.f32.mrb[0].mxu0
  %v316 = vpop.f32.mrb[0].mxu0
  %v317 = vadd.f32 %v276, %v316
  %v318 = vpop.f32.mrb[0].mxu0
  %319 = vdwg.mxu0
  %v320 = vadd.f32 %v28, %v314
  %v321 = vadd.f32 %v29, %v317
  %322 = vst [vmem:[#allocation2] sm:$0xff] %v320
  %323 = vst [vmem:[#allocation2 + $0x8] sm:$0xff] %v321
  // Predicated region
  $region22: #{_lambda_.23} parent=0 // pred_check
    %p324 = pneg %p18
  $region23: #{_lambda_.23} parent=0 // pred_check_branch
    %326 = sbr.rel (%p324) target = $region25
  $region24: #{_lambda_.23} parent=0 // pred_region
    %v327 = vld [vmem:[#allocation2] sm:$0xff]
    %v328 = vld [vmem:[#allocation2 + $0x8] sm:$0xff]
    %v329 = vld [vmem:[%s2] sm:$0x1]
    %v331 = vlaneseq
    %v332 = vshrl.u32 %v331, 7
    %v333 = vsub.s32 0, %v332
    %v334 = vrot.slane %v329, %v333
    %v336 = vadd.f32 %v327, %v334
    %v337 = vadd.f32 %v328, %v334
    %v338 = vld [vmem:[%s3] sm:$0xf]
    %v339 = vld [vmem:[%s3 + $0x4] sm:$0xf]
    %v340 = vunpack.c.l.bf16 %v338
    %v341 = vunpack.c.l.bf16 %v339
    %v342 = vadd.f32 %v336, %v340
    %v343 = vadd.f32 %v337, %v341
    %v344 = vmax.f32 %v342, 0.0
    %v345 = vmax.f32 %v343, 0.0
    %v346 = vpack.c.bf16 %v345, %v344
    %v348 = vunpack.c.l.b16 %v346
    %v349 = vunpack.c.h.b16 %v346
    %v350 = vpack.c.b16 %v348, %v348
    %v351 = vpack.c.b16 %v349, %v349
    %354 = vst [vmem:[%s4] sm:$0xf] %v350
    %355 = vst [vmem:[%s4 + $0x4] sm:$0xf] %v351
  $region25: #{_lambda_.23} parent=0 // pred_fallthru
    _
  // Predicated region
  $region26: #{_lambda_.23} parent=0 // pred_check
    _
  $region27: #{_lambda_.23} parent=0 // pred_check_branch
    %357 = sbr.rel (0) target = $region29
  $region28: #{_lambda_.23} parent=0 // pred_region
    _
  $region29: #{_lambda_.23} parent=0 // pred_fallthru
    _
  // Predicated region
  $region30: #{_lambda_.23} parent=0 // pred_check
    _
  $region31: #{_lambda_.23} parent=0 // pred_check_branch
    %359 = sbr.rel (0) target = $region33
  $region32: #{_lambda_.23} parent=0 // pred_region
    _
  $region33: #{_lambda_.23} parent=0 // pred_fallthru
    _

// kernel: _lambda_.24
$region0: #{_lambda_.24}
  #allocation0 [shape = 'u32[]', space=smem, size = 0x4, offset = 0x4, fixed_abs, tag = 'smem constant byte address 0x4 - core index']
  #allocation1 [shape = 'u32[144,128]{1,0:T(1,128)}', space=vmem, size = 0x12000, scoped, tag = 'internal scratch']
  #allocation2 [shape = 'f32[16,128]{1,0:T(8,128)}', space=vmem, size = 0x2000, scoped, tag = 'scratch operand']
  %s0 = inlined_call_operand.vmem [shape: bf16[16,384], index: 0, kind: input, shape index: {}]
  %s1 = inlined_call_operand.vmem [shape: bf16[384,128], index: 1, kind: input, shape index: {}]
  %s2 = inlined_call_operand.vmem [shape: f32[1,128], index: 2, kind: input, shape index: {}]
  %s3 = inlined_call_operand.vmem [shape: bf16[16,128], index: 3, kind: output, shape index: {}]
  %s4 = sld [smem:[#allocation0]]
  $region30: #{_lambda_.24} parent=0
    _
  %s6 = ssub.s32 1, %s4
  %s7 = scalar_select 0, %s6, %s4
  // Predicated region
  $region2: #{_lambda_.24} parent=0 // pred_check
    _
  $region3: #{_lambda_.24} parent=0 // pred_check_branch
    %9 = sbr.rel (0) target = $region5
  $region4: #{_lambda_.24} parent=0 // pred_region
    _
  $region5: #{_lambda_.24} parent=0 // pred_fallthru
    _
  // Predicated region
  $region6: #{_lambda_.24} parent=0 // pred_check
    _
  $region7: #{_lambda_.24} parent=0 // pred_check_branch
    %11 = sbr.rel (0) target = $region9
  $region8: #{_lambda_.24} parent=0 // pred_region
    _
  $region9: #{_lambda_.24} parent=0 // pred_fallthru
    _
  // Predicated region
  $region10: #{_lambda_.24} parent=0 // pred_check
    _
  $region11: #{_lambda_.24} parent=0 // pred_check_branch
    %13 = sbr.rel (0) target = $region13
  $region12: #{_lambda_.24} parent=0 // pred_region
    _
  $region13: #{_lambda_.24} parent=0 // pred_fallthru
    _
  %p15 = scmp.eq.s32.totalorder 0, 0
  // Predicated region
  $region14: #{_lambda_.24} parent=0 // pred_check
    %p16 = pneg %p15
  $region15: #{_lambda_.24} parent=0 // pred_check_branch
    %18 = sbr.rel (%p16) target = $region17
  $region16: #{_lambda_.24} parent=0 // pred_region
    %19 = vst [vmem:[#allocation2] sm:$0xff] 0.0
    %20 = vst [vmem:[#allocation2 + $0x8] sm:$0xff] 0.0
  $region17: #{_lambda_.24} parent=0 // pred_fallthru
    _
  %v21 = vld [vmem:[%s0] sm:$0xff]
  %v22 = vld [vmem:[%s0 + $0x8] sm:$0xf]
  %v23 = vld [vmem:[%s0 + $0xc] sm:$0xff]
  %v24 = vld [vmem:[%s0 + $0x14] sm:$0xf]
  %v25 = vld [vmem:[#allocation2] sm:$0xff]
  %v26 = vld [vmem:[#allocation2 + $0x8] sm:$0xff]
  %v27 = vld [vmem:[%s1] sm:$0xf]
  %v28 = vld [vmem:[%s1 + $0x4] sm:$0xf]
  %v29 = vld [vmem:[%s1 + $0x8] sm:$0xf]
  %v30 = vld [vmem:[%s1 + $0xc] sm:$0xf]
  %v31 = vld [vmem:[%s1 + $0x10] sm:$0xf]
  %v32 = vld [vmem:[%s1 + $0x14] sm:$0xf]
  %v33 = vld [vmem:[%s1 + $0x18] sm:$0xf]
  %v34 = vld [vmem:[%s1 + $0x1c] sm:$0xf]
  %v35 = vld [vmem:[%s1 + $0x20] sm:$0xf]
  %v36 = vld [vmem:[%s1 + $0x24] sm:$0xf]
  %v37 = vld [vmem:[%s1 + $0x28] sm:$0xf]
  %v38 = vld [vmem:[%s1 + $0x2c] sm:$0xf]
  %v39 = vld [vmem:[%s1 + $0x30] sm:$0xf]
  %v40 = vld [vmem:[%s1 + $0x34] sm:$0xf]
  %v41 = vld [vmem:[%s1 + $0x38] sm:$0xf]
  %v42 = vld [vmem:[%s1 + $0x3c] sm:$0xf]
  %v43 = vld [vmem:[%s1 + $0x40] sm:$0xf]
  %v44 = vld [vmem:[%s1 + $0x44] sm:$0xf]
  %v45 = vld [vmem:[%s1 + $0x48] sm:$0xf]
  %v46 = vld [vmem:[%s1 + $0x4c] sm:$0xf]
  %v47 = vld [vmem:[%s1 + $0x50] sm:$0xf]
  %v48 = vld [vmem:[%s1 + $0x54] sm:$0xf]
  %v49 = vld [vmem:[%s1 + $0x58] sm:$0xf]
  %v50 = vld [vmem:[%s1 + $0x5c] sm:$0xf]
  %v51 = vld [vmem:[%s1 + $0x60] sm:$0xf]
  %v52 = vld [vmem:[%s1 + $0x64] sm:$0xf]
  %v53 = vld [vmem:[%s1 + $0x68] sm:$0xf]
  %v54 = vld [vmem:[%s1 + $0x6c] sm:$0xf]
  %v55 = vld [vmem:[%s1 + $0x70] sm:$0xf]
  %v56 = vld [vmem:[%s1 + $0x74] sm:$0xf]
  %v57 = vld [vmem:[%s1 + $0x78] sm:$0xf]
  %v58 = vld [vmem:[%s1 + $0x7c] sm:$0xf]
  %v59 = vld [vmem:[%s1 + $0x80] sm:$0xf]
  %v60 = vld [vmem:[%s1 + $0x84] sm:$0xf]
  %v61 = vld [vmem:[%s1 + $0x88] sm:$0xf]
  %v62 = vld [vmem:[%s1 + $0x8c] sm:$0xf]
  %v63 = vld [vmem:[%s1 + $0x90] sm:$0xf]
  %v64 = vld [vmem:[%s1 + $0x94] sm:$0xf]
  %v65 = vld [vmem:[%s1 + $0x98] sm:$0xf]
  %v66 = vld [vmem:[%s1 + $0x9c] sm:$0xf]
  %v67 = vld [vmem:[%s1 + $0xa0] sm:$0xf]
  %v68 = vld [vmem:[%s1 + $0xa4] sm:$0xf]
  %v69 = vld [vmem:[%s1 + $0xa8] sm:$0xf]
  %v70 = vld [vmem:[%s1 + $0xac] sm:$0xf]
  %v71 = vld [vmem:[%s1 + $0xb0] sm:$0xf]
  %v72 = vld [vmem:[%s1 + $0xb4] sm:$0xf]
  %v73 = vld [vmem:[%s1 + $0xb8] sm:$0xf]
  %v74 = vld [vmem:[%s1 + $0xbc] sm:$0xf]
  %v79 = vunpack.c.l.b16 %v21
  %v80 = vunpack.c.h.b16 %v21
  %v81 = vunpack.c.l.b16 %v22
  %v82 = vunpack.c.l.b16 %v23
  %v83 = vunpack.c.h.b16 %v23
  %v84 = vunpack.c.l.b16 %v24
  %v85 = vpack.c.b16 %v82, %v79
  %v86 = vpack.c.b16 %v83, %v80
  %v87 = vpack.c.b16 %v84, %v81
  %v139 = vunpack.c.l.b16 %v27
  %v140 = vunpack.c.l.b16 %v28
  %v141 = vunpack.c.l.b16 %v29
  %v142 = vunpack.c.l.b16 %v30
  %v143 = vunpack.c.l.b16 %v31
  %v144 = vunpack.c.l.b16 %v32
  %v145 = vunpack.c.l.b16 %v33
  %v146 = vunpack.c.l.b16 %v34
  %v147 = vunpack.c.l.b16 %v35
  %v148 = vunpack.c.l.b16 %v36
  %v149 = vunpack.c.l.b16 %v37
  %v150 = vunpack.c.l.b16 %v38
  %v151 = vunpack.c.l.b16 %v39
  %v152 = vunpack.c.l.b16 %v40
  %v153 = vunpack.c.l.b16 %v41
  %v154 = vunpack.c.l.b16 %v42
  %v155 = vunpack.c.l.b16 %v43
  %v156 = vunpack.c.l.b16 %v44
  %v157 = vunpack.c.l.b16 %v45
  %v158 = vunpack.c.l.b16 %v46
  %v159 = vunpack.c.l.b16 %v47
  %v160 = vunpack.c.l.b16 %v48
  %v161 = vunpack.c.l.b16 %v49
  %v162 = vunpack.c.l.b16 %v50
  %v163 = vunpack.c.l.b16 %v51
  %v164 = vunpack.c.l.b16 %v52
  %v165 = vunpack.c.l.b16 %v53
  %v166 = vunpack.c.l.b16 %v54
  %v167 = vunpack.c.l.b16 %v55
  %v168 = vunpack.c.l.b16 %v56
  %v169 = vunpack.c.l.b16 %v57
  %v170 = vunpack.c.l.b16 %v58
  %v171 = vunpack.c.l.b16 %v59
  %v172 = vunpack.c.l.b16 %v60
  %v173 = vunpack.c.l.b16 %v61
  %v174 = vunpack.c.l.b16 %v62
  %v175 = vunpack.c.l.b16 %v63
  %v176 = vunpack.c.l.b16 %v64
  %v177 = vunpack.c.l.b16 %v65
  %v178 = vunpack.c.l.b16 %v66
  %v179 = vunpack.c.l.b16 %v67
  %v180 = vunpack.c.l.b16 %v68
  %v181 = vunpack.c.l.b16 %v69
  %v182 = vunpack.c.l.b16 %v70
  %v183 = vunpack.c.l.b16 %v71
  %v184 = vunpack.c.l.b16 %v72
  %v185 = vunpack.c.l.b16 %v73
  %v186 = vunpack.c.l.b16 %v74
  %v187 = vpack.c.b16 %v140, %v139
  %v188 = vpack.c.b16 %v142, %v141
  %v189 = vpack.c.b16 %v144, %v143
  %v190 = vpack.c.b16 %v146, %v145
  %v191 = vpack.c.b16 %v148, %v147
  %v192 = vpack.c.b16 %v150, %v149
  %v193 = vpack.c.b16 %v152, %v151
  %v194 = vpack.c.b16 %v154, %v153
  %v195 = vpack.c.b16 %v156, %v155
  %v196 = vpack.c.b16 %v158, %v157
  %v197 = vpack.c.b16 %v160, %v159
  %v198 = vpack.c.b16 %v162, %v161
  %v199 = vpack.c.b16 %v164, %v163
  %v200 = vpack.c.b16 %v166, %v165
  %v201 = vpack.c.b16 %v168, %v167
  %v202 = vpack.c.b16 %v170, %v169
  %v203 = vpack.c.b16 %v172, %v171
  %v204 = vpack.c.b16 %v174, %v173
  %v205 = vpack.c.b16 %v176, %v175
  %v206 = vpack.c.b16 %v178, %v177
  %v207 = vpack.c.b16 %v180, %v179
  %v208 = vpack.c.b16 %v182, %v181
  %v209 = vpack.c.b16 %v184, %v183
  %v210 = vpack.c.b16 %v186, %v185
  %235 = vmatprep.subr.bf16.mxu0 0
  %236 = vmatpush1.bf16.msra.mxu0 %v187
  %237 = vmatprep.subr.bf16.mxu0 0
  %238 = vmatpush1.bf16.msra.mxu0 %v188
  %239 = vmatprep.subr.bf16.mxu0 0
  %240 = vmatpush1.bf16.msra.mxu0 %v189
  %241 = vmatprep.subr.bf16.mxu0 0
  %242 = vmatpush1.bf16.msra.mxu0 %v190
  %243 = vmatprep.subr.bf16.mxu0 0
  %244 = vmatpush1.bf16.msra.mxu0 %v191
  %245 = vmatprep.subr.bf16.mxu0 0
  %246 = vmatpush1.bf16.msra.mxu0 %v192
  %247 = vmatprep.subr.bf16.mxu0 0
  %248 = vmatpush1.bf16.msra.mxu0 %v193
  %249 = vmatprep.subr.bf16.mxu0 0
  %250 = vmatpush1.bf16.msra.mxu0 %v194
  %251 = vmatprep.subr.bf16.mxu0 0
  %252 = vmatpush1.bf16.msra.mxu0 %v195
  %253 = vmatprep.subr.bf16.mxu0 0
  %254 = vmatpush1.bf16.msra.mxu0 %v196
  %255 = vmatprep.subr.bf16.mxu0 0
  %256 = vmatpush1.bf16.msra.mxu0 %v197
  %257 = vmatprep.subr.bf16.mxu0 0
  %258 = vmatpush1.bf16.msra.mxu0 %v198
  %259 = vmatprep.subr.bf16.mxu0 0
  %260 = vmatpush1.bf16.msra.mxu0 %v199
  %261 = vmatprep.subr.bf16.mxu0 0
  %262 = vmatpush1.bf16.msra.mxu0 %v200
  %263 = vmatprep.subr.bf16.mxu0 0
  %264 = vmatpush1.bf16.msra.mxu0 %v201
  %265 = vmatprep.subr.bf16.mxu0 0
  %266 = vmatpush1.bf16.msra.mxu0 %v202
  %267 = vmatprep.mubr.bf16.mxu0 %v86
  %268 = vmatmul.mubr.bf16.gmra.mrb[0].mxu0 %v85
  %v269 = vpop.f32.mrb[0].mxu0
  %v270 = vadd.f32 0.0, %v269
  %v271 = vpop.f32.mrb[0].mxu0
  %v272 = vpop.f32.mrb[0].mxu0
  %v273 = vadd.f32 0.0, %v272
  %v274 = vpop.f32.mrb[0].mxu0
  %275 = vdwg.mxu0
  %276 = vmatprep.subr.bf16.mxu0 0
  %277 = vmatpush1.bf16.msra.mxu0 %v203
  %278 = vmatprep.subr.bf16.mxu0 0
  %279 = vmatpush1.bf16.msra.mxu0 %v204
  %280 = vmatprep.subr.bf16.mxu0 0
  %281 = vmatpush1.bf16.msra.mxu0 %v205
  %282 = vmatprep.subr.bf16.mxu0 0
  %283 = vmatpush1.bf16.msra.mxu0 %v206
  %284 = vmatprep.subr.bf16.mxu0 0
  %285 = vmatpush1.bf16.msra.mxu0 %v207
  %286 = vmatprep.subr.bf16.mxu0 0
  %287 = vmatpush1.bf16.msra.mxu0 %v208
  %288 = vmatprep.subr.bf16.mxu0 0
  %289 = vmatpush1.bf16.msra.mxu0 %v209
  %290 = vmatprep.subr.bf16.mxu0 0
  %291 = vmatpush1.bf16.msra.mxu0 %v210
  %292 = vmatprep.subr.bf16.mxu0 0
  %293 = vmatpush1.bf16.msra.mxu0 0
  %294 = vmatprep.subr.bf16.mxu0 0
  %295 = vmatpush1.bf16.msra.mxu0 0
  %296 = vmatprep.subr.bf16.mxu0 0
  %297 = vmatpush1.bf16.msra.mxu0 0
  %298 = vmatprep.subr.bf16.mxu0 0
  %299 = vmatpush1.bf16.msra.mxu0 0
  %300 = vmatprep.subr.bf16.mxu0 0
  %301 = vmatpush1.bf16.msra.mxu0 0
  %302 = vmatprep.subr.bf16.mxu0 0
  %303 = vmatpush1.bf16.msra.mxu0 0
  %304 = vmatprep.subr.bf16.mxu0 0
  %305 = vmatpush1.bf16.msra.mxu0 0
  %306 = vmatprep.subr.bf16.mxu0 0
  %307 = vmatpush1.bf16.msra.mxu0 0
  %308 = vmatprep.mubr.bf16.mxu0 0
  %309 = vmatmul.mubr.bf16.gmra.mrb[0].mxu0 %v87
  %v310 = vpop.f32.mrb[0].mxu0
  %v311 = vadd.f32 %v270, %v310
  %v312 = vpop.f32.mrb[0].mxu0
  %v313 = vpop.f32.mrb[0].mxu0
  %v314 = vadd.f32 %v273, %v313
  %v315 = vpop.f32.mrb[0].mxu0
  %316 = vdwg.mxu0
  %v317 = vadd.f32 %v25, %v311
  %v318 = vadd.f32 %v26, %v314
  %319 = vst [vmem:[#allocation2] sm:$0xff] %v317
  %320 = vst [vmem:[#allocation2 + $0x8] sm:$0xff] %v318
  // Predicated region
  $region18: #{_lambda_.24} parent=0 // pred_check
    %p321 = pneg %p15
  $region19: #{_lambda_.24} parent=0 // pred_check_branch
    %323 = sbr.rel (%p321) target = $region21
  $region20: #{_lambda_.24} parent=0 // pred_region
    %v324 = vld [vmem:[#allocation2] sm:$0xff]
    %v325 = vld [vmem:[#allocation2 + $0x8] sm:$0xff]
    %v326 = vld [vmem:[%s2] sm:$0x1]
    %v328 = vlaneseq
    %v329 = vshrl.u32 %v328, 7
    %v330 = vsub.s32 0, %v329
    %v331 = vrot.slane %v326, %v330
    %v333 = vadd.f32 %v324, %v331
    %v334 = vadd.f32 %v325, %v331
    %v335 = vmax.f32 %v333, 0.0
    %v336 = vmax.f32 %v334, 0.0
    %v337 = vpack.c.bf16 %v336, %v335
    %v339 = vunpack.c.l.b16 %v337
    %v340 = vunpack.c.h.b16 %v337
    %v341 = vpack.c.b16 %v339, %v339
    %v342 = vpack.c.b16 %v340, %v340
    %345 = vst [vmem:[%s3] sm:$0xf] %v341
    %346 = vst [vmem:[%s3 + $0x4] sm:$0xf] %v342
  $region21: #{_lambda_.24} parent=0 // pred_fallthru
    _
  // Predicated region
  $region22: #{_lambda_.24} parent=0 // pred_check
    _
  $region23: #{_lambda_.24} parent=0 // pred_check_branch
    %348 = sbr.rel (0) target = $region25
  $region24: #{_lambda_.24} parent=0 // pred_region
    _
  $region25: #{_lambda_.24} parent=0 // pred_fallthru
    _
  // Predicated region
  $region26: #{_lambda_.24} parent=0 // pred_check
    _
  $region27: #{_lambda_.24} parent=0 // pred_check_branch
    %350 = sbr.rel (0) target = $region29
  $region28: #{_lambda_.24} parent=0 // pred_region
    _
  $region29: #{_lambda_.24} parent=0 // pred_fallthru
    _

// kernel: _lambda_.27
$region0: #{_lambda_.27}
  #allocation0 [shape = 'u32[]', space=smem, size = 0x4, offset = 0x4, fixed_abs, tag = 'smem constant byte address 0x4 - core index']
  #allocation1 [shape = 'u32[144,128]{1,0:T(1,128)}', space=vmem, size = 0x12000, scoped, tag = 'internal scratch']
  %s0 = inlined_call_operand.vmem [shape: f32[2,64,2], index: 0, kind: input, shape index: {}]
  %s1 = inlined_call_operand.vmem [shape: f32[2,128], index: 1, kind: output, shape index: {}]
  %s2 = sld [smem:[#allocation0]]
  $region14: #{_lambda_.27} parent=0
    _
  %s4 = ssub.s32 1, %s2
  %s5 = scalar_select 0, %s4, %s2
  // Predicated region
  $region2: #{_lambda_.27} parent=0 // pred_check
    _
  $region3: #{_lambda_.27} parent=0 // pred_check_branch
    %7 = sbr.rel (0) target = $region5
  $region4: #{_lambda_.27} parent=0 // pred_region
    _
  $region5: #{_lambda_.27} parent=0 // pred_fallthru
    _
  %v8 = vld [vmem:[%s0] sm:$0xff]
  %v9 = vld [vmem:[%s0 + $0x8] sm:$0xff]
  %v10 = vld [vmem:[%s0 + $0x10] sm:$0xff]
  %v11 = vld [vmem:[%s0 + $0x18] sm:$0xff]
  %v12 = vld [vmem:[%s0 + $0x20] sm:$0xff]
  %v13 = vld [vmem:[%s0 + $0x28] sm:$0xff]
  %v14 = vld [vmem:[%s0 + $0x30] sm:$0xff]
  %v15 = vld [vmem:[%s0 + $0x38] sm:$0xff]
  %v16 = vld [vmem:[%s0 + $0x40] sm:$0xff]
  %v17 = vld [vmem:[%s0 + $0x48] sm:$0xff]
  %v18 = vld [vmem:[%s0 + $0x50] sm:$0xff]
  %v19 = vld [vmem:[%s0 + $0x58] sm:$0xff]
  %v20 = vld [vmem:[%s0 + $0x60] sm:$0xff]
  %v21 = vld [vmem:[%s0 + $0x68] sm:$0xff]
  %v22 = vld [vmem:[%s0 + $0x70] sm:$0xff]
  %v23 = vld [vmem:[%s0 + $0x78] sm:$0xff]
  %vm24 = vcmask 15360
  %v25 = vsel %vm24, %v8, 0.0
  %26 = vadd.xlane.f32.xlu0 %v25
  %v27 = vpop.xlane.xlu0 %26
  %v28 = vsel %vm24, %v9, 0.0
  %29 = vadd.xlane.f32.xlu0 %v28
  %v30 = vpop.xlane.xlu0 %29
  %v31 = vsel %vm24, %v10, 0.0
  %32 = vadd.xlane.f32.xlu0 %v31
  %v33 = vpop.xlane.xlu0 %32
  %v34 = vsel %vm24, %v11, 0.0
  %35 = vadd.xlane.f32.xlu0 %v34
  %v36 = vpop.xlane.xlu0 %35
  %v37 = vsel %vm24, %v12, 0.0
  %38 = vadd.xlane.f32.xlu0 %v37
  %v39 = vpop.xlane.xlu0 %38
  %v40 = vsel %vm24, %v13, 0.0
  %41 = vadd.xlane.f32.xlu0 %v40
  %v42 = vpop.xlane.xlu0 %41
  %v43 = vsel %vm24, %v14, 0.0
  %44 = vadd.xlane.f32.xlu0 %v43
  %v45 = vpop.xlane.xlu0 %44
  %v46 = vsel %vm24, %v15, 0.0
  %47 = vadd.xlane.f32.xlu0 %v46
  %v48 = vpop.xlane.xlu0 %47
  %v49 = vsel %vm24, %v16, 0.0
  %50 = vadd.xlane.f32.xlu0 %v49
  %v51 = vpop.xlane.xlu0 %50
  %v52 = vsel %vm24, %v17, 0.0
  %53 = vadd.xlane.f32.xlu0 %v52
  %v54 = vpop.xlane.xlu0 %53
  %v55 = vsel %vm24, %v18, 0.0
  %56 = vadd.xlane.f32.xlu0 %v55
  %v57 = vpop.xlane.xlu0 %56
  %v58 = vsel %vm24, %v19, 0.0
  %59 = vadd.xlane.f32.xlu0 %v58
  %v60 = vpop.xlane.xlu0 %59
  %v61 = vsel %vm24, %v20, 0.0
  %62 = vadd.xlane.f32.xlu0 %v61
  %v63 = vpop.xlane.xlu0 %62
  %v64 = vsel %vm24, %v21, 0.0
  %65 = vadd.xlane.f32.xlu0 %v64
  %v66 = vpop.xlane.xlu0 %65
  %v67 = vsel %vm24, %v22, 0.0
  %68 = vadd.xlane.f32.xlu0 %v67
  %v69 = vpop.xlane.xlu0 %68
  %v70 = vsel %vm24, %v23, 0.0
  %71 = vadd.xlane.f32.xlu0 %v70
  %v72 = vpop.xlane.xlu0 %71
  %v73 = vmul.f32 %v8, %v8
  %v74 = vmul.f32 %v9, %v9
  %v75 = vmul.f32 %v10, %v10
  %v76 = vmul.f32 %v11, %v11
  %v77 = vmul.f32 %v12, %v12
  %v78 = vmul.f32 %v13, %v13
  %v79 = vmul.f32 %v14, %v14
  %v80 = vmul.f32 %v15, %v15
  %v81 = vmul.f32 %v16, %v16
  %v82 = vmul.f32 %v17, %v17
  %v83 = vmul.f32 %v18, %v18
  %v84 = vmul.f32 %v19, %v19
  %v85 = vmul.f32 %v20, %v20
  %v86 = vmul.f32 %v21, %v21
  %v87 = vmul.f32 %v22, %v22
  %v88 = vmul.f32 %v23, %v23
  %v89 = vsel %vm24, %v73, 0.0
  %90 = vadd.xlane.f32.xlu0 %v89
  %v91 = vpop.xlane.xlu0 %90
  %v92 = vsel %vm24, %v74, 0.0
  %93 = vadd.xlane.f32.xlu0 %v92
  %v94 = vpop.xlane.xlu0 %93
  %v95 = vsel %vm24, %v75, 0.0
  %96 = vadd.xlane.f32.xlu0 %v95
  %v97 = vpop.xlane.xlu0 %96
  %v98 = vsel %vm24, %v76, 0.0
  %99 = vadd.xlane.f32.xlu0 %v98
  %v100 = vpop.xlane.xlu0 %99
  %v101 = vsel %vm24, %v77, 0.0
  %102 = vadd.xlane.f32.xlu0 %v101
  %v103 = vpop.xlane.xlu0 %102
  %v104 = vsel %vm24, %v78, 0.0
  %105 = vadd.xlane.f32.xlu0 %v104
  %v106 = vpop.xlane.xlu0 %105
  %v107 = vsel %vm24, %v79, 0.0
  %108 = vadd.xlane.f32.xlu0 %v107
  %v109 = vpop.xlane.xlu0 %108
  %v110 = vsel %vm24, %v80, 0.0
  %111 = vadd.xlane.f32.xlu0 %v110
  %v112 = vpop.xlane.xlu0 %111
  %v113 = vsel %vm24, %v81, 0.0
  %114 = vadd.xlane.f32.xlu0 %v113
  %v115 = vpop.xlane.xlu0 %114
  %v116 = vsel %vm24, %v82, 0.0
  %117 = vadd.xlane.f32.xlu0 %v116
  %v118 = vpop.xlane.xlu0 %117
  %v119 = vsel %vm24, %v83, 0.0
  %120 = vadd.xlane.f32.xlu0 %v119
  %v121 = vpop.xlane.xlu0 %120
  %v122 = vsel %vm24, %v84, 0.0
  %123 = vadd.xlane.f32.xlu0 %v122
  %v124 = vpop.xlane.xlu0 %123
  %v125 = vsel %vm24, %v85, 0.0
  %126 = vadd.xlane.f32.xlu0 %v125
  %v127 = vpop.xlane.xlu0 %126
  %v128 = vsel %vm24, %v86, 0.0
  %129 = vadd.xlane.f32.xlu0 %v128
  %v130 = vpop.xlane.xlu0 %129
  %v131 = vsel %vm24, %v87, 0.0
  %132 = vadd.xlane.f32.xlu0 %v131
  %v133 = vpop.xlane.xlu0 %132
  %v134 = vsel %vm24, %v88, 0.0
  %135 = vadd.xlane.f32.xlu0 %v134
  %v136 = vpop.xlane.xlu0 %135
  %v137 = vmul.f32 %v27, 0.5
  %v138 = vmul.f32 %v30, 0.5
  %v139 = vmul.f32 %v33, 0.5
  %v140 = vmul.f32 %v36, 0.5
  %v141 = vmul.f32 %v39, 0.5
  %v142 = vmul.f32 %v42, 0.5
  %v143 = vmul.f32 %v45, 0.5
  %v144 = vmul.f32 %v48, 0.5
  %v145 = vmul.f32 %v51, 0.5
  %v146 = vmul.f32 %v54, 0.5
  %v147 = vmul.f32 %v57, 0.5
  %v148 = vmul.f32 %v60, 0.5
  %v149 = vmul.f32 %v63, 0.5
  %v150 = vmul.f32 %v66, 0.5
  %v151 = vmul.f32 %v69, 0.5
  %v152 = vmul.f32 %v72, 0.5
  %v153 = vmul.f32 %v137, 2.0
  %v154 = vmul.f32 %v138, 2.0
  %v155 = vmul.f32 %v139, 2.0
  %v156 = vmul.f32 %v140, 2.0
  %v157 = vmul.f32 %v141, 2.0
  %v158 = vmul.f32 %v142, 2.0
  %v159 = vmul.f32 %v143, 2.0
  %v160 = vmul.f32 %v144, 2.0
  %v161 = vmul.f32 %v145, 2.0
  %v162 = vmul.f32 %v146, 2.0
  %v163 = vmul.f32 %v147, 2.0
  %v164 = vmul.f32 %v148, 2.0
  %v165 = vmul.f32 %v149, 2.0
  %v166 = vmul.f32 %v150, 2.0
  %v167 = vmul.f32 %v151, 2.0
  %v168 = vmul.f32 %v152, 2.0
  %v169 = vmul.f32 %v153, %v137
  %v170 = vmul.f32 %v154, %v138
  %v171 = vmul.f32 %v155, %v139
  %v172 = vmul.f32 %v156, %v140
  %v173 = vmul.f32 %v157, %v141
  %v174 = vmul.f32 %v158, %v142
  %v175 = vmul.f32 %v159, %v143
  %v176 = vmul.f32 %v160, %v144
  %v177 = vmul.f32 %v161, %v145
  %v178 = vmul.f32 %v162, %v146
  %v179 = vmul.f32 %v163, %v147
  %v180 = vmul.f32 %v164, %v148
  %v181 = vmul.f32 %v165, %v149
  %v182 = vmul.f32 %v166, %v150
  %v183 = vmul.f32 %v167, %v151
  %v184 = vmul.f32 %v168, %v152
  %v185 = vsub.f32 %v91, %v169
  %v186 = vsub.f32 %v94, %v170
  %v187 = vsub.f32 %v97, %v171
  %v188 = vsub.f32 %v100, %v172
  %v189 = vsub.f32 %v103, %v173
  %v190 = vsub.f32 %v106, %v174
  %v191 = vsub.f32 %v109, %v175
  %v192 = vsub.f32 %v112, %v176
  %v193 = vsub.f32 %v115, %v177
  %v194 = vsub.f32 %v118, %v178
  %v195 = vsub.f32 %v121, %v179
  %v196 = vsub.f32 %v124, %v180
  %v197 = vsub.f32 %v127, %v181
  %v198 = vsub.f32 %v130, %v182
  %v199 = vsub.f32 %v133, %v183
  %v200 = vsub.f32 %v136, %v184
  %v201 = vmax.f32 %v185, 0.0
  %v202 = vmax.f32 %v186, 0.0
  %v203 = vmax.f32 %v187, 0.0
  %v204 = vmax.f32 %v188, 0.0
  %v205 = vmax.f32 %v189, 0.0
  %v206 = vmax.f32 %v190, 0.0
  %v207 = vmax.f32 %v191, 0.0
  %v208 = vmax.f32 %v192, 0.0
  %v209 = vmax.f32 %v193, 0.0
  %v210 = vmax.f32 %v194, 0.0
  %v211 = vmax.f32 %v195, 0.0
  %v212 = vmax.f32 %v196, 0.0
  %v213 = vmax.f32 %v197, 0.0
  %v214 = vmax.f32 %v198, 0.0
  %v215 = vmax.f32 %v199, 0.0
  %v216 = vmax.f32 %v200, 0.0
  %v217 = vadd.f32 %v201, 1e-07
  %v218 = vadd.f32 %v202, 1e-07
  %v219 = vadd.f32 %v203, 1e-07
  %v220 = vadd.f32 %v204, 1e-07
  %v221 = vadd.f32 %v205, 1e-07
  %v222 = vadd.f32 %v206, 1e-07
  %v223 = vadd.f32 %v207, 1e-07
  %v224 = vadd.f32 %v208, 1e-07
  %v225 = vadd.f32 %v209, 1e-07
  %v226 = vadd.f32 %v210, 1e-07
  %v227 = vadd.f32 %v211, 1e-07
  %v228 = vadd.f32 %v212, 1e-07
  %v229 = vadd.f32 %v213, 1e-07
  %v230 = vadd.f32 %v214, 1e-07
  %v231 = vadd.f32 %v215, 1e-07
  %v232 = vadd.f32 %v216, 1e-07
  %v233 = vrsqrt.pop %v217
  %v234 = vmul.f32 %v217, %v233
  %vm235 = vcmp.eq.f32.partialorder %v217, inf
  %v236 = vsel %vm235, %v217, %v234
  %vm237 = vcmp.eq.f32.partialorder %v217, 0.0
  %v238 = vand.u32 %v217, 2147483648
  %v239 = vsel %vm237, %v238, %v236
  %v240 = vrsqrt.pop %v218
  %v241 = vmul.f32 %v218, %v240
  %vm242 = vcmp.eq.f32.partialorder %v218, inf
  %v243 = vsel %vm242, %v218, %v241
  %vm244 = vcmp.eq.f32.partialorder %v218, 0.0
  %v245 = vand.u32 %v218, 2147483648
  %v246 = vsel %vm244, %v245, %v243
  %v247 = vrsqrt.pop %v219
  %v248 = vmul.f32 %v219, %v247
  %vm249 = vcmp.eq.f32.partialorder %v219, inf
  %v250 = vsel %vm249, %v219, %v248
  %vm251 = vcmp.eq.f32.partialorder %v219, 0.0
  %v252 = vand.u32 %v219, 2147483648
  %v253 = vsel %vm251, %v252, %v250
  %v254 = vrsqrt.pop %v220
  %v255 = vmul.f32 %v220, %v254
  %vm256 = vcmp.eq.f32.partialorder %v220, inf
  %v257 = vsel %vm256, %v220, %v255
  %vm258 = vcmp.eq.f32.partialorder %v220, 0.0
  %v259 = vand.u32 %v220, 2147483648
  %v260 = vsel %vm258, %v259, %v257
  %v261 = vrsqrt.pop %v221
  %v262 = vmul.f32 %v221, %v261
  %vm263 = vcmp.eq.f32.partialorder %v221, inf
  %v264 = vsel %vm263, %v221, %v262
  %vm265 = vcmp.eq.f32.partialorder %v221, 0.0
  %v266 = vand.u32 %v221, 2147483648
  %v267 = vsel %vm265, %v266, %v264
  %v268 = vrsqrt.pop %v222
  %v269 = vmul.f32 %v222, %v268
  %vm270 = vcmp.eq.f32.partialorder %v222, inf
  %v271 = vsel %vm270, %v222, %v269
  %vm272 = vcmp.eq.f32.partialorder %v222, 0.0
  %v273 = vand.u32 %v222, 2147483648
  %v274 = vsel %vm272, %v273, %v271
  %v275 = vrsqrt.pop %v223
  %v276 = vmul.f32 %v223, %v275
  %vm277 = vcmp.eq.f32.partialorder %v223, inf
  %v278 = vsel %vm277, %v223, %v276
  %vm279 = vcmp.eq.f32.partialorder %v223, 0.0
  %v280 = vand.u32 %v223, 2147483648
  %v281 = vsel %vm279, %v280, %v278
  %v282 = vrsqrt.pop %v224
  %v283 = vmul.f32 %v224, %v282
  %vm284 = vcmp.eq.f32.partialorder %v224, inf
  %v285 = vsel %vm284, %v224, %v283
  %vm286 = vcmp.eq.f32.partialorder %v224, 0.0
  %v287 = vand.u32 %v224, 2147483648
  %v288 = vsel %vm286, %v287, %v285
  %v289 = vrsqrt.pop %v225
  %v290 = vmul.f32 %v225, %v289
  %vm291 = vcmp.eq.f32.partialorder %v225, inf
  %v292 = vsel %vm291, %v225, %v290
  %vm293 = vcmp.eq.f32.partialorder %v225, 0.0
  %v294 = vand.u32 %v225, 2147483648
  %v295 = vsel %vm293, %v294, %v292
  %v296 = vrsqrt.pop %v226
  %v297 = vmul.f32 %v226, %v296
  %vm298 = vcmp.eq.f32.partialorder %v226, inf
  %v299 = vsel %vm298, %v226, %v297
  %vm300 = vcmp.eq.f32.partialorder %v226, 0.0
  %v301 = vand.u32 %v226, 2147483648
  %v302 = vsel %vm300, %v301, %v299
  %v303 = vrsqrt.pop %v227
  %v304 = vmul.f32 %v227, %v303
  %vm305 = vcmp.eq.f32.partialorder %v227, inf
  %v306 = vsel %vm305, %v227, %v304
  %vm307 = vcmp.eq.f32.partialorder %v227, 0.0
  %v308 = vand.u32 %v227, 2147483648
  %v309 = vsel %vm307, %v308, %v306
  %v310 = vrsqrt.pop %v228
  %v311 = vmul.f32 %v228, %v310
  %vm312 = vcmp.eq.f32.partialorder %v228, inf
  %v313 = vsel %vm312, %v228, %v311
  %vm314 = vcmp.eq.f32.partialorder %v228, 0.0
  %v315 = vand.u32 %v228, 2147483648
  %v316 = vsel %vm314, %v315, %v313
  %v317 = vrsqrt.pop %v229
  %v318 = vmul.f32 %v229, %v317
  %vm319 = vcmp.eq.f32.partialorder %v229, inf
  %v320 = vsel %vm319, %v229, %v318
  %vm321 = vcmp.eq.f32.partialorder %v229, 0.0
  %v322 = vand.u32 %v229, 2147483648
  %v323 = vsel %vm321, %v322, %v320
  %v324 = vrsqrt.pop %v230
  %v325 = vmul.f32 %v230, %v324
  %vm326 = vcmp.eq.f32.partialorder %v230, inf
  %v327 = vsel %vm326, %v230, %v325
  %vm328 = vcmp.eq.f32.partialorder %v230, 0.0
  %v329 = vand.u32 %v230, 2147483648
  %v330 = vsel %vm328, %v329, %v327
  %v331 = vrsqrt.pop %v231
  %v332 = vmul.f32 %v231, %v331
  %vm333 = vcmp.eq.f32.partialorder %v231, inf
  %v334 = vsel %vm333, %v231, %v332
  %vm335 = vcmp.eq.f32.partialorder %v231, 0.0
  %v336 = vand.u32 %v231, 2147483648
  %v337 = vsel %vm335, %v336, %v334
  %v338 = vrsqrt.pop %v232
  %v339 = vmul.f32 %v232, %v338
  %vm340 = vcmp.eq.f32.partialorder %v232, inf
  %v341 = vsel %vm340, %v232, %v339
  %vm342 = vcmp.eq.f32.partialorder %v232, 0.0
  %v343 = vand.u32 %v232, 2147483648
  %v344 = vsel %vm342, %v343, %v341
  %v361 = vlaneseq
  %v362 = vand.u32 %v361, 127
  %v363 = vlaneseq
  %v364 = vshrl.u32 %v363, 7
  %v365 = vsub.s32 %v362, %v364
  %v366 = vrot.slane %v137, %v365
  %v367 = vadd.s32 %v362, 4294967288
  %v368 = vlaneseq
  %v369 = vshrl.u32 %v368, 7
  %v370 = vsub.s32 %v367, %v369
  %v371 = vrot.slane %v138, %v370
  %vm372 = vcmask 130112
  %v373 = vsel %vm372, %v371, %v366
  %v374 = vadd.s32 %v362, 4294967280
  %v375 = vlaneseq
  %v376 = vshrl.u32 %v375, 7
  %v377 = vsub.s32 %v374, %v376
  %v378 = vrot.slane %v139, %v377
  %vm379 = vcmask 195712
  %v380 = vsel %vm379, %v378, %v373
  %v381 = vadd.s32 %v362, 4294967272
  %v382 = vlaneseq
  %v383 = vshrl.u32 %v382, 7
  %v384 = vsub.s32 %v381, %v383
  %v385 = vrot.slane %v140, %v384
  %vm386 = vcmask 261312
  %v387 = vsel %vm386, %v385, %v380
  %v388 = vadd.s32 %v362, 4294967264
  %v389 = vlaneseq
  %v390 = vshrl.u32 %v389, 7
  %v391 = vsub.s32 %v388, %v390
  %v392 = vrot.slane %v141, %v391
  %vm393 = vcmask 326912
  %v394 = vsel %vm393, %v392, %v387
  %v395 = vadd.s32 %v362, 4294967256
  %v396 = vlaneseq
  %v397 = vshrl.u32 %v396, 7
  %v398 = vsub.s32 %v395, %v397
  %v399 = vrot.slane %v142, %v398
  %vm400 = vcmask 392512
  %v401 = vsel %vm400, %v399, %v394
  %v402 = vadd.s32 %v362, 4294967248
  %v403 = vlaneseq
  %v404 = vshrl.u32 %v403, 7
  %v405 = vsub.s32 %v402, %v404
  %v406 = vrot.slane %v143, %v405
  %vm407 = vcmask 458112
  %v408 = vsel %vm407, %v406, %v401
  %v409 = vadd.s32 %v362, 4294967240
  %v410 = vlaneseq
  %v411 = vshrl.u32 %v410, 7
  %v412 = vsub.s32 %v409, %v411
  %v413 = vrot.slane %v144, %v412
  %vm414 = vcmask 523712
  %v415 = vsel %vm414, %v413, %v408
  %v416 = vlaneseq
  %v417 = vshrl.u32 %v416, 7
  %v418 = vsub.s32 %v362, %v417
  %v419 = vrot.slane %v145, %v418
  %v420 = vlaneseq
  %v421 = vshrl.u32 %v420, 7
  %v422 = vsub.s32 %v367, %v421
  %v423 = vrot.slane %v146, %v422
  %v424 = vsel %vm372, %v423, %v419
  %v425 = vlaneseq
  %v426 = vshrl.u32 %v425, 7
  %v427 = vsub.s32 %v374, %v426
  %v428 = vrot.slane %v147, %v427
  %v429 = vsel %vm379, %v428, %v424
  %v430 = vlaneseq
  %v431 = vshrl.u32 %v430, 7
  %v432 = vsub.s32 %v381, %v431
  %v433 = vrot.slane %v148, %v432
  %v434 = vsel %vm386, %v433, %v429
  %v435 = vlaneseq
  %v436 = vshrl.u32 %v435, 7
  %v437 = vsub.s32 %v388, %v436
  %v438 = vrot.slane %v149, %v437
  %v439 = vsel %vm393, %v438, %v434
  %v440 = vlaneseq
  %v441 = vshrl.u32 %v440, 7
  %v442 = vsub.s32 %v395, %v441
  %v443 = vrot.slane %v150, %v442
  %v444 = vsel %vm400, %v443, %v439
  %v445 = vlaneseq
  %v446 = vshrl.u32 %v445, 7
  %v447 = vsub.s32 %v402, %v446
  %v448 = vrot.slane %v151, %v447
  %v449 = vsel %vm407, %v448, %v444
  %v450 = vlaneseq
  %v451 = vshrl.u32 %v450, 7
  %v452 = vsub.s32 %v409, %v451
  %v453 = vrot.slane %v152, %v452
  %v454 = vsel %vm414, %v453, %v449
  %vm455 = vcmask 1041409
  %v456 = vsel %vm455, %v454, %v415
  %v474 = vadd.s32 %v362, 4294967232
  %v475 = vlaneseq
  %v476 = vshrl.u32 %v475, 7
  %v477 = vsub.s32 %v474, %v476
  %v478 = vrot.slane %v239, %v477
  %v479 = vadd.s32 %v362, 4294967224
  %v480 = vlaneseq
  %v481 = vshrl.u32 %v480, 7
  %v482 = vsub.s32 %v479, %v481
  %v483 = vrot.slane %v246, %v482
  %vm484 = vcmask 654912
  %v485 = vsel %vm484, %v483, %v478
  %v486 = vadd.s32 %v362, 4294967216
  %v487 = vlaneseq
  %v488 = vshrl.u32 %v487, 7
  %v489 = vsub.s32 %v486, %v488
  %v490 = vrot.slane %v253, %v489
  %vm491 = vcmask 720512
  %v492 = vsel %vm491, %v490, %v485
  %v493 = vadd.s32 %v362, 4294967208
  %v494 = vlaneseq
  %v495 = vshrl.u32 %v494, 7
  %v496 = vsub.s32 %v493, %v495
  %v497 = vrot.slane %v260, %v496
  %vm498 = vcmask 786112
  %v499 = vsel %vm498, %v497, %v492
  %v500 = vadd.s32 %v362, 4294967200
  %v501 = vlaneseq
  %v502 = vshrl.u32 %v501, 7
  %v503 = vsub.s32 %v500, %v502
  %v504 = vrot.slane %v267, %v503
  %vm505 = vcmask 851712
  %v506 = vsel %vm505, %v504, %v499
  %v507 = vadd.s32 %v362, 4294967192
  %v508 = vlaneseq
  %v509 = vshrl.u32 %v508, 7
  %v510 = vsub.s32 %v507, %v509
  %v511 = vrot.slane %v274, %v510
  %vm512 = vcmask 917312
  %v513 = vsel %vm512, %v511, %v506
  %v514 = vadd.s32 %v362, 4294967184
  %v515 = vlaneseq
  %v516 = vshrl.u32 %v515, 7
  %v517 = vsub.s32 %v514, %v516
  %v518 = vrot.slane %v281, %v517
  %vm519 = vcmask 982912
  %v520 = vsel %vm519, %v518, %v513
  %v521 = vadd.s32 %v362, 4294967176
  %v522 = vlaneseq
  %v523 = vshrl.u32 %v522, 7
  %v524 = vsub.s32 %v521, %v523
  %v525 = vrot.slane %v288, %v524
  %vm526 = vcmask 1048512
  %v527 = vsel %vm526, %v525, %v520
  %v528 = vlaneseq
  %v529 = vshrl.u32 %v528, 7
  %v530 = vsub.s32 %v474, %v529
  %v531 = vrot.slane %v295, %v530
  %v532 = vlaneseq
  %v533 = vshrl.u32 %v532, 7
  %v534 = vsub.s32 %v479, %v533
  %v535 = vrot.slane %v302, %v534
  %v536 = vsel %vm484, %v535, %v531
  %v537 = vlaneseq
  %v538 = vshrl.u32 %v537, 7
  %v539 = vsub.s32 %v486, %v538
  %v540 = vrot.slane %v309, %v539
  %v541 = vsel %vm491, %v540, %v536
  %v542 = vlaneseq
  %v543 = vshrl.u32 %v542, 7
  %v544 = vsub.s32 %v493, %v543
  %v545 = vrot.slane %v316, %v544
  %v546 = vsel %vm498, %v545, %v541
  %v547 = vlaneseq
  %v548 = vshrl.u32 %v547, 7
  %v549 = vsub.s32 %v500, %v548
  %v550 = vrot.slane %v323, %v549
  %v551 = vsel %vm505, %v550, %v546
  %v552 = vlaneseq
  %v553 = vshrl.u32 %v552, 7
  %v554 = vsub.s32 %v507, %v553
  %v555 = vrot.slane %v330, %v554
  %v556 = vsel %vm512, %v555, %v551
  %v557 = vlaneseq
  %v558 = vshrl.u32 %v557, 7
  %v559 = vsub.s32 %v514, %v558
  %v560 = vrot.slane %v337, %v559
  %v561 = vsel %vm519, %v560, %v556
  %v562 = vlaneseq
  %v563 = vshrl.u32 %v562, 7
  %v564 = vsub.s32 %v521, %v563
  %v565 = vrot.slane %v344, %v564
  %v566 = vsel %vm526, %v565, %v561
  %v567 = vsel %vm455, %v566, %v527
  %vm569 = vcmask 523264
  %v570 = vsel %vm569, %v456, %v567
  %571 = vst [vmem:[%s1] sm:$0x3] %v570
  // Predicated region
  $region6: #{_lambda_.27} parent=0 // pred_check
    _
  $region7: #{_lambda_.27} parent=0 // pred_check_branch
    %573 = sbr.rel (0) target = $region9
  $region8: #{_lambda_.27} parent=0 // pred_region
    _
  $region9: #{_lambda_.27} parent=0 // pred_fallthru
    _
  // Predicated region
  $region10: #{_lambda_.27} parent=0 // pred_check
    _
  $region11: #{_lambda_.27} parent=0 // pred_check_branch
    %575 = sbr.rel (0) target = $region13
  $region12: #{_lambda_.27} parent=0 // pred_region
    _
  $region13: #{_lambda_.27} parent=0 // pred_fallthru
    _

// kernel: _lambda_.26
$region0: #{_lambda_.26}
  #allocation0 [shape = 'u32[]', space=smem, size = 0x4, offset = 0x4, fixed_abs, tag = 'smem constant byte address 0x4 - core index']
  #allocation1 [shape = 'u32[144,128]{1,0:T(1,128)}', space=vmem, size = 0x12000, scoped, tag = 'internal scratch']
  #allocation2 [shape = 'f32[16,128]{1,0:T(8,128)}', space=vmem, size = 0x2000, scoped, tag = 'scratch operand']
  %s0 = inlined_call_operand.vmem [shape: bf16[16,1024], index: 0, kind: input, shape index: {}]
  %s1 = inlined_call_operand.vmem [shape: bf16[1024,128], index: 1, kind: input, shape index: {}]
  %s2 = inlined_call_operand.vmem [shape: f32[1,128], index: 2, kind: input, shape index: {}]
  %s3 = inlined_call_operand.vmem [shape: bf16[16,128], index: 3, kind: input, shape index: {}]
  %s4 = inlined_call_operand.vmem [shape: bf16[16,128], index: 4, kind: output, shape index: {}]
  %s5 = sld [smem:[#allocation0]]
  $region80: #{_lambda_.26} parent=0
    _
  %s7 = ssub.s32 1, %s5
  %s8 = scalar_select 0, %s7, %s5
  $region1: #{_lambda_.26} parent=0
    #allocation3 [shape = 'u8[32768]{0}', space=vmem, size = 0x8000, scoped, tag = 'input window, operand 0']
    loop: start=0, step=1, limit=4
    $region2: #{_lambda_.26} parent=1 // loop_pre_header
      _
    $region3: #{_lambda_.26} parent=1 // loop_header
      %s10 = sphi 0, %s14
      %p11 = scmp.ge.s32.totalorder %s10, 4
      %s17 = sphi 0, %s36
      %s18 = sphi 0, %s32
      %s19 = sphi 0, %s28
      %s20 = sphi 0, %s17
      %s21 = sphi 0, %s18
      %s22 = sphi 0, %s19
      %s23 = sphi 0, %s20
      %s24 = sphi 0, %s21
      %s25 = sphi 0, %s22
      %s41 = sphi 0, %s43
      %s44 = sphi 0, %s41
      %s45 = sphi 0, %s44
      %s61 = sphi 0, %s45
      %s69 = sphi 0, %s71
      %s72 = sphi 0, %s69
      %s73 = sphi 0, %s72
      %s89 = sphi 0, %s73
      %s95 = sphi 0, %s97
      %s98 = sphi 0, %s95
      %s99 = sphi 0, %s98
      %s115 = sphi 0, %s99
      %s123 = sphi 0, %s125
      %s126 = sphi 0, %s123
      %s127 = sphi 0, %s126
      %s143 = sphi 0, %s127
      %s151 = sphi 0, %s153
      %s154 = sphi 0, %s151
      %s155 = sphi 0, %s154
      %s171 = sphi 0, %s155
    $region4: #{_lambda_.26} parent=1 // loop_header_branch
      %13 = sbr.rel (%p11) target = $region8
    $region5: #{_lambda_.26} parent=1 // loop_body
      %s15 = ssub.s32 %s10, 1
      %s16 = ssub.s32 %s10, 2
      %s26 = sadd.s32 1, %s19
      %p27 = scmp.ge.s32.totalorder %s26, 2
      %s28 = scalar_select %p27, 0, %s26
      %s29 = sadd.s32 1, %s18
      %s30 = scalar_select %p27, %s29, %s18
      %p31 = scmp.ge.s32.totalorder %s30, 1
      %s32 = scalar_select %p31, 0, %s30
      %s33 = sadd.s32 1, %s17
      %s34 = scalar_select %p31, %s33, %s17
      %p35 = scmp.ge.s32.totalorder %s34, 1
      %s36 = scalar_select %p35, 0, %s34
      %s37 = ssub.s32 %s17, %s36
      %s38 = ssub.s32 %s19, %s28
      %s39 = sor.u32 %s37, %s38
      %p40 = scmp.eq.s32.totalorder %s39, 0
      %s42 = sadd.s32 %s41, 1
      %s43 = scalar_select %p40, %s41, %s42
      %p46 = pneg %p40
      %p47 = scmp.eq.s32.totalorder %s10, 1
      %p48 = por %p46, %p47
      %p49 = scmp.ne.s32.totalorder %s41, %s44
      %p50 = scmp.eq.s32.totalorder %s10, 0
      %p51 = por %p49, %p50
      %p52 = scmp.ne.s32.totalorder %s41, %s44
      %p53 = scmp.eq.s32.totalorder %s15, 1
      %p54 = por %p52, %p53
      %p55 = scmp.ne.s32.totalorder %s44, %s45
      %p56 = scmp.eq.s32.totalorder %s15, 0
      %p57 = por %p55, %p56
      %p58 = scmp.ne.s32.totalorder %s44, %s45
      %p59 = scmp.eq.s32.totalorder %s16, 1
      %p60 = por %p58, %p59
      %p62 = scmp.ne.s32.totalorder %s45, %s61
      %p63 = scmp.eq.s32.totalorder %s16, 0
      %p64 = por %p62, %p63
      %s65 = ssub.s32 %s19, %s28
      %s66 = ssub.s32 %s18, %s32
      %s67 = sor.u32 %s65, %s66
      %p68 = scmp.eq.s32.totalorder %s67, 0
      %s70 = sadd.s32 %s69, 1
      %s71 = scalar_select %p68, %s69, %s70
      %p74 = pneg %p68
      %p75 = scmp.eq.s32.totalorder %s10, 1
      %p76 = por %p74, %p75
      %p77 = scmp.ne.s32.totalorder %s69, %s72
      %p78 = scmp.eq.s32.totalorder %s10, 0
      %p79 = por %p77, %p78
      %p80 = scmp.ne.s32.totalorder %s69, %s72
      %p81 = scmp.eq.s32.totalorder %s15, 1
      %p82 = por %p80, %p81
      %p83 = scmp.ne.s32.totalorder %s72, %s73
      %p84 = scmp.eq.s32.totalorder %s15, 0
      %p85 = por %p83, %p84
      %p86 = scmp.ne.s32.totalorder %s72, %s73
      %p87 = scmp.eq.s32.totalorder %s16, 1
      %p88 = por %p86, %p87
      %p90 = scmp.ne.s32.totalorder %s73, %s89
      %p91 = scmp.eq.s32.totalorder %s16, 0
      %p92 = por %p90, %p91
      %s93 = ssub.s32 %s18, %s32
      %p94 = scmp.eq.s32.totalorder %s93, 0
      %s96 = sadd.s32 %s95, 1
      %s97 = scalar_select %p94, %s95, %s96
      %p100 = pneg %p94
      %p101 = scmp.eq.s32.totalorder %s10, 1
      %p102 = por %p100, %p101
      %p103 = scmp.ne.s32.totalorder %s95, %s98
      %p104 = scmp.eq.s32.totalorder %s10, 0
      %p105 = por %p103, %p104
      %p106 = scmp.ne.s32.totalorder %s95, %s98
      %p107 = scmp.eq.s32.totalorder %s15, 1
      %p108 = por %p106, %p107
      %p109 = scmp.ne.s32.totalorder %s98, %s99
      %p110 = scmp.eq.s32.totalorder %s15, 0
      %p111 = por %p109, %p110
      %p112 = scmp.ne.s32.totalorder %s98, %s99
      %p113 = scmp.eq.s32.totalorder %s16, 1
      %p114 = por %p112, %p113
      %p116 = scmp.ne.s32.totalorder %s99, %s115
      %p117 = scmp.eq.s32.totalorder %s16, 0
      %p118 = por %p116, %p117
      %s119 = ssub.s32 %s17, %s36
      %s120 = ssub.s32 %s18, %s32
      %s121 = sor.u32 %s119, %s120
      %p122 = scmp.eq.s32.totalorder %s121, 0
      %s124 = sadd.s32 %s123, 1
      %s125 = scalar_select %p122, %s123, %s124
      %p128 = pneg %p122
      %p129 = scmp.eq.s32.totalorder %s10, 1
      %p130 = por %p128, %p129
      %p131 = scmp.ne.s32.totalorder %s123, %s126
      %p132 = scmp.eq.s32.totalorder %s10, 0
      %p133 = por %p131, %p132
      %p134 = scmp.ne.s32.totalorder %s123, %s126
      %p135 = scmp.eq.s32.totalorder %s15, 1
      %p136 = por %p134, %p135
      %p137 = scmp.ne.s32.totalorder %s126, %s127
      %p138 = scmp.eq.s32.totalorder %s15, 0
      %p139 = por %p137, %p138
      %p140 = scmp.ne.s32.totalorder %s126, %s127
      %p141 = scmp.eq.s32.totalorder %s16, 1
      %p142 = por %p140, %p141
      %p144 = scmp.ne.s32.totalorder %s127, %s143
      %p145 = scmp.eq.s32.totalorder %s16, 0
      %p146 = por %p144, %p145
      %s147 = ssub.s32 %s17, %s36
      %s148 = ssub.s32 %s18, %s32
      %s149 = sor.u32 %s147, %s148
      %p150 = scmp.eq.s32.totalorder %s149, 0
      %s152 = sadd.s32 %s151, 1
      %s153 = scalar_select %p150, %s151, %s152
      %p156 = pneg %p150
      %p157 = scmp.eq.s32.totalorder %s10, 1
      %p158 = por %p156, %p157
      %p159 = scmp.ne.s32.totalorder %s151, %s154
      %p160 = scmp.eq.s32.totalorder %s10, 0
      %p161 = por %p159, %p160
      %p162 = scmp.ne.s32.totalorder %s151, %s154
      %p163 = scmp.eq.s32.totalorder %s15, 1
      %p164 = por %p162, %p163
      %p165 = scmp.ne.s32.totalorder %s154, %s155
      %p166 = scmp.eq.s32.totalorder %s15, 0
      %p167 = por %p165, %p166
      %p168 = scmp.ne.s32.totalorder %s154, %s155
      %p169 = scmp.eq.s32.totalorder %s16, 1
      %p170 = por %p168, %p169
      %p172 = scmp.ne.s32.totalorder %s155, %s171
      %p173 = scmp.eq.s32.totalorder %s16, 0
      %p174 = por %p172, %p173
      %p175 = scmp.le.s32.totalorder 1, %s10
      %p176 = scmp.lt.s32.totalorder %s10, 3
      %p177 = pnand %p175, %p176
      %p178 = pneg %p177
      // Predicated region
      $region9: #{_lambda_.26} parent=5 // pred_check
        _
      $region10: #{_lambda_.26} parent=5 // pred_check_branch
        %180 = sbr.rel (%p177) target = $region12
      $region11: #{_lambda_.26} parent=5 // pred_region
        %s181 = ssub.s32 %s10, 1
        // Predicated region
        $region13: #{_lambda_.26} parent=11 // pred_check
          %p182 = pneg %p111
        $region14: #{_lambda_.26} parent=11 // pred_check_branch
          %184 = sbr.rel (%p182) target = $region16
        $region15: #{_lambda_.26} parent=11 // pred_region
          %p185 = scmp.lt.s32.totalorder %s21, 0
          %s186 = scalar_select %p185, %s21, 0
          %s187 = scalar_lea.vmem %s2, %s186
        $region16: #{_lambda_.26} parent=11 // pred_fallthru
          _
        // Predicated region
        $region17: #{_lambda_.26} parent=11 // pred_check
          %p188 = pneg %p139
        $region18: #{_lambda_.26} parent=11 // pred_check_branch
          %190 = sbr.rel (%p188) target = $region20
        $region19: #{_lambda_.26} parent=11 // pred_region
          %s191 = smul.u32 2, %s20
          %p192 = scmp.lt.s32.totalorder %s191, 1
          %s193 = scalar_select %p192, %s191, 1
          %p194 = scmp.lt.s32.totalorder %s21, 0
          %s195 = scalar_select %p194, %s21, 0
          %s196 = sadd.s32 %s195, %s193
          %s197 = smul.addr %s196, 4
          %s198 = scalar_lea.vmem %s3, %s197
          %s199 = smul.u32 2, %s20
        $region20: #{_lambda_.26} parent=11 // pred_fallthru
          _
      $region12: #{_lambda_.26} parent=5 // pred_fallthru
        _
      %p200 = scmp.lt.s32.totalorder %s10, 2
      // Predicated region
      $region21: #{_lambda_.26} parent=5 // pred_check
        %p201 = pneg %p200
      $region22: #{_lambda_.26} parent=5 // pred_check_branch
        %203 = sbr.rel (%p201) target = $region24
      $region23: #{_lambda_.26} parent=5 // pred_region
        // Predicated region
        $region25: #{_lambda_.26} parent=23 // pred_check
          %p204 = pneg %p51
        $region26: #{_lambda_.26} parent=23 // pred_check_branch
          %206 = sbr.rel (%p204) target = $region28
        $region27: #{_lambda_.26} parent=23 // pred_region
          %s207 = sand.u32 %s41, 1
          %s208 = sand.u32 %s41, 1
          %s209 = smul.addr %s208, 32
          %s210 = scalar_lea.vmem [#allocation3], %s209
          %s211 = smul.u32 2, %s17
          %s212 = smul.u32 4, %s19
          %s213 = smul.addr %s211, 8
          %s214 = sadd.s32 %s212, %s213
          %s215 = smul.addr %s214, 4
          %s216 = scalar_lea.vmem %s0, %s215
          // Predicated region
          $region29: #{_lambda_.26} parent=27 // pred_check
            _
          $region30: #{_lambda_.26} parent=27 // pred_check_branch
            %218 = sbr.rel (0) target = $region32
          $region31: #{_lambda_.26} parent=27 // pred_region
            // Predicated region
            $region33: #{_lambda_.26} parent=31 // pred_check
              _
            $region34: #{_lambda_.26} parent=31 // pred_check_branch
              %220 = sbr.rel (0) target = $region36
            $region35: #{_lambda_.26} parent=31 // pred_region
              loop: start=0, step=1, limit=1
              $region37: #{_lambda_.26} parent=35 // loop_pre_header
                _
              $region38: #{_lambda_.26} parent=35 // loop_header
                %s222 = sphi 0, %s226
                %p223 = scmp.ge.s32.totalorder %s222, 1
                %s227 = sphi %s216, %s216
                %s228 = sphi %s210, %s210
              $region39: #{_lambda_.26} parent=35 // loop_header_branch
                %225 = sbr.rel (%p223) target = $region43
              $region40: #{_lambda_.26} parent=35 // loop_body
                %v229 = vld [vmem:[%s227] sm:$0xff]
                %230 = vst [vmem:[%s228] sm:$0xff] %v229
                %v231 = vld [vmem:[%s227 + $0x8] sm:$0xff]
                %232 = vst [vmem:[%s228 + $0x8] sm:$0xff] %v231
                %v233 = vld [vmem:[%s227 + $0x20] sm:$0xff]
                %234 = vst [vmem:[%s228 + $0x10] sm:$0xff] %v233
                %v235 = vld [vmem:[%s227 + $0x28] sm:$0xff]
                %236 = vst [vmem:[%s228 + $0x18] sm:$0xff] %v235
              $region41: #{_lambda_.26} parent=35 // loop_footer
                %s226 = sadd.s32 1, %s222
              $region42: #{_lambda_.26} parent=35 // loop_footer_branch
                %221 = sbr.rel target = $region38
              $region43: #{_lambda_.26} parent=35 // loop_exit
                _
            $region36: #{_lambda_.26} parent=31 // pred_fallthru
              _
            // Predicated region
            $region44: #{_lambda_.26} parent=31 // pred_check
              _
            $region45: #{_lambda_.26} parent=31 // pred_check_branch
              %238 = sbr.rel target = $region47
            $region46: #{_lambda_.26} parent=31 // pred_region
              _
            $region47: #{_lambda_.26} parent=31 // pred_fallthru
              _
          $region32: #{_lambda_.26} parent=27 // pred_fallthru
            _
          %239 = vnop
        $region28: #{_lambda_.26} parent=23 // pred_fallthru
          _
        // Predicated region
        $region48: #{_lambda_.26} parent=23 // pred_check
          %p240 = pneg %p79
        $region49: #{_lambda_.26} parent=23 // pred_check_branch
          %242 = sbr.rel (%p240) target = $region51
        $region50: #{_lambda_.26} parent=23 // pred_region
          %s243 = smul.u32 64, %s19
          %p244 = scmp.lt.s32.totalorder %s243, 127
          %s245 = scalar_select %p244, %s243, 127
          %p246 = scmp.lt.s32.totalorder %s18, 0
          %s247 = scalar_select %p246, %s18, 0
          %s248 = sadd.s32 %s247, %s245
          %s249 = smul.addr %s248, 4
          %s250 = scalar_lea.vmem %s1, %s249
          %s251 = smul.u32 64, %s19
        $region51: #{_lambda_.26} parent=23 // pred_fallthru
          _
      $region24: #{_lambda_.26} parent=5 // pred_fallthru
        _
      %p252 = scmp.le.s32.totalorder 1, %s10
      %p253 = scmp.lt.s32.totalorder %s10, 3
      %p254 = pnand %p252, %p253
      %p255 = pneg %p254
      // Predicated region
      $region52: #{_lambda_.26} parent=5 // pred_check
        _
      $region53: #{_lambda_.26} parent=5 // pred_check_branch
        %257 = sbr.rel (%p254) target = $region55
      $region54: #{_lambda_.26} parent=5 // pred_region
        %s258 = ssub.s32 %s10, 1
        %s259 = sand.u32 %s44, 1
        %s260 = sand.u32 %s44, 1
        %s261 = smul.addr %s260, 32
        %s262 = scalar_lea.vmem [#allocation3], %s261
        // Predicated region
        $region56: #{_lambda_.26} parent=54 // pred_check
          %p263 = pneg %p57
        $region57: #{_lambda_.26} parent=54 // pred_check_branch
          %265 = sbr.rel (%p263) target = $region59
        $region58: #{_lambda_.26} parent=54 // pred_region
          _
        $region59: #{_lambda_.26} parent=54 // pred_fallthru
          _
        %s266 = sand.u32 %s44, 1
        %s267 = sand.u32 %s44, 1
        %s268 = smul.addr %s267, 32
        %s269 = scalar_lea.vmem [#allocation3], %s268
        %p270 = pneg %p57
        %p271 = pneg %p54
        %s272 = smul.u32 64, %s22
        %p273 = scmp.lt.s32.totalorder %s272, 127
        %s274 = scalar_select %p273, %s272, 127
        %p275 = scmp.lt.s32.totalorder %s21, 0
        %s276 = scalar_select %p275, %s21, 0
        %s277 = sadd.s32 %s276, %s274
        %s278 = smul.addr %s277, 4
        %s279 = scalar_lea.vmem %s1, %s278
        %p280 = pneg %p85
        %p281 = pneg %p82
        %p282 = scmp.lt.s32.totalorder %s21, 0
        %s283 = scalar_select %p282, %s21, 0
        %s284 = scalar_lea.vmem %s2, %s283
        %p285 = pneg %p111
        %p286 = pneg %p108
        %s287 = smul.u32 2, %s20
        %p288 = scmp.lt.s32.totalorder %s287, 1
        %s289 = scalar_select %p288, %s287, 1
        %p290 = scmp.lt.s32.totalorder %s21, 0
        %s291 = scalar_select %p290, %s21, 0
        %s292 = sadd.s32 %s291, %s289
        %s293 = smul.addr %s292, 4
        %s294 = scalar_lea.vmem %s3, %s293
        %p295 = pneg %p139
        %p296 = pneg %p136
        %p297 = pneg %p167
        %p298 = pneg %p164
        %s299 = smul.u32 2, %s20
        %p300 = scmp.lt.s32.totalorder %s299, 1
        %s301 = scalar_select %p300, %s299, 1
        %p302 = scmp.lt.s32.totalorder %s21, 0
        %s303 = scalar_select %p302, %s21, 0
        %s304 = sadd.s32 %s303, %s301
        %s305 = smul.addr %s304, 4
        %s306 = scalar_lea.vmem %s4, %s305
        %s307 = smul.u32 2, %s20
        %s308 = smul.u32 4, %s22
        %s309 = smul.u32 64, %s22
        %p310 = scmp.lt.s32.totalorder %s309, 127
        %s311 = scalar_select %p310, %s309, 127
        %p312 = scmp.lt.s32.totalorder %s21, 0
        %s313 = scalar_select %p312, %s21, 0
        %s314 = sadd.s32 %s313, %s311
        %s315 = smul.addr %s314, 4
        %s316 = scalar_lea.vmem %s1, %s315
        %s317 = smul.u32 64, %s22
        %p318 = scmp.lt.s32.totalorder %s21, 0
        %s319 = scalar_select %p318, %s21, 0
        %s320 = scalar_lea.vmem %s2, %s319
        %s321 = smul.u32 2, %s20
        %p322 = scmp.lt.s32.totalorder %s321, 1
        %s323 = scalar_select %p322, %s321, 1
        %p324 = scmp.lt.s32.totalorder %s21, 0
        %s325 = scalar_select %p324, %s21, 0
        %s326 = sadd.s32 %s325, %s323
        %s327 = smul.addr %s326, 4
        %s328 = scalar_lea.vmem %s3, %s327
        %s329 = smul.u32 2, %s20
        %s330 = smul.u32 2, %s20
        %p331 = scmp.lt.s32.totalorder %s330, 1
        %s332 = scalar_select %p331, %s330, 1
        %p333 = scmp.lt.s32.totalorder %s21, 0
        %s334 = scalar_select %p333, %s21, 0
        %s335 = sadd.s32 %s334, %s332
        %s336 = smul.addr %s335, 4
        %s337 = scalar_lea.vmem %s4, %s336
        %s338 = smul.u32 2, %s20
        %p340 = scmp.eq.s32.totalorder %s22, 0
        // Predicated region
        $region60: #{_lambda_.26} parent=54 // pred_check
          %p341 = pneg %p340
        $region61: #{_lambda_.26} parent=54 // pred_check_branch
          %343 = sbr.rel (%p341) target = $region63
        $region62: #{_lambda_.26} parent=54 // pred_region
          %344 = vst [vmem:[#allocation2] sm:$0xff] 0.0
          %345 = vst [vmem:[#allocation2 + $0x8] sm:$0xff] 0.0
        $region63: #{_lambda_.26} parent=54 // pred_fallthru
          _
        %v346 = vld [vmem:[%s262] sm:$0xff]
        %v347 = vld [vmem:[%s262 + $0x8] sm:$0xff]
        %v348 = vld [vmem:[%s262 + $0x10] sm:$0xff]
        %v349 = vld [vmem:[%s262 + $0x18] sm:$0xff]
        %v350 = vld [vmem:[#allocation2] sm:$0xff]
        %v351 = vld [vmem:[#allocation2 + $0x8] sm:$0xff]
        %v352 = vld [vmem:[%s316] sm:$0xf]
        %v353 = vld [vmem:[%s316 + $0x4] sm:$0xf]
        %v354 = vld [vmem:[%s316 + $0x8] sm:$0xf]
        %v355 = vld [vmem:[%s316 + $0xc] sm:$0xf]
        %v356 = vld [vmem:[%s316 + $0x10] sm:$0xf]
        %v357 = vld [vmem:[%s316 + $0x14] sm:$0xf]
        %v358 = vld [vmem:[%s316 + $0x18] sm:$0xf]
        %v359 = vld [vmem:[%s316 + $0x1c] sm:$0xf]
        %v360 = vld [vmem:[%s316 + $0x20] sm:$0xf]
        %v361 = vld [vmem:[%s316 + $0x24] sm:$0xf]
        %v362 = vld [vmem:[%s316 + $0x28] sm:$0xf]
        %v363 = vld [vmem:[%s316 + $0x2c] sm:$0xf]
        %v364 = vld [vmem:[%s316 + $0x30] sm:$0xf]
        %v365 = vld [vmem:[%s316 + $0x34] sm:$0xf]
        %v366 = vld [vmem:[%s316 + $0x38] sm:$0xf]
        %v367 = vld [vmem:[%s316 + $0x3c] sm:$0xf]
        %v368 = vld [vmem:[%s316 + $0x40] sm:$0xf]
        %v369 = vld [vmem:[%s316 + $0x44] sm:$0xf]
        %v370 = vld [vmem:[%s316 + $0x48] sm:$0xf]
        %v371 = vld [vmem:[%s316 + $0x4c] sm:$0xf]
        %v372 = vld [vmem:[%s316 + $0x50] sm:$0xf]
        %v373 = vld [vmem:[%s316 + $0x54] sm:$0xf]
        %v374 = vld [vmem:[%s316 + $0x58] sm:$0xf]
        %v375 = vld [vmem:[%s316 + $0x5c] sm:$0xf]
        %v376 = vld [vmem:[%s316 + $0x60] sm:$0xf]
        %v377 = vld [vmem:[%s316 + $0x64] sm:$0xf]
        %v378 = vld [vmem:[%s316 + $0x68] sm:$0xf]
        %v379 = vld [vmem:[%s316 + $0x6c] sm:$0xf]
        %v380 = vld [vmem:[%s316 + $0x70] sm:$0xf]
        %v381 = vld [vmem:[%s316 + $0x74] sm:$0xf]
        %v382 = vld [vmem:[%s316 + $0x78] sm:$0xf]
        %v383 = vld [vmem:[%s316 + $0x7c] sm:$0xf]
        %v384 = vld [vmem:[%s316 + $0x80] sm:$0xf]
        %v385 = vld [vmem:[%s316 + $0x84] sm:$0xf]
        %v386 = vld [vmem:[%s316 + $0x88] sm:$0xf]
        %v387 = vld [vmem:[%s316 + $0x8c] sm:$0xf]
        %v388 = vld [vmem:[%s316 + $0x90] sm:$0xf]
        %v389 = vld [vmem:[%s316 + $0x94] sm:$0xf]
        %v390 = vld [vmem:[%s316 + $0x98] sm:$0xf]
        %v391 = vld [vmem:[%s316 + $0x9c] sm:$0xf]
        %v392 = vld [vmem:[%s316 + $0xa0] sm:$0xf]
        %v393 = vld [vmem:[%s316 + $0xa4] sm:$0xf]
        %v394 = vld [vmem:[%s316 + $0xa8] sm:$0xf]
        %v395 = vld [vmem:[%s316 + $0xac] sm:$0xf]
        %v396 = vld [vmem:[%s316 + $0xb0] sm:$0xf]
        %v397 = vld [vmem:[%s316 + $0xb4] sm:$0xf]
        %v398 = vld [vmem:[%s316 + $0xb8] sm:$0xf]
        %v399 = vld [vmem:[%s316 + $0xbc] sm:$0xf]
        %v400 = vld [vmem:[%s316 + $0xc0] sm:$0xf]
        %v401 = vld [vmem:[%s316 + $0xc4] sm:$0xf]
        %v402 = vld [vmem:[%s316 + $0xc8] sm:$0xf]
        %v403 = vld [vmem:[%s316 + $0xcc] sm:$0xf]
        %v404 = vld [vmem:[%s316 + $0xd0] sm:$0xf]
        %v405 = vld [vmem:[%s316 + $0xd4] sm:$0xf]
        %v406 = vld [vmem:[%s316 + $0xd8] sm:$0xf]
        %v407 = vld [vmem:[%s316 + $0xdc] sm:$0xf]
        %v408 = vld [vmem:[%s316 + $0xe0] sm:$0xf]
        %v409 = vld [vmem:[%s316 + $0xe4] sm:$0xf]
        %v410 = vld [vmem:[%s316 + $0xe8] sm:$0xf]
        %v411 = vld [vmem:[%s316 + $0xec] sm:$0xf]
        %v412 = vld [vmem:[%s316 + $0xf0] sm:$0xf]
        %v413 = vld [vmem:[%s316 + $0xf4] sm:$0xf]
        %v414 = vld [vmem:[%s316 + $0xf8] sm:$0xf]
        %v415 = vld [vmem:[%s316 + $0xfc] sm:$0xf]
        %v420 = vunpack.c.l.b16 %v346
        %v421 = vunpack.c.h.b16 %v346
        %v422 = vunpack.c.l.b16 %v347
        %v423 = vunpack.c.h.b16 %v347
        %v424 = vunpack.c.l.b16 %v348
        %v425 = vunpack.c.h.b16 %v348
        %v426 = vunpack.c.l.b16 %v349
        %v427 = vunpack.c.h.b16 %v349
        %v428 = vpack.c.b16 %v424, %v420
        %v429 = vpack.c.b16 %v425, %v421
        %v430 = vpack.c.b16 %v426, %v422
        %v431 = vpack.c.b16 %v427, %v423
        %v500 = vunpack.c.l.b16 %v352
        %v501 = vunpack.c.l.b16 %v353
        %v502 = vunpack.c.l.b16 %v354
        %v503 = vunpack.c.l.b16 %v355
        %v504 = vunpack.c.l.b16 %v356
        %v505 = vunpack.c.l.b16 %v357
        %v506 = vunpack.c.l.b16 %v358
        %v507 = vunpack.c.l.b16 %v359
        %v508 = vunpack.c.l.b16 %v360
        %v509 = vunpack.c.l.b16 %v361
        %v510 = vunpack.c.l.b16 %v362
        %v511 = vunpack.c.l.b16 %v363
        %v512 = vunpack.c.l.b16 %v364
        %v513 = vunpack.c.l.b16 %v365
        %v514 = vunpack.c.l.b16 %v366
        %v515 = vunpack.c.l.b16 %v367
        %v516 = vunpack.c.l.b16 %v368
        %v517 = vunpack.c.l.b16 %v369
        %v518 = vunpack.c.l.b16 %v370
        %v519 = vunpack.c.l.b16 %v371
        %v520 = vunpack.c.l.b16 %v372
        %v521 = vunpack.c.l.b16 %v373
        %v522 = vunpack.c.l.b16 %v374
        %v523 = vunpack.c.l.b16 %v375
        %v524 = vunpack.c.l.b16 %v376
        %v525 = vunpack.c.l.b16 %v377
        %v526 = vunpack.c.l.b16 %v378
        %v527 = vunpack.c.l.b16 %v379
        %v528 = vunpack.c.l.b16 %v380
        %v529 = vunpack.c.l.b16 %v381
        %v530 = vunpack.c.l.b16 %v382
        %v531 = vunpack.c.l.b16 %v383
        %v532 = vunpack.c.l.b16 %v384
        %v533 = vunpack.c.l.b16 %v385
        %v534 = vunpack.c.l.b16 %v386
        %v535 = vunpack.c.l.b16 %v387
        %v536 = vunpack.c.l.b16 %v388
        %v537 = vunpack.c.l.b16 %v389
        %v538 = vunpack.c.l.b16 %v390
        %v539 = vunpack.c.l.b16 %v391
        %v540 = vunpack.c.l.b16 %v392
        %v541 = vunpack.c.l.b16 %v393
        %v542 = vunpack.c.l.b16 %v394
        %v543 = vunpack.c.l.b16 %v395
        %v544 = vunpack.c.l.b16 %v396
        %v545 = vunpack.c.l.b16 %v397
        %v546 = vunpack.c.l.b16 %v398
        %v547 = vunpack.c.l.b16 %v399
        %v548 = vunpack.c.l.b16 %v400
        %v549 = vunpack.c.l.b16 %v401
        %v550 = vunpack.c.l.b16 %v402
        %v551 = vunpack.c.l.b16 %v403
        %v552 = vunpack.c.l.b16 %v404
        %v553 = vunpack.c.l.b16 %v405
        %v554 = vunpack.c.l.b16 %v406
        %v555 = vunpack.c.l.b16 %v407
        %v556 = vunpack.c.l.b16 %v408
        %v557 = vunpack.c.l.b16 %v409
        %v558 = vunpack.c.l.b16 %v410
        %v559 = vunpack.c.l.b16 %v411
        %v560 = vunpack.c.l.b16 %v412
        %v561 = vunpack.c.l.b16 %v413
        %v562 = vunpack.c.l.b16 %v414
        %v563 = vunpack.c.l.b16 %v415
        %v564 = vpack.c.b16 %v501, %v500
        %v565 = vpack.c.b16 %v503, %v502
        %v566 = vpack.c.b16 %v505, %v504
        %v567 = vpack.c.b16 %v507, %v506
        %v568 = vpack.c.b16 %v509, %v508
        %v569 = vpack.c.b16 %v511, %v510
        %v570 = vpack.c.b16 %v513, %v512
        %v571 = vpack.c.b16 %v515, %v514
        %v572 = vpack.c.b16 %v517, %v516
        %v573 = vpack.c.b16 %v519, %v518
        %v574 = vpack.c.b16 %v521, %v520
        %v575 = vpack.c.b16 %v523, %v522
        %v576 = vpack.c.b16 %v525, %v524
        %v577 = vpack.c.b16 %v527, %v526
        %v578 = vpack.c.b16 %v529, %v528
        %v579 = vpack.c.b16 %v531, %v530
        %v580 = vpack.c.b16 %v533, %v532
        %v581 = vpack.c.b16 %v535, %v534
        %v582 = vpack.c.b16 %v537, %v536
        %v583 = vpack.c.b16 %v539, %v538
        %v584 = vpack.c.b16 %v541, %v540
        %v585 = vpack.c.b16 %v543, %v542
        %v586 = vpack.c.b16 %v545, %v544
        %v587 = vpack.c.b16 %v547, %v546
        %v588 = vpack.c.b16 %v549, %v548
        %v589 = vpack.c.b16 %v551, %v550
        %v590 = vpack.c.b16 %v553, %v552
        %v591 = vpack.c.b16 %v555, %v554
        %v592 = vpack.c.b16 %v557, %v556
        %v593 = vpack.c.b16 %v559, %v558
        %v594 = vpack.c.b16 %v561, %v560
        %v595 = vpack.c.b16 %v563, %v562
        %628 = vmatprep.subr.bf16.mxu0 0
        %629 = vmatpush1.bf16.msra.mxu0 %v564
        %630 = vmatprep.subr.bf16.mxu0 0
        %631 = vmatpush1.bf16.msra.mxu0 %v565
        %632 = vmatprep.subr.bf16.mxu0 0
        %633 = vmatpush1.bf16.msra.mxu0 %v566
        %634 = vmatprep.subr.bf16.mxu0 0
        %635 = vmatpush1.bf16.msra.mxu0 %v567
        %636 = vmatprep.subr.bf16.mxu0 0
        %637 = vmatpush1.bf16.msra.mxu0 %v568
        %638 = vmatprep.subr.bf16.mxu0 0
        %639 = vmatpush1.bf16.msra.mxu0 %v569
        %640 = vmatprep.subr.bf16.mxu0 0
        %641 = vmatpush1.bf16.msra.mxu0 %v570
        %642 = vmatprep.subr.bf16.mxu0 0
        %643 = vmatpush1.bf16.msra.mxu0 %v571
        %644 = vmatprep.subr.bf16.mxu0 0
        %645 = vmatpush1.bf16.msra.mxu0 %v572
        %646 = vmatprep.subr.bf16.mxu0 0
        %647 = vmatpush1.bf16.msra.mxu0 %v573
        %648 = vmatprep.subr.bf16.mxu0 0
        %649 = vmatpush1.bf16.msra.mxu0 %v574
        %650 = vmatprep.subr.bf16.mxu0 0
        %651 = vmatpush1.bf16.msra.mxu0 %v575
        %652 = vmatprep.subr.bf16.mxu0 0
        %653 = vmatpush1.bf16.msra.mxu0 %v576
        %654 = vmatprep.subr.bf16.mxu0 0
        %655 = vmatpush1.bf16.msra.mxu0 %v577
        %656 = vmatprep.subr.bf16.mxu0 0
        %657 = vmatpush1.bf16.msra.mxu0 %v578
        %658 = vmatprep.subr.bf16.mxu0 0
        %659 = vmatpush1.bf16.msra.mxu0 %v579
        %660 = vmatprep.mubr.bf16.mxu0 %v429
        %661 = vmatmul.mubr.bf16.gmra.mrb[0].mxu0 %v428
        %v662 = vpop.f32.mrb[0].mxu0
        %v663 = vadd.f32 0.0, %v662
        %v664 = vpop.f32.mrb[0].mxu0
        %v665 = vpop.f32.mrb[0].mxu0
        %v666 = vadd.f32 0.0, %v665
        %v667 = vpop.f32.mrb[0].mxu0
        %668 = vdwg.mxu0
        %669 = vmatprep.subr.bf16.mxu0 0
        %670 = vmatpush1.bf16.msra.mxu0 %v580
        %671 = vmatprep.subr.bf16.mxu0 0
        %672 = vmatpush1.bf16.msra.mxu0 %v581
        %673 = vmatprep.subr.bf16.mxu0 0
        %674 = vmatpush1.bf16.msra.mxu0 %v582
        %675 = vmatprep.subr.bf16.mxu0 0
        %676 = vmatpush1.bf16.msra.mxu0 %v583
        %677 = vmatprep.subr.bf16.mxu0 0
        %678 = vmatpush1.bf16.msra.mxu0 %v584
        %679 = vmatprep.subr.bf16.mxu0 0
        %680 = vmatpush1.bf16.msra.mxu0 %v585
        %681 = vmatprep.subr.bf16.mxu0 0
        %682 = vmatpush1.bf16.msra.mxu0 %v586
        %683 = vmatprep.subr.bf16.mxu0 0
        %684 = vmatpush1.bf16.msra.mxu0 %v587
        %685 = vmatprep.subr.bf16.mxu0 0
        %686 = vmatpush1.bf16.msra.mxu0 %v588
        %687 = vmatprep.subr.bf16.mxu0 0
        %688 = vmatpush1.bf16.msra.mxu0 %v589
        %689 = vmatprep.subr.bf16.mxu0 0
        %690 = vmatpush1.bf16.msra.mxu0 %v590
        %691 = vmatprep.subr.bf16.mxu0 0
        %692 = vmatpush1.bf16.msra.mxu0 %v591
        %693 = vmatprep.subr.bf16.mxu0 0
        %694 = vmatpush1.bf16.msra.mxu0 %v592
        %695 = vmatprep.subr.bf16.mxu0 0
        %696 = vmatpush1.bf16.msra.mxu0 %v593
        %697 = vmatprep.subr.bf16.mxu0 0
        %698 = vmatpush1.bf16.msra.mxu0 %v594
        %699 = vmatprep.subr.bf16.mxu0 0
        %700 = vmatpush1.bf16.msra.mxu0 %v595
        %701 = vmatprep.mubr.bf16.mxu0 %v431
        %702 = vmatmul.mubr.bf16.gmra.mrb[0].mxu0 %v430
        %v703 = vpop.f32.mrb[0].mxu0
        %v704 = vadd.f32 %v663, %v703
        %v705 = vpop.f32.mrb[0].mxu0
        %v706 = vpop.f32.mrb[0].mxu0
        %v707 = vadd.f32 %v666, %v706
        %v708 = vpop.f32.mrb[0].mxu0
        %709 = vdwg.mxu0
        %v710 = vadd.f32 %v350, %v704
        %v711 = vadd.f32 %v351, %v707
        %712 = vst [vmem:[#allocation2] sm:$0xff] %v710
        %713 = vst [vmem:[#allocation2 + $0x8] sm:$0xff] %v711
        %p714 = scmp.eq.s32.totalorder %s22, 1
        // Predicated region
        $region64: #{_lambda_.26} parent=54 // pred_check
          %p715 = pneg %p714
        $region65: #{_lambda_.26} parent=54 // pred_check_branch
          %717 = sbr.rel (%p715) target = $region67
        $region66: #{_lambda_.26} parent=54 // pred_region
          %v718 = vld [vmem:[#allocation2] sm:$0xff]
          %v719 = vld [vmem:[#allocation2 + $0x8] sm:$0xff]
          %v720 = vld [vmem:[%s320] sm:$0x1]
          %v722 = vlaneseq
          %v723 = vshrl.u32 %v722, 7
          %v724 = vsub.s32 0, %v723
          %v725 = vrot.slane %v720, %v724
          %v727 = vadd.f32 %v718, %v725
          %v728 = vadd.f32 %v719, %v725
          %v729 = vld [vmem:[%s328] sm:$0xf]
          %v730 = vld [vmem:[%s328 + $0x4] sm:$0xf]
          %v731 = vunpack.c.l.bf16 %v729
          %v732 = vunpack.c.l.bf16 %v730
          %v733 = vadd.f32 %v727, %v731
          %v734 = vadd.f32 %v728, %v732
          %v735 = vmax.f32 %v733, 0.0
          %v736 = vmax.f32 %v734, 0.0
          %v737 = vpack.c.bf16 %v736, %v735
          %v739 = vunpack.c.l.b16 %v737
          %v740 = vunpack.c.h.b16 %v737
          %v741 = vpack.c.b16 %v739, %v739
          %v742 = vpack.c.b16 %v740, %v740
          %745 = vst [vmem:[%s337] sm:$0xf] %v741
          %746 = vst [vmem:[%s337 + $0x4] sm:$0xf] %v742
        $region67: #{_lambda_.26} parent=54 // pred_fallthru
          _
        %s747 = smul.u32 2, %s20
        %p748 = scmp.lt.s32.totalorder %s747, 1
        %s749 = scalar_select %p748, %s747, 1
        %p750 = scmp.lt.s32.totalorder %s21, 0
        %s751 = scalar_select %p750, %s21, 0
        %s752 = sadd.s32 %s751, %s749
        %s753 = smul.addr %s752, 4
        %s754 = scalar_lea.vmem %s4, %s753
        // Predicated region
        $region68: #{_lambda_.26} parent=54 // pred_check
          %p755 = pneg %p164
        $region69: #{_lambda_.26} parent=54 // pred_check_branch
          %757 = sbr.rel (%p755) target = $region71
        $region70: #{_lambda_.26} parent=54 // pred_region
          %s758 = smul.u32 2, %s20
        $region71: #{_lambda_.26} parent=54 // pred_fallthru
          _
        // Predicated region
        $region72: #{_lambda_.26} parent=54 // pred_check
          %p759 = pneg %p164
        $region73: #{_lambda_.26} parent=54 // pred_check_branch
          %761 = sbr.rel (%p759) target = $region75
        $region74: #{_lambda_.26} parent=54 // pred_region
          %s762 = smul.u32 2, %s20
          %p763 = scmp.lt.s32.totalorder %s762, 1
          %s764 = scalar_select %p763, %s762, 1
          %p765 = scmp.lt.s32.totalorder %s21, 0
          %s766 = scalar_select %p765, %s21, 0
          %s767 = sadd.s32 %s766, %s764
          %s768 = smul.addr %s767, 4
          %s769 = scalar_lea.vmem %s4, %s768
        $region75: #{_lambda_.26} parent=54 // pred_fallthru
          _
      $region55: #{_lambda_.26} parent=5 // pred_fallthru
        _
      %p770 = scmp.le.s32.totalorder 2, %s10
      // Predicated region
      $region76: #{_lambda_.26} parent=5 // pred_check
        %p771 = pneg %p770
      $region77: #{_lambda_.26} parent=5 // pred_check_branch
        %773 = sbr.rel (%p771) target = $region79
      $region78: #{_lambda_.26} parent=5 // pred_region
        %s774 = ssub.s32 %s10, 2
      $region79: #{_lambda_.26} parent=5 // pred_fallthru
        _
    $region6: #{_lambda_.26} parent=1 // loop_footer
      %s14 = sadd.s32 1, %s10
    $region7: #{_lambda_.26} parent=1 // loop_footer_branch
      %9 = sbr.rel target = $region3
    $region8: #{_lambda_.26} parent=1 // loop_exit
      _

// kernel: _lambda_.28
$region0: #{_lambda_.28}
  #allocation0 [shape = 'u32[]', space=smem, size = 0x4, offset = 0x4, fixed_abs, tag = 'smem constant byte address 0x4 - core index']
  #allocation1 [shape = 'u32[144,128]{1,0:T(1,128)}', space=vmem, size = 0x12000, scoped, tag = 'internal scratch']
  #allocation2 [shape = 'f32[16,128]{1,0:T(8,128)}', space=vmem, size = 0x2000, scoped, tag = 'scratch operand']
  %s0 = inlined_call_operand.vmem [shape: bf16[16,128], index: 0, kind: input, shape index: {}]
  %s1 = inlined_call_operand.vmem [shape: bf16[128,128], index: 1, kind: input, shape index: {}]
  %s2 = inlined_call_operand.vmem [shape: f32[1,128], index: 2, kind: input, shape index: {}]
  %s3 = inlined_call_operand.vmem [shape: f32[16,128], index: 3, kind: output, shape index: {}]
  %s4 = sld [smem:[#allocation0]]
  $region30: #{_lambda_.28} parent=0
    _
  %s6 = ssub.s32 1, %s4
  %s7 = scalar_select 0, %s6, %s4
  // Predicated region
  $region2: #{_lambda_.28} parent=0 // pred_check
    _
  $region3: #{_lambda_.28} parent=0 // pred_check_branch
    %9 = sbr.rel (0) target = $region5
  $region4: #{_lambda_.28} parent=0 // pred_region
    _
  $region5: #{_lambda_.28} parent=0 // pred_fallthru
    _
  // Predicated region
  $region6: #{_lambda_.28} parent=0 // pred_check
    _
  $region7: #{_lambda_.28} parent=0 // pred_check_branch
    %11 = sbr.rel (0) target = $region9
  $region8: #{_lambda_.28} parent=0 // pred_region
    _
  $region9: #{_lambda_.28} parent=0 // pred_fallthru
    _
  // Predicated region
  $region10: #{_lambda_.28} parent=0 // pred_check
    _
  $region11: #{_lambda_.28} parent=0 // pred_check_branch
    %13 = sbr.rel (0) target = $region13
  $region12: #{_lambda_.28} parent=0 // pred_region
    _
  $region13: #{_lambda_.28} parent=0 // pred_fallthru
    _
  %p15 = scmp.eq.s32.totalorder 0, 0
  // Predicated region
  $region14: #{_lambda_.28} parent=0 // pred_check
    %p16 = pneg %p15
  $region15: #{_lambda_.28} parent=0 // pred_check_branch
    %18 = sbr.rel (%p16) target = $region17
  $region16: #{_lambda_.28} parent=0 // pred_region
    %19 = vst [vmem:[#allocation2] sm:$0xff] 0.0
    %20 = vst [vmem:[#allocation2 + $0x8] sm:$0xff] 0.0
  $region17: #{_lambda_.28} parent=0 // pred_fallthru
    _
  %v21 = vld [vmem:[%s0] sm:$0xf]
  %v22 = vld [vmem:[%s0 + $0x4] sm:$0xf]
  %v23 = vld [vmem:[#allocation2] sm:$0xff]
  %v24 = vld [vmem:[#allocation2 + $0x8] sm:$0xff]
  %v25 = vld [vmem:[%s1] sm:$0xf]
  %v26 = vld [vmem:[%s1 + $0x4] sm:$0xf]
  %v27 = vld [vmem:[%s1 + $0x8] sm:$0xf]
  %v28 = vld [vmem:[%s1 + $0xc] sm:$0xf]
  %v29 = vld [vmem:[%s1 + $0x10] sm:$0xf]
  %v30 = vld [vmem:[%s1 + $0x14] sm:$0xf]
  %v31 = vld [vmem:[%s1 + $0x18] sm:$0xf]
  %v32 = vld [vmem:[%s1 + $0x1c] sm:$0xf]
  %v33 = vld [vmem:[%s1 + $0x20] sm:$0xf]
  %v34 = vld [vmem:[%s1 + $0x24] sm:$0xf]
  %v35 = vld [vmem:[%s1 + $0x28] sm:$0xf]
  %v36 = vld [vmem:[%s1 + $0x2c] sm:$0xf]
  %v37 = vld [vmem:[%s1 + $0x30] sm:$0xf]
  %v38 = vld [vmem:[%s1 + $0x34] sm:$0xf]
  %v39 = vld [vmem:[%s1 + $0x38] sm:$0xf]
  %v40 = vld [vmem:[%s1 + $0x3c] sm:$0xf]
  %v43 = vunpack.c.l.b16 %v21
  %v44 = vunpack.c.l.b16 %v22
  %v45 = vpack.c.b16 %v44, %v43
  %v63 = vunpack.c.l.b16 %v25
  %v64 = vunpack.c.l.b16 %v26
  %v65 = vunpack.c.l.b16 %v27
  %v66 = vunpack.c.l.b16 %v28
  %v67 = vunpack.c.l.b16 %v29
  %v68 = vunpack.c.l.b16 %v30
  %v69 = vunpack.c.l.b16 %v31
  %v70 = vunpack.c.l.b16 %v32
  %v71 = vunpack.c.l.b16 %v33
  %v72 = vunpack.c.l.b16 %v34
  %v73 = vunpack.c.l.b16 %v35
  %v74 = vunpack.c.l.b16 %v36
  %v75 = vunpack.c.l.b16 %v37
  %v76 = vunpack.c.l.b16 %v38
  %v77 = vunpack.c.l.b16 %v39
  %v78 = vunpack.c.l.b16 %v40
  %v79 = vpack.c.b16 %v64, %v63
  %v80 = vpack.c.b16 %v66, %v65
  %v81 = vpack.c.b16 %v68, %v67
  %v82 = vpack.c.b16 %v70, %v69
  %v83 = vpack.c.b16 %v72, %v71
  %v84 = vpack.c.b16 %v74, %v73
  %v85 = vpack.c.b16 %v76, %v75
  %v86 = vpack.c.b16 %v78, %v77
  %95 = vmatprep.subr.bf16.mxu0 0
  %96 = vmatpush1.bf16.msra.mxu0 %v79
  %97 = vmatprep.subr.bf16.mxu0 0
  %98 = vmatpush1.bf16.msra.mxu0 %v80
  %99 = vmatprep.subr.bf16.mxu0 0
  %100 = vmatpush1.bf16.msra.mxu0 %v81
  %101 = vmatprep.subr.bf16.mxu0 0
  %102 = vmatpush1.bf16.msra.mxu0 %v82
  %103 = vmatprep.subr.bf16.mxu0 0
  %104 = vmatpush1.bf16.msra.mxu0 %v83
  %105 = vmatprep.subr.bf16.mxu0 0
  %106 = vmatpush1.bf16.msra.mxu0 %v84
  %107 = vmatprep.subr.bf16.mxu0 0
  %108 = vmatpush1.bf16.msra.mxu0 %v85
  %109 = vmatprep.subr.bf16.mxu0 0
  %110 = vmatpush1.bf16.msra.mxu0 %v86
  %111 = vmatprep.subr.bf16.mxu0 0
  %112 = vmatpush1.bf16.msra.mxu0 0
  %113 = vmatprep.subr.bf16.mxu0 0
  %114 = vmatpush1.bf16.msra.mxu0 0
  %115 = vmatprep.subr.bf16.mxu0 0
  %116 = vmatpush1.bf16.msra.mxu0 0
  %117 = vmatprep.subr.bf16.mxu0 0
  %118 = vmatpush1.bf16.msra.mxu0 0
  %119 = vmatprep.subr.bf16.mxu0 0
  %120 = vmatpush1.bf16.msra.mxu0 0
  %121 = vmatprep.subr.bf16.mxu0 0
  %122 = vmatpush1.bf16.msra.mxu0 0
  %123 = vmatprep.subr.bf16.mxu0 0
  %124 = vmatpush1.bf16.msra.mxu0 0
  %125 = vmatprep.subr.bf16.mxu0 0
  %126 = vmatpush1.bf16.msra.mxu0 0
  %127 = vmatprep.mubr.bf16.mxu0 0
  %128 = vmatmul.mubr.bf16.gmra.mrb[0].mxu0 %v45
  %v129 = vpop.f32.mrb[0].mxu0
  %v130 = vadd.f32 0.0, %v129
  %v131 = vpop.f32.mrb[0].mxu0
  %v132 = vpop.f32.mrb[0].mxu0
  %v133 = vadd.f32 0.0, %v132
  %v134 = vpop.f32.mrb[0].mxu0
  %135 = vdwg.mxu0
  %v136 = vadd.f32 %v23, %v130
  %v137 = vadd.f32 %v24, %v133
  %138 = vst [vmem:[#allocation2] sm:$0xff] %v136
  %139 = vst [vmem:[#allocation2 + $0x8] sm:$0xff] %v137
  // Predicated region
  $region18: #{_lambda_.28} parent=0 // pred_check
    %p140 = pneg %p15
  $region19: #{_lambda_.28} parent=0 // pred_check_branch
    %142 = sbr.rel (%p140) target = $region21
  $region20: #{_lambda_.28} parent=0 // pred_region
    %v143 = vld [vmem:[#allocation2] sm:$0xff]
    %v144 = vld [vmem:[#allocation2 + $0x8] sm:$0xff]
    %v145 = vld [vmem:[%s2] sm:$0x1]
    %v147 = vlaneseq
    %v148 = vshrl.u32 %v147, 7
    %v149 = vsub.s32 0, %v148
    %v150 = vrot.slane %v145, %v149
    %v152 = vadd.f32 %v143, %v150
    %v153 = vadd.f32 %v144, %v150
    %154 = vst [vmem:[%s3] sm:$0xff] %v152
    %155 = vst [vmem:[%s3 + $0x8] sm:$0xff] %v153
  $region21: #{_lambda_.28} parent=0 // pred_fallthru
    _
  // Predicated region
  $region22: #{_lambda_.28} parent=0 // pred_check
    _
  $region23: #{_lambda_.28} parent=0 // pred_check_branch
    %157 = sbr.rel (0) target = $region25
  $region24: #{_lambda_.28} parent=0 // pred_region
    _
  $region25: #{_lambda_.28} parent=0 // pred_fallthru
    _
  // Predicated region
  $region26: #{_lambda_.28} parent=0 // pred_check
    _
  $region27: #{_lambda_.28} parent=0 // pred_check_branch
    %159 = sbr.rel (0) target = $region29
  $region28: #{_lambda_.28} parent=0 // pred_region
    _
  $region29: #{_lambda_.28} parent=0 // pred_fallthru
    _

// kernel: _lambda_.29
$region0: #{_lambda_.29}
  #allocation0 [shape = 'u32[]', space=smem, size = 0x4, offset = 0x4, fixed_abs, tag = 'smem constant byte address 0x4 - core index']
  #allocation1 [shape = 'u32[144,128]{1,0:T(1,128)}', space=vmem, size = 0x12000, scoped, tag = 'internal scratch']
  #allocation2 [shape = 'f32[16,128]{1,0:T(8,128)}', space=vmem, size = 0x2000, scoped, tag = 'scratch operand']
  %s0 = inlined_call_operand.vmem [shape: bf16[16,128], index: 0, kind: input, shape index: {}]
  %s1 = inlined_call_operand.vmem [shape: bf16[128,128], index: 1, kind: input, shape index: {}]
  %s2 = inlined_call_operand.vmem [shape: f32[1,128], index: 2, kind: input, shape index: {}]
  %s3 = inlined_call_operand.vmem [shape: f32[16,128], index: 3, kind: output, shape index: {}]
  %s4 = sld [smem:[#allocation0]]
  $region30: #{_lambda_.29} parent=0
    _
  %s6 = ssub.s32 1, %s4
  %s7 = scalar_select 0, %s6, %s4
  // Predicated region
  $region2: #{_lambda_.29} parent=0 // pred_check
    _
  $region3: #{_lambda_.29} parent=0 // pred_check_branch
    %9 = sbr.rel (0) target = $region5
  $region4: #{_lambda_.29} parent=0 // pred_region
    _
  $region5: #{_lambda_.29} parent=0 // pred_fallthru
    _
  // Predicated region
  $region6: #{_lambda_.29} parent=0 // pred_check
    _
  $region7: #{_lambda_.29} parent=0 // pred_check_branch
    %11 = sbr.rel (0) target = $region9
  $region8: #{_lambda_.29} parent=0 // pred_region
    _
  $region9: #{_lambda_.29} parent=0 // pred_fallthru
    _
  // Predicated region
  $region10: #{_lambda_.29} parent=0 // pred_check
    _
  $region11: #{_lambda_.29} parent=0 // pred_check_branch
    %13 = sbr.rel (0) target = $region13
  $region12: #{_lambda_.29} parent=0 // pred_region
    _
  $region13: #{_lambda_.29} parent=0 // pred_fallthru
    _
  %p15 = scmp.eq.s32.totalorder 0, 0
  // Predicated region
  $region14: #{_lambda_.29} parent=0 // pred_check
    %p16 = pneg %p15
  $region15: #{_lambda_.29} parent=0 // pred_check_branch
    %18 = sbr.rel (%p16) target = $region17
  $region16: #{_lambda_.29} parent=0 // pred_region
    %19 = vst [vmem:[#allocation2] sm:$0xff] 0.0
    %20 = vst [vmem:[#allocation2 + $0x8] sm:$0xff] 0.0
  $region17: #{_lambda_.29} parent=0 // pred_fallthru
    _
  %v21 = vld [vmem:[%s0] sm:$0xf]
  %v22 = vld [vmem:[%s0 + $0x4] sm:$0xf]
  %v23 = vmax.bf16 %v21, 0
  %v24 = vmax.bf16 %v22, 0
  %v25 = vld [vmem:[#allocation2] sm:$0xff]
  %v26 = vld [vmem:[#allocation2 + $0x8] sm:$0xff]
  %v27 = vld [vmem:[%s1] sm:$0xf]
  %v28 = vld [vmem:[%s1 + $0x4] sm:$0xf]
  %v29 = vld [vmem:[%s1 + $0x8] sm:$0xf]
  %v30 = vld [vmem:[%s1 + $0xc] sm:$0xf]
  %v31 = vld [vmem:[%s1 + $0x10] sm:$0xf]
  %v32 = vld [vmem:[%s1 + $0x14] sm:$0xf]
  %v33 = vld [vmem:[%s1 + $0x18] sm:$0xf]
  %v34 = vld [vmem:[%s1 + $0x1c] sm:$0xf]
  %v35 = vld [vmem:[%s1 + $0x20] sm:$0xf]
  %v36 = vld [vmem:[%s1 + $0x24] sm:$0xf]
  %v37 = vld [vmem:[%s1 + $0x28] sm:$0xf]
  %v38 = vld [vmem:[%s1 + $0x2c] sm:$0xf]
  %v39 = vld [vmem:[%s1 + $0x30] sm:$0xf]
  %v40 = vld [vmem:[%s1 + $0x34] sm:$0xf]
  %v41 = vld [vmem:[%s1 + $0x38] sm:$0xf]
  %v42 = vld [vmem:[%s1 + $0x3c] sm:$0xf]
  %v45 = vunpack.c.l.b16 %v23
  %v46 = vunpack.c.l.b16 %v24
  %v47 = vpack.c.b16 %v46, %v45
  %v65 = vunpack.c.l.b16 %v27
  %v66 = vunpack.c.l.b16 %v28
  %v67 = vunpack.c.l.b16 %v29
  %v68 = vunpack.c.l.b16 %v30
  %v69 = vunpack.c.l.b16 %v31
  %v70 = vunpack.c.l.b16 %v32
  %v71 = vunpack.c.l.b16 %v33
  %v72 = vunpack.c.l.b16 %v34
  %v73 = vunpack.c.l.b16 %v35
  %v74 = vunpack.c.l.b16 %v36
  %v75 = vunpack.c.l.b16 %v37
  %v76 = vunpack.c.l.b16 %v38
  %v77 = vunpack.c.l.b16 %v39
  %v78 = vunpack.c.l.b16 %v40
  %v79 = vunpack.c.l.b16 %v41
  %v80 = vunpack.c.l.b16 %v42
  %v81 = vpack.c.b16 %v66, %v65
  %v82 = vpack.c.b16 %v68, %v67
  %v83 = vpack.c.b16 %v70, %v69
  %v84 = vpack.c.b16 %v72, %v71
  %v85 = vpack.c.b16 %v74, %v73
  %v86 = vpack.c.b16 %v76, %v75
  %v87 = vpack.c.b16 %v78, %v77
  %v88 = vpack.c.b16 %v80, %v79
  %97 = vmatprep.subr.bf16.mxu0 0
  %98 = vmatpush1.bf16.msra.mxu0 %v81
  %99 = vmatprep.subr.bf16.mxu0 0
  %100 = vmatpush1.bf16.msra.mxu0 %v82
  %101 = vmatprep.subr.bf16.mxu0 0
  %102 = vmatpush1.bf16.msra.mxu0 %v83
  %103 = vmatprep.subr.bf16.mxu0 0
  %104 = vmatpush1.bf16.msra.mxu0 %v84
  %105 = vmatprep.subr.bf16.mxu0 0
  %106 = vmatpush1.bf16.msra.mxu0 %v85
  %107 = vmatprep.subr.bf16.mxu0 0
  %108 = vmatpush1.bf16.msra.mxu0 %v86
  %109 = vmatprep.subr.bf16.mxu0 0
  %110 = vmatpush1.bf16.msra.mxu0 %v87
  %111 = vmatprep.subr.bf16.mxu0 0
  %112 = vmatpush1.bf16.msra.mxu0 %v88
  %113 = vmatprep.subr.bf16.mxu0 0
  %114 = vmatpush1.bf16.msra.mxu0 0
  %115 = vmatprep.subr.bf16.mxu0 0
  %116 = vmatpush1.bf16.msra.mxu0 0
  %117 = vmatprep.subr.bf16.mxu0 0
  %118 = vmatpush1.bf16.msra.mxu0 0
  %119 = vmatprep.subr.bf16.mxu0 0
  %120 = vmatpush1.bf16.msra.mxu0 0
  %121 = vmatprep.subr.bf16.mxu0 0
  %122 = vmatpush1.bf16.msra.mxu0 0
  %123 = vmatprep.subr.bf16.mxu0 0
  %124 = vmatpush1.bf16.msra.mxu0 0
  %125 = vmatprep.subr.bf16.mxu0 0
  %126 = vmatpush1.bf16.msra.mxu0 0
  %127 = vmatprep.subr.bf16.mxu0 0
  %128 = vmatpush1.bf16.msra.mxu0 0
  %129 = vmatprep.mubr.bf16.mxu0 0
  %130 = vmatmul.mubr.bf16.gmra.mrb[0].mxu0 %v47
  %v131 = vpop.f32.mrb[0].mxu0
  %v132 = vadd.f32 0.0, %v131
  %v133 = vpop.f32.mrb[0].mxu0
  %v134 = vpop.f32.mrb[0].mxu0
  %v135 = vadd.f32 0.0, %v134
  %v136 = vpop.f32.mrb[0].mxu0
  %137 = vdwg.mxu0
  %v138 = vadd.f32 %v25, %v132
  %v139 = vadd.f32 %v26, %v135
  %140 = vst [vmem:[#allocation2] sm:$0xff] %v138
  %141 = vst [vmem:[#allocation2 + $0x8] sm:$0xff] %v139
  // Predicated region
  $region18: #{_lambda_.29} parent=0 // pred_check
    %p142 = pneg %p15
  $region19: #{_lambda_.29} parent=0 // pred_check_branch
    %144 = sbr.rel (%p142) target = $region21
  $region20: #{_lambda_.29} parent=0 // pred_region
    %v145 = vld [vmem:[#allocation2] sm:$0xff]
    %v146 = vld [vmem:[#allocation2 + $0x8] sm:$0xff]
    %v147 = vld [vmem:[%s2] sm:$0x1]
    %v149 = vlaneseq
    %v150 = vshrl.u32 %v149, 7
    %v151 = vsub.s32 0, %v150
    %v152 = vrot.slane %v147, %v151
    %v154 = vadd.f32 %v145, %v152
    %v155 = vadd.f32 %v146, %v152
    %156 = vst [vmem:[%s3] sm:$0xff] %v154
    %157 = vst [vmem:[%s3 + $0x8] sm:$0xff] %v155
  $region21: #{_lambda_.29} parent=0 // pred_fallthru
    _
  // Predicated region
  $region22: #{_lambda_.29} parent=0 // pred_check
    _
  $region23: #{_lambda_.29} parent=0 // pred_check_branch
    %159 = sbr.rel (0) target = $region25
  $region24: #{_lambda_.29} parent=0 // pred_region
    _
  $region25: #{_lambda_.29} parent=0 // pred_fallthru
    _
  // Predicated region
  $region26: #{_lambda_.29} parent=0 // pred_check
    _
  $region27: #{_lambda_.29} parent=0 // pred_check_branch
    %161 = sbr.rel (0) target = $region29
  $region28: #{_lambda_.29} parent=0 // pred_region
    _
  $region29: #{_lambda_.29} parent=0 // pred_fallthru
    _

</llo_original>
